<compile_context>
chip_gen: v5e
topology: v5e:2x2
jax: 0.10.0
libtpu: 0.0.40
codegen_flags: <defaults>
</compile_context>

<pallas_src>
import functools

import jax
import jax.numpy as jnp
from jax.experimental import pallas as pl
from jax.experimental.pallas import tpu as pltpu

NUM_CLASSES = 2
IMG_FEAT = 1280           # EfficientNet-B0 feature width (cnn.classifier = Identity)
META_H1, META_H2 = 16, 8  # metadata MLP widths
CLS_HIDDEN = 256
STEM_C = 32               # EfficientNet-B0 stem width
K_RAW = 3 * 3 * 3         # stem patch columns (3x3 conv, 3 input channels)
K_PAD = 32                # zero-padded K for aligned (8,128)-friendly loads


def _choose_tile_m(hw):
    # Multiples of 256 keep the MXU full; cap raised to 1024 (perf review) so the
    # ~0.35 us per-grid-step overhead is amortized on large images.  The
    # (tile_m, 1280) f32 temporaries at 1024 rows are only ~5 MiB each, far below
    # even v7x's 64 MiB VMEM.
    return min(1024, pl.cdiv(hw, 256) * 256)


def _silu(v):
    # y * sigmoid(y) with the reciprocal approximated on the EUP (vrcp); keeps
    # the transcendental work on the EUP slot instead of a VPU divide.
    return v * pl.reciprocal(1.0 + jnp.exp(-v), approx=True)


# ------------------------------ Pallas kernel ------------------------------ #
def _fused_forward_kernel(cols_ref, meta_ref,
                          stem_w_ref, stem_b_ref, head_w_ref, head_b_ref,
                          mlp_w1_ref, mlp_b1_ref, mlp_w2_ref, mlp_b2_ref,
                          wci_ref, wcm_ref, bc1_ref, wc2_ref, bc2_ref,
                          o_ref, acc_ref, *, hw, tile_m):
    """Fused stem + 1x1 head conv + SiLU + GAP + metadata MLP + classifier.

    combined = cat([img_features, mlp(metadata)], dim=1); the classifier's first
    Linear(1288, 256) is computed as img @ W[:1280] + mlp(meta) @ W[1280:], which
    is exactly concat-then-matmul.  Dropout(0.3) is inference-mode (identity).
    """
    s = pl.program_id(1)

    @pl.when(s == 0)
    def _():
        acc_ref[...] = jnp.zeros_like(acc_ref)

    # stem conv as matmul: (tile_m, 32)bf16 @ (32, 32)bf16 -> f32, + b, SiLU
    # (BatchNorm folded into bias).
    x = cols_ref[...]
    h = jnp.dot(x, stem_w_ref[...], preferred_element_type=jnp.float32) + stem_b_ref[...]
    h = _silu(h)
    # 1x1 head conv to 1280: (tile_m, 32)bf16 @ (32, 1280)bf16 -> f32, + b, SiLU
    y = jnp.dot(h.astype(jnp.bfloat16), head_w_ref[...],
                preferred_element_type=jnp.float32) + head_b_ref[...]
    y = _silu(y)                                           # (tile_m, 1280) f32

    # GAP partial sum on the (otherwise idle) MXU: (1, tile_m) 0/1 row-mask @ y.
    # The mask also zeroes spatial-padding rows, replacing the old full-width
    # jnp.where + axis-0 sublane reduction (2-3 VPU/XLU passes over ~1200 vregs).
    row = jax.lax.broadcasted_iota(jnp.int32, (1, tile_m), 1) + s * tile_m
    mask = (row < hw).astype(jnp.float32)
    acc_ref[...] += jnp.dot(mask, y, preferred_element_type=jnp.float32)   # (1, 1280)

    @pl.when(s == pl.num_programs(1) - 1)
    def _():
        pooled = acc_ref[...] * (1.0 / hw)                 # (1, 1280) f32 GAP
        # metadata MLP: Linear(2,16)+ReLU, Linear(16,8)+ReLU (tiny; MXU filler)
        m = jnp.dot(meta_ref[...], mlp_w1_ref[...],
                    preferred_element_type=jnp.float32) + mlp_b1_ref[...]
        m = jnp.maximum(m, 0.0)
        m = jnp.dot(m, mlp_w2_ref[...],
                    preferred_element_type=jnp.float32) + mlp_b2_ref[...]
        m = jnp.maximum(m, 0.0)
        # classifier Linear(1288,256) + ReLU + Dropout(identity) + Linear(256,2).
        # Keep the pooled vector and the epilogue math in f32 (only the stored
        # img-half weight is bf16; upcast is a one-shot 1280x256 pass).
        z = (jnp.dot(pooled, wci_ref[...].astype(jnp.float32),
                     preferred_element_type=jnp.float32)
             + jnp.dot(m, wcm_ref[...], preferred_element_type=jnp.float32)
             + bc1_ref[...])
        z = jnp.maximum(z, 0.0)
        out = jnp.dot(z, wc2_ref[...], preferred_element_type=jnp.float32) + bc2_ref[...]
        o_ref[...] = out.astype(o_ref.dtype)               # (1, num_classes)


# ------------------------------- glue (JAX) -------------------------------- #
def _im2col_nhwc(x_nhwc, k, stride, pad):
    # TODO(synk): patch extraction stays in XLA glue; moving it in-kernel (strided
    # pl.ds reads of a padded NHWC tile via memory_space=pl.ANY + make_async_copy)
    # would remove the remaining im2col HBM round trip entirely.  The streamed
    # cols array is emitted in bf16 (half the HBM bytes) as an interim step.
    N, H, W, C = x_nhwc.shape
    xp = jnp.pad(x_nhwc, ((0, 0), (pad, pad), (pad, pad), (0, 0)))
    Ho = (H + 2 * pad - k) // stride + 1
    Wo = (W + 2 * pad - k) // stride + 1
    taps = []
    for kh in range(k):
        for kw in range(k):
            taps.append(xp[:, kh:kh + stride * Ho:stride, kw:kw + stride * Wo:stride, :])
    cols = jnp.concatenate(taps, axis=-1)                  # (N, Ho, Wo, k*k*C)
    return cols.reshape(N, Ho * Wo, k * k * C), Ho, Wo


def init_params(key):
    ks = jax.random.split(key, 12)
    s = 0.05
    return {
        # surrogate backbone: stem conv 3x3/s2 (BN folded) + 1x1 head conv to 1280.
        # NOTE: when loading real PyTorch Conv2d weights (C_out, C_in, kh, kw), the
        # stem weight must be permuted to (kh, kw, C_in, C_out) before flattening
        # to (27, 32) to match the im2col tap order used here.
        "stem_w": jax.random.normal(ks[0], (K_RAW, STEM_C), jnp.float32) * s,
        "stem_b": jax.random.normal(ks[1], (1, STEM_C), jnp.float32) * s,
        "headconv_w": jax.random.normal(ks[2], (STEM_C, IMG_FEAT), jnp.float32) * s,
        "headconv_b": jax.random.normal(ks[3], (1, IMG_FEAT), jnp.float32) * s,
        # metadata MLP: Linear(2,16) ReLU Linear(16,8) ReLU
        "mlp_w1": jax.random.normal(ks[4], (2, META_H1), jnp.float32) * s,
        "mlp_b1": jax.random.normal(ks[5], (1, META_H1), jnp.float32) * s,
        "mlp_w2": jax.random.normal(ks[6], (META_H1, META_H2), jnp.float32) * s,
        "mlp_b2": jax.random.normal(ks[7], (1, META_H2), jnp.float32) * s,
        # classifier: Linear(1280+8, 256) ReLU Dropout(0.3) Linear(256, num_classes)
        "cls_w1_img": jax.random.normal(ks[8], (IMG_FEAT, CLS_HIDDEN), jnp.float32) * s,
        "cls_w1_meta": jax.random.normal(ks[9], (META_H2, CLS_HIDDEN), jnp.float32) * s,
        "cls_b1": jax.random.normal(ks[10], (1, CLS_HIDDEN), jnp.float32) * s,
        "cls_w2": jax.random.normal(ks[11], (CLS_HIDDEN, NUM_CLASSES), jnp.float32) * s,
        "cls_b2": jnp.zeros((1, NUM_CLASSES), jnp.float32),
    }


def skin_cancer_forward(image_nchw, metadata, params):
    """image (N,3,H,W) NCHW, metadata (N,2) -> logits (N, num_classes).

    # TODO(synk): the pretrained EfficientNet-B0 trunk (16 MBConv blocks, SE,
    # BatchNorm running stats, IMAGENET1K_V1 weights) is replaced by a
    # structurally-representative surrogate (stem conv + 1x1 head conv + global
    # average pool) producing the same 1280-dim feature vector; outputs will not
    # numerically match the torchvision reference.
    # TODO(synk): v7x has 2 TensorCores; when N == 1 the single "parallel" batch
    # axis leaves one TC idle -- a split-spatial partial-GAP variant would need a
    # second combine step and is not implemented here.
    """
    N = image_nchw.shape[0]
    x = jnp.transpose(image_nchw, (0, 2, 3, 1)).astype(jnp.float32)   # NCHW -> NHWC
    cols, Ho, Wo = _im2col_nhwc(x, k=3, stride=2, pad=1)
    hw = Ho * Wo
    tile_m = _choose_tile_m(hw)
    s_tiles = pl.cdiv(hw, tile_m)
    m_pad = s_tiles * tile_m
    # pad spatial rows up to the tile grid and the stem K-dim 27 -> 32; padded
    # weight rows are zero so the math is exact; padded spatial rows are zeroed by
    # the in-kernel GAP row mask.  Streamed cols + big weights go to bf16 (MXU
    # inputs); accumulations and epilogue stay f32.
    cols = jnp.pad(cols, ((0, 0), (0, m_pad - hw), (0, K_PAD - K_RAW)))
    cols = cols.astype(jnp.bfloat16)
    stem_w = jnp.pad(params["stem_w"], ((0, K_PAD - K_RAW), (0, 0))).astype(jnp.bfloat16)
    head_w = params["headconv_w"].astype(jnp.bfloat16)
    cls_w1_img = params["cls_w1_img"].astype(jnp.bfloat16)
    meta = metadata.astype(jnp.float32).reshape(N, 1, 2)

    weights = (stem_w, params["stem_b"], head_w, params["headconv_b"],
               params["mlp_w1"], params["mlp_b1"], params["mlp_w2"], params["mlp_b2"],
               cls_w1_img, params["cls_w1_meta"], params["cls_b1"],
               params["cls_w2"], params["cls_b2"])
    # full-extent resident weight blocks (constant index map -> DMA'd once).
    # NOTE: these could be single-buffered to save ~1 MiB VMEM; not needed at the
    # current tile sizes (total VMEM stays well under the scoped limit).
    w_specs = [pl.BlockSpec(w.shape, lambda b, s: (0, 0)) for w in weights]

    logits = pl.pallas_call(
        functools.partial(_fused_forward_kernel, hw=hw, tile_m=tile_m),
        out_shape=jax.ShapeDtypeStruct((N, 1, NUM_CLASSES), jnp.float32),
        grid_spec=pltpu.PrefetchScalarGridSpec(
            num_scalar_prefetch=0,
            grid=(N, s_tiles),
            in_specs=[pl.BlockSpec((None, tile_m, K_PAD), lambda b, s: (b, s, 0)),
                      pl.BlockSpec((None, 1, 2), lambda b, s: (b, 0, 0))] + w_specs,
            out_specs=pl.BlockSpec((None, 1, NUM_CLASSES), lambda b, s: (b, 0, 0)),
            scratch_shapes=[pltpu.VMEM((1, IMG_FEAT), jnp.float32)]),
        compiler_params=pltpu.CompilerParams(
            dimension_semantics=("parallel", "arbitrary"),
            vmem_limit_bytes=64 * 1024 * 1024),
    )(cols, meta, *weights)
    return logits.reshape(N, NUM_CLASSES)


if __name__ == "__main__":
    key = jax.random.PRNGKey(0)
    k_img, k_meta, k_par = jax.random.split(key, 3)
    image = jax.random.normal(k_img, (2, 3, 32, 32), jnp.float32)   # NCHW, like PyTorch input
    metadata = jax.random.normal(k_meta, (2, 2), jnp.float32)
    params = init_params(k_par)

    out = jax.jit(skin_cancer_forward)(image, metadata, params)
    out = jax.block_until_ready(out)
    assert out.shape == (2, NUM_CLASSES) and out.dtype == jnp.float32
    print("KERNEL_OK")
</pallas_src>

<mosaic_0001>
module attributes {stable_mosaic.version = 11 : i64} {
  func.func @_fused_forward_kernel(%arg0: i32, %arg1: i32, %arg2: memref<1x256x32xbf16, #tpu.memory_space<vmem>>, %arg3: memref<1x1x2xf32, #tpu.memory_space<vmem>>, %arg4: memref<32x32xbf16, #tpu.memory_space<vmem>>, %arg5: memref<1x32xf32, #tpu.memory_space<vmem>>, %arg6: memref<32x1280xbf16, #tpu.memory_space<vmem>>, %arg7: memref<1x1280xf32, #tpu.memory_space<vmem>>, %arg8: memref<2x16xf32, #tpu.memory_space<vmem>>, %arg9: memref<1x16xf32, #tpu.memory_space<vmem>>, %arg10: memref<16x8xf32, #tpu.memory_space<vmem>>, %arg11: memref<1x8xf32, #tpu.memory_space<vmem>>, %arg12: memref<1280x256xbf16, #tpu.memory_space<vmem>>, %arg13: memref<8x256xf32, #tpu.memory_space<vmem>>, %arg14: memref<1x256xf32, #tpu.memory_space<vmem>>, %arg15: memref<256x2xf32, #tpu.memory_space<vmem>>, %arg16: memref<1x2xf32, #tpu.memory_space<vmem>>, %arg17: memref<1x1x2xf32, #tpu.memory_space<vmem>>, %arg18: memref<1x1280xf32, #tpu.memory_space<vmem>>) attributes {dimension_semantics = [#tpu.dimension_semantics<parallel>, #tpu.dimension_semantics<arbitrary>], iteration_bounds = array<i64: 2, 1>, scalar_prefetch = 0 : i64, scratch_operands = 1 : i64, tpu.core_type = #tpu.core_type<tc>, window_params = [{transform_indices = @transform_0, window_bounds = array<i64: 1, 256, 32>}, {transform_indices = @transform_1, window_bounds = array<i64: 1, 1, 2>}, {pipeline_mode = #tpu.pipeline_mode<synchronous>, transform_indices = @transform_2, window_bounds = array<i64: 32, 32>}, {pipeline_mode = #tpu.pipeline_mode<synchronous>, transform_indices = @transform_3, window_bounds = array<i64: 1, 32>}, {pipeline_mode = #tpu.pipeline_mode<synchronous>, transform_indices = @transform_4, window_bounds = array<i64: 32, 1280>}, {pipeline_mode = #tpu.pipeline_mode<synchronous>, transform_indices = @transform_5, window_bounds = array<i64: 1, 1280>}, {pipeline_mode = #tpu.pipeline_mode<synchronous>, transform_indices = @transform_6, window_bounds = array<i64: 2, 16>}, {pipeline_mode = #tpu.pipeline_mode<synchronous>, transform_indices = @transform_7, window_bounds = array<i64: 1, 16>}, {pipeline_mode = #tpu.pipeline_mode<synchronous>, transform_indices = @transform_8, window_bounds = array<i64: 16, 8>}, {pipeline_mode = #tpu.pipeline_mode<synchronous>, transform_indices = @transform_9, window_bounds = array<i64: 1, 8>}, {pipeline_mode = #tpu.pipeline_mode<synchronous>, transform_indices = @transform_10, window_bounds = array<i64: 1280, 256>}, {pipeline_mode = #tpu.pipeline_mode<synchronous>, transform_indices = @transform_11, window_bounds = array<i64: 8, 256>}, {pipeline_mode = #tpu.pipeline_mode<synchronous>, transform_indices = @transform_12, window_bounds = array<i64: 1, 256>}, {pipeline_mode = #tpu.pipeline_mode<synchronous>, transform_indices = @transform_13, window_bounds = array<i64: 256, 2>}, {pipeline_mode = #tpu.pipeline_mode<synchronous>, transform_indices = @transform_14, window_bounds = array<i64: 1, 2>}, {transform_indices = @transform_15, window_bounds = array<i64: 1, 1, 2>}]} {
    %c0_i32 = arith.constant 0 : i32
    %0 = arith.cmpi eq, %arg1, %c0_i32 : i32
    %1 = arith.extui %0 : i1 to i32
    %c0_i32_0 = arith.constant 0 : i32
    %2 = arith.cmpi ne, %1, %c0_i32_0 : i32
    scf.if %2 {
      %cst_24 = arith.constant 0.000000e+00 : f32
      %45 = vector.broadcast %cst_24 : f32 to vector<1x1280xf32>
      %c0_25 = arith.constant 0 : index
      %c0_26 = arith.constant 0 : index
      %46 = vector.load %arg18[%c0_25, %c0_26] : memref<1x1280xf32, #tpu.memory_space<vmem>>, vector<1x1280xf32>
      tpu.vector_store %arg18[%c0_25, %c0_26], %45 {strides = array<i32>} : memref<1x1280xf32, #tpu.memory_space<vmem>>, vector<1x1280xf32>,
    } else {
    }
    %c0 = arith.constant 0 : index
    %c0_1 = arith.constant 0 : index
    %c0_2 = arith.constant 0 : index
    %3 = vector.load %arg2[%c0, %c0_1, %c0_2] : memref<1x256x32xbf16, #tpu.memory_space<vmem>>, vector<1x256x32xbf16>
    %4 = vector.shape_cast %3 : vector<1x256x32xbf16> to vector<256x32xbf16>
    %c0_3 = arith.constant 0 : index
    %c0_4 = arith.constant 0 : index
    %5 = vector.load %arg4[%c0_3, %c0_4] : memref<32x32xbf16, #tpu.memory_space<vmem>>, vector<32x32xbf16>
    %cst = arith.constant dense<0.000000e+00> : vector<256x32xf32>
    %6 = tpu.matmul %4, %5, %cst {dimension_numbers = #tpu.dot_dimension_numbers<[1], [0], [0], [1], [0, 0, 1, 1], [], []>} : vector<256x32xbf16>, vector<32x32xbf16>, vector<256x32xf32> -> vector<256x32xf32>
    %c0_5 = arith.constant 0 : index
    %c0_6 = arith.constant 0 : index
    %7 = vector.load %arg5[%c0_5, %c0_6] : memref<1x32xf32, #tpu.memory_space<vmem>>, vector<1x32xf32>
    %8 = vector.broadcast %7 : vector<1x32xf32> to vector<256x32xf32>
    %9 = arith.addf %6, %8 : vector<256x32xf32>
    %cst_7 = arith.constant 0.000000e+00 : f32
    %10 = vector.broadcast %cst_7 : f32 to vector<256x32xf32>
    %11 = arith.subf %10, %9 : vector<256x32xf32>
    %12 = math.exp %11 : vector<256x32xf32>
    %cst_8 = arith.constant 1.000000e+00 : f32
    %13 = vector.broadcast %cst_8 : f32 to vector<256x32xf32>
    %14 = arith.addf %13, %12 : vector<256x32xf32>
    %15 = tpu.reciprocal %14 {approx = true} : vector<256x32xf32> -> vector<256x32xf32>
    %16 = arith.mulf %9, %15 : vector<256x32xf32>
    %17 = arith.truncf %16 : vector<256x32xf32> to vector<256x32xbf16>
    %c0_9 = arith.constant 0 : index
    %c0_10 = arith.constant 0 : index
    %18 = vector.load %arg6[%c0_9, %c0_10] : memref<32x1280xbf16, #tpu.memory_space<vmem>>, vector<32x1280xbf16>
    %cst_11 = arith.constant dense<0.000000e+00> : vector<256x1280xf32>
    %19 = tpu.matmul %17, %18, %cst_11 {dimension_numbers = #tpu.dot_dimension_numbers<[1], [0], [0], [1], [0, 0, 1, 1], [], []>} : vector<256x32xbf16>, vector<32x1280xbf16>, vector<256x1280xf32> -> vector<256x1280xf32>
    %c0_12 = arith.constant 0 : index
    %c0_13 = arith.constant 0 : index
    %20 = vector.load %arg7[%c0_12, %c0_13] : memref<1x1280xf32, #tpu.memory_space<vmem>>, vector<1x1280xf32>
    %21 = vector.broadcast %20 : vector<1x1280xf32> to vector<256x1280xf32>
    %22 = arith.addf %19, %21 : vector<256x1280xf32>
    %cst_14 = arith.constant 0.000000e+00 : f32
    %23 = vector.broadcast %cst_14 : f32 to vector<256x1280xf32>
    %24 = arith.subf %23, %22 : vector<256x1280xf32>
    %25 = math.exp %24 : vector<256x1280xf32>
    %cst_15 = arith.constant 1.000000e+00 : f32
    %26 = vector.broadcast %cst_15 : f32 to vector<256x1280xf32>
    %27 = arith.addf %26, %25 : vector<256x1280xf32>
    %28 = tpu.reciprocal %27 {approx = true} : vector<256x1280xf32> -> vector<256x1280xf32>
    %29 = arith.mulf %22, %28 : vector<256x1280xf32>
    %30 = tpu.iota {dimensions = array<i32: 1>} : vector<1x256xi32>
    %c256_i32 = arith.constant 256 : i32
    %31 = arith.muli %arg1, %c256_i32 : i32
    %32 = vector.broadcast %31 : i32 to vector<1x256xi32>
    %33 = arith.addi %30, %32 : vector<1x256xi32>
    %c256_i32_16 = arith.constant 256 : i32
    %34 = vector.broadcast %c256_i32_16 : i32 to vector<1x256xi32>
    %35 = arith.cmpi slt, %33, %34 : vector<1x256xi32>
    %36 = arith.extui %35 : vector<1x256xi1> to vector<1x256xi32>
    %37 = arith.sitofp %36 : vector<1x256xi32> to vector<1x256xf32>
    %c0_17 = arith.constant 0 : index
    %c0_18 = arith.constant 0 : index
    %38 = vector.load %arg18[%c0_17, %c0_18] : memref<1x1280xf32, #tpu.memory_space<vmem>>, vector<1x1280xf32>
    %cst_19 = arith.constant dense<0.000000e+00> : vector<1x1280xf32>
    %39 = tpu.matmul %37, %29, %cst_19 {dimension_numbers = #tpu.dot_dimension_numbers<[1], [0], [0], [1], [0, 0, 1, 1], [], []>} : vector<1x256xf32>, vector<256x1280xf32>, vector<1x1280xf32> -> vector<1x1280xf32>
    %40 = arith.addf %38, %39 : vector<1x1280xf32>
    %c0_20 = arith.constant 0 : index
    %c0_21 = arith.constant 0 : index
    %41 = vector.load %arg18[%c0_20, %c0_21] : memref<1x1280xf32, #tpu.memory_space<vmem>>, vector<1x1280xf32>
    tpu.vector_store %arg18[%c0_20, %c0_21], %40 {strides = array<i32>} : memref<1x1280xf32, #tpu.memory_space<vmem>>, vector<1x1280xf32>,
    %c0_i32_22 = arith.constant 0 : i32
    %42 = arith.cmpi eq, %arg1, %c0_i32_22 : i32
    %43 = arith.extui %42 : i1 to i32
    %c0_i32_23 = arith.constant 0 : i32
    %44 = arith.cmpi ne, %43, %c0_i32_23 : i32
    scf.if %44 {
      %c0_24 = arith.constant 0 : index
      %c0_25 = arith.constant 0 : index
      %45 = vector.load %arg18[%c0_24, %c0_25] : memref<1x1280xf32, #tpu.memory_space<vmem>>, vector<1x1280xf32>
      %cst_26 = arith.constant 3.906250e-03 : f32
      %46 = vector.broadcast %cst_26 : f32 to vector<1x1280xf32>
      %47 = arith.mulf %45, %46 : vector<1x1280xf32>
      %c0_27 = arith.constant 0 : index
      %c0_28 = arith.constant 0 : index
      %c0_29 = arith.constant 0 : index
      %48 = vector.load %arg3[%c0_27, %c0_28, %c0_29] : memref<1x1x2xf32, #tpu.memory_space<vmem>>, vector<1x1x2xf32>
      %49 = vector.shape_cast %48 : vector<1x1x2xf32> to vector<1x2xf32>
      %c0_30 = arith.constant 0 : index
      %c0_31 = arith.constant 0 : index
      %50 = vector.load %arg8[%c0_30, %c0_31] : memref<2x16xf32, #tpu.memory_space<vmem>>, vector<2x16xf32>
      %cst_32 = arith.constant dense<0.000000e+00> : vector<1x16xf32>
      %51 = tpu.matmul %49, %50, %cst_32 {dimension_numbers = #tpu.dot_dimension_numbers<[1], [0], [0], [1], [0, 0, 1, 1], [], []>} : vector<1x2xf32>, vector<2x16xf32>, vector<1x16xf32> -> vector<1x16xf32>
      %c0_33 = arith.constant 0 : index
      %c0_34 = arith.constant 0 : index
      %52 = vector.load %arg9[%c0_33, %c0_34] : memref<1x16xf32, #tpu.memory_space<vmem>>, vector<1x16xf32>
      %53 = arith.addf %51, %52 : vector<1x16xf32>
      %cst_35 = arith.constant 0.000000e+00 : f32
      %54 = vector.broadcast %cst_35 : f32 to vector<1x16xf32>
      %55 = arith.maximumf %53, %54 : vector<1x16xf32>
      %c0_36 = arith.constant 0 : index
      %c0_37 = arith.constant 0 : index
      %56 = vector.load %arg10[%c0_36, %c0_37] : memref<16x8xf32, #tpu.memory_space<vmem>>, vector<16x8xf32>
      %cst_38 = arith.constant dense<0.000000e+00> : vector<1x8xf32>
      %57 = tpu.matmul %55, %56, %cst_38 {dimension_numbers = #tpu.dot_dimension_numbers<[1], [0], [0], [1], [0, 0, 1, 1], [], []>} : vector<1x16xf32>, vector<16x8xf32>, vector<1x8xf32> -> vector<1x8xf32>
      %c0_39 = arith.constant 0 : index
      %c0_40 = arith.constant 0 : index
      %58 = vector.load %arg11[%c0_39, %c0_40] : memref<1x8xf32, #tpu.memory_space<vmem>>, vector<1x8xf32>
      %59 = arith.addf %57, %58 : vector<1x8xf32>
      %cst_41 = arith.constant 0.000000e+00 : f32
      %60 = vector.broadcast %cst_41 : f32 to vector<1x8xf32>
      %61 = arith.maximumf %59, %60 : vector<1x8xf32>
      %c0_42 = arith.constant 0 : index
      %c0_43 = arith.constant 0 : index
      %62 = vector.load %arg12[%c0_42, %c0_43] : memref<1280x256xbf16, #tpu.memory_space<vmem>>, vector<1280x256xbf16>
      %63 = arith.extf %62 : vector<1280x256xbf16> to vector<1280x256xf32>
      %cst_44 = arith.constant dense<0.000000e+00> : vector<1x256xf32>
      %64 = tpu.matmul %47, %63, %cst_44 {dimension_numbers = #tpu.dot_dimension_numbers<[1], [0], [0], [1], [0, 0, 1, 1], [], []>} : vector<1x1280xf32>, vector<1280x256xf32>, vector<1x256xf32> -> vector<1x256xf32>
      %c0_45 = arith.constant 0 : index
      %c0_46 = arith.constant 0 : index
      %65 = vector.load %arg13[%c0_45, %c0_46] : memref<8x256xf32, #tpu.memory_space<vmem>>, vector<8x256xf32>
      %cst_47 = arith.constant dense<0.000000e+00> : vector<1x256xf32>
      %66 = tpu.matmul %61, %65, %cst_47 {dimension_numbers = #tpu.dot_dimension_numbers<[1], [0], [0], [1], [0, 0, 1, 1], [], []>} : vector<1x8xf32>, vector<8x256xf32>, vector<1x256xf32> -> vector<1x256xf32>
      %67 = arith.addf %64, %66 : vector<1x256xf32>
      %c0_48 = arith.constant 0 : index
      %c0_49 = arith.constant 0 : index
      %68 = vector.load %arg14[%c0_48, %c0_49] : memref<1x256xf32, #tpu.memory_space<vmem>>, vector<1x256xf32>
      %69 = arith.addf %67, %68 : vector<1x256xf32>
      %cst_50 = arith.constant 0.000000e+00 : f32
      %70 = vector.broadcast %cst_50 : f32 to vector<1x256xf32>
      %71 = arith.maximumf %69, %70 : vector<1x256xf32>
      %c0_51 = arith.constant 0 : index
      %c0_52 = arith.constant 0 : index
      %72 = vector.load %arg15[%c0_51, %c0_52] : memref<256x2xf32, #tpu.memory_space<vmem>>, vector<256x2xf32>
      %cst_53 = arith.constant dense<0.000000e+00> : vector<1x2xf32>
      %73 = tpu.matmul %71, %72, %cst_53 {dimension_numbers = #tpu.dot_dimension_numbers<[1], [0], [0], [1], [0, 0, 1, 1], [], []>} : vector<1x256xf32>, vector<256x2xf32>, vector<1x2xf32> -> vector<1x2xf32>
      %c0_54 = arith.constant 0 : index
      %c0_55 = arith.constant 0 : index
      %74 = vector.load %arg16[%c0_54, %c0_55] : memref<1x2xf32, #tpu.memory_space<vmem>>, vector<1x2xf32>
      %75 = arith.addf %73, %74 : vector<1x2xf32>
      %c0_56 = arith.constant 0 : index
      %c0_57 = arith.constant 0 : index
      %c0_58 = arith.constant 0 : index
      %76 = vector.load %arg17[%c0_56, %c0_57, %c0_58] : memref<1x1x2xf32, #tpu.memory_space<vmem>>, vector<1x1x2xf32>
      %77 = vector.shape_cast %76 : vector<1x1x2xf32> to vector<1x2xf32>
      %78 = vector.shape_cast %75 : vector<1x2xf32> to vector<1x1x2xf32>
      tpu.vector_store %arg17[%c0_56, %c0_57, %c0_58], %78 {strides = array<i32>} : memref<1x1x2xf32, #tpu.memory_space<vmem>>, vector<1x1x2xf32>,
    } else {
    }
    return
  }
  func.func @transform_0(%arg0: i32, %arg1: i32) -> (i32, i32, i32) {
    %c0_i32 = arith.constant 0 : i32
    %c0_i32_0 = arith.constant 0 : i32
    return %arg0, %arg1, %c0_i32 : i32, i32, i32
  }
  func.func @transform_1(%arg0: i32, %arg1: i32) -> (i32, i32, i32) {
    %c0_i32 = arith.constant 0 : i32
    %c0_i32_0 = arith.constant 0 : i32
    %c0_i32_1 = arith.constant 0 : i32
    return %arg0, %c0_i32, %c0_i32_0 : i32, i32, i32
  }
  func.func @transform_2(%arg0: i32, %arg1: i32) -> (i32, i32) {
    %c0_i32 = arith.constant 0 : i32
    %c0_i32_0 = arith.constant 0 : i32
    %c0_i32_1 = arith.constant 0 : i32
    return %c0_i32, %c0_i32_0 : i32, i32
  }
  func.func @transform_3(%arg0: i32, %arg1: i32) -> (i32, i32) {
    %c0_i32 = arith.constant 0 : i32
    %c0_i32_0 = arith.constant 0 : i32
    %c0_i32_1 = arith.constant 0 : i32
    return %c0_i32, %c0_i32_0 : i32, i32
  }
  func.func @transform_4(%arg0: i32, %arg1: i32) -> (i32, i32) {
    %c0_i32 = arith.constant 0 : i32
    %c0_i32_0 = arith.constant 0 : i32
    %c0_i32_1 = arith.constant 0 : i32
    return %c0_i32, %c0_i32_0 : i32, i32
  }
  func.func @transform_5(%arg0: i32, %arg1: i32) -> (i32, i32) {
    %c0_i32 = arith.constant 0 : i32
    %c0_i32_0 = arith.constant 0 : i32
    %c0_i32_1 = arith.constant 0 : i32
    return %c0_i32, %c0_i32_0 : i32, i32
  }
  func.func @transform_6(%arg0: i32, %arg1: i32) -> (i32, i32) {
    %c0_i32 = arith.constant 0 : i32
    %c0_i32_0 = arith.constant 0 : i32
    %c0_i32_1 = arith.constant 0 : i32
    return %c0_i32, %c0_i32_0 : i32, i32
  }
  func.func @transform_7(%arg0: i32, %arg1: i32) -> (i32, i32) {
    %c0_i32 = arith.constant 0 : i32
    %c0_i32_0 = arith.constant 0 : i32
    %c0_i32_1 = arith.constant 0 : i32
    return %c0_i32, %c0_i32_0 : i32, i32
  }
  func.func @transform_8(%arg0: i32, %arg1: i32) -> (i32, i32) {
    %c0_i32 = arith.constant 0 : i32
    %c0_i32_0 = arith.constant 0 : i32
    %c0_i32_1 = arith.constant 0 : i32
    return %c0_i32, %c0_i32_0 : i32, i32
  }
  func.func @transform_9(%arg0: i32, %arg1: i32) -> (i32, i32) {
    %c0_i32 = arith.constant 0 : i32
    %c0_i32_0 = arith.constant 0 : i32
    %c0_i32_1 = arith.constant 0 : i32
    return %c0_i32, %c0_i32_0 : i32, i32
  }
  func.func @transform_10(%arg0: i32, %arg1: i32) -> (i32, i32) {
    %c0_i32 = arith.constant 0 : i32
    %c0_i32_0 = arith.constant 0 : i32
    %c0_i32_1 = arith.constant 0 : i32
    return %c0_i32, %c0_i32_0 : i32, i32
  }
  func.func @transform_11(%arg0: i32, %arg1: i32) -> (i32, i32) {
    %c0_i32 = arith.constant 0 : i32
    %c0_i32_0 = arith.constant 0 : i32
    %c0_i32_1 = arith.constant 0 : i32
    return %c0_i32, %c0_i32_0 : i32, i32
  }
  func.func @transform_12(%arg0: i32, %arg1: i32) -> (i32, i32) {
    %c0_i32 = arith.constant 0 : i32
    %c0_i32_0 = arith.constant 0 : i32
    %c0_i32_1 = arith.constant 0 : i32
    return %c0_i32, %c0_i32_0 : i32, i32
  }
  func.func @transform_13(%arg0: i32, %arg1: i32) -> (i32, i32) {
    %c0_i32 = arith.constant 0 : i32
    %c0_i32_0 = arith.constant 0 : i32
    %c0_i32_1 = arith.constant 0 : i32
    return %c0_i32, %c0_i32_0 : i32, i32
  }
  func.func @transform_14(%arg0: i32, %arg1: i32) -> (i32, i32) {
    %c0_i32 = arith.constant 0 : i32
    %c0_i32_0 = arith.constant 0 : i32
    %c0_i32_1 = arith.constant 0 : i32
    return %c0_i32, %c0_i32_0 : i32, i32
  }
  func.func @transform_15(%arg0: i32, %arg1: i32) -> (i32, i32, i32) {
    %c0_i32 = arith.constant 0 : i32
    %c0_i32_0 = arith.constant 0 : i32
    %c0_i32_1 = arith.constant 0 : i32
    return %arg0, %c0_i32, %c0_i32_0 : i32, i32, i32
  }
}

</mosaic_0001>

<llo_original>
// kernel: skin_cancer_forward.1
$region0: #{skin_cancer_forward.1}
  #allocation0 [shape = 'u32[]', space=smem, size = 0x4, offset = 0x4, fixed_abs, tag = 'smem constant byte address 0x4 - core index']
  #allocation1 [shape = 'u32[72,128]{1,0:T(1,128)}', space=vmem, size = 0x9000, scoped, tag = 'internal scratch']
  #allocation2 [shape = 'f32[1,1280]{1,0:T(1,128)}', space=vmem, size = 0x1400, scoped, tag = 'scratch operand']
  %s0 = inlined_call_operand.vmem [shape: bf16[2,256,32], index: 0, kind: input, shape index: {}]
  %s1 = inlined_call_operand.vmem [shape: f32[2,1,2], index: 1, kind: input, shape index: {}]
  %s2 = inlined_call_operand.vmem [shape: bf16[32,32], index: 2, kind: input, shape index: {}]
  %s3 = inlined_call_operand.vmem [shape: f32[1,32], index: 3, kind: input, shape index: {}]
  %s4 = inlined_call_operand.vmem [shape: bf16[32,1280], index: 4, kind: input, shape index: {}]
  %s5 = inlined_call_operand.vmem [shape: f32[1,1280], index: 5, kind: input, shape index: {}]
  %s6 = inlined_call_operand.vmem [shape: f32[2,16], index: 6, kind: input, shape index: {}]
  %s7 = inlined_call_operand.vmem [shape: f32[1,16], index: 7, kind: input, shape index: {}]
  %s8 = inlined_call_operand.vmem [shape: f32[16,8], index: 8, kind: input, shape index: {}]
  %s9 = inlined_call_operand.vmem [shape: f32[1,8], index: 9, kind: input, shape index: {}]
  %s10 = inlined_call_operand.vmem [shape: bf16[1280,256], index: 10, kind: input, shape index: {}]
  %s11 = inlined_call_operand.vmem [shape: f32[8,256], index: 11, kind: input, shape index: {}]
  %s12 = inlined_call_operand.vmem [shape: f32[1,256], index: 12, kind: input, shape index: {}]
  %s13 = inlined_call_operand.vmem [shape: f32[256,2], index: 13, kind: input, shape index: {}]
  %s14 = inlined_call_operand.vmem [shape: f32[1,2], index: 14, kind: input, shape index: {}]
  %s15 = inlined_call_operand.hbm [shape: f32[2,1,2], index: 15, kind: output, shape index: {}]
  %s16 = sld [smem:[#allocation0]]
  $region101: #{skin_cancer_forward.1} parent=0
    _
  %s18 = ssub.s32 1, %s16
  %s19 = scalar_select 0, %s18, %s16
  $region1: #{skin_cancer_forward.1} parent=0
    #allocation3 [shape = 'u8[1024]{0}', space=vmem, size = 0x400, scoped, tag = 'output window, operand 0']
    #allocation4 [shape = 's32[2]{0}', space=sflag, size = 0x8, scoped, tag = 'scoped memory for skin_cancer_forward.1']
    %20 = vsyncpa [#allocation4], 0
    %s21 = scalar_lea.sflag [#allocation4], 1
    %22 = vsyncpa %s21, 0
    loop: start=0, step=1, limit=4
    $region2: #{skin_cancer_forward.1} parent=1 // loop_pre_header
      _
    $region3: #{skin_cancer_forward.1} parent=1 // loop_header
      %s24 = sphi 0, %s28
      %p25 = scmp.ge.s32.totalorder %s24, 4
      %s31 = sphi 0, %s43
      %s32 = sphi 0, %s39
      %s33 = sphi 0, %s31
      %s34 = sphi 0, %s32
      %s35 = sphi 0, %s33
      %s36 = sphi 0, %s34
      %s48 = sphi 0, %s50
      %s51 = sphi 0, %s48
      %s52 = sphi 0, %s51
      %s68 = sphi 0, %s52
      %s74 = sphi 0, %s76
      %s77 = sphi 0, %s74
      %s78 = sphi 0, %s77
      %s94 = sphi 0, %s78
      %s98 = sphi 0, %s98
      %s100 = sphi 0, %s98
      %s101 = sphi 0, %s100
      %s115 = sphi 0, %s101
      %s119 = sphi 0, %s119
      %s121 = sphi 0, %s119
      %s122 = sphi 0, %s121
      %s136 = sphi 0, %s122
      %s140 = sphi 0, %s140
      %s142 = sphi 0, %s140
      %s143 = sphi 0, %s142
      %s157 = sphi 0, %s143
      %s161 = sphi 0, %s161
      %s163 = sphi 0, %s161
      %s164 = sphi 0, %s163
      %s178 = sphi 0, %s164
      %s182 = sphi 0, %s182
      %s184 = sphi 0, %s182
      %s185 = sphi 0, %s184
      %s199 = sphi 0, %s185
      %s203 = sphi 0, %s203
      %s205 = sphi 0, %s203
      %s206 = sphi 0, %s205
      %s220 = sphi 0, %s206
      %s224 = sphi 0, %s224
      %s226 = sphi 0, %s224
      %s227 = sphi 0, %s226
      %s241 = sphi 0, %s227
      %s245 = sphi 0, %s245
      %s247 = sphi 0, %s245
      %s248 = sphi 0, %s247
      %s262 = sphi 0, %s248
      %s266 = sphi 0, %s266
      %s268 = sphi 0, %s266
      %s269 = sphi 0, %s268
      %s283 = sphi 0, %s269
      %s287 = sphi 0, %s287
      %s289 = sphi 0, %s287
      %s290 = sphi 0, %s289
      %s304 = sphi 0, %s290
      %s308 = sphi 0, %s308
      %s310 = sphi 0, %s308
      %s311 = sphi 0, %s310
      %s325 = sphi 0, %s311
      %s329 = sphi 0, %s329
      %s331 = sphi 0, %s329
      %s332 = sphi 0, %s331
      %s346 = sphi 0, %s332
      %s350 = sphi 0, %s350
      %s352 = sphi 0, %s350
      %s353 = sphi 0, %s352
      %s367 = sphi 0, %s353
      %s373 = sphi 0, %s375
      %s376 = sphi 0, %s373
      %s377 = sphi 0, %s376
      %s393 = sphi 0, %s377
    $region4: #{skin_cancer_forward.1} parent=1 // loop_header_branch
      %27 = sbr.rel (%p25) target = $region8
    $region5: #{skin_cancer_forward.1} parent=1 // loop_body
      %s29 = ssub.s32 %s24, 1
      %s30 = ssub.s32 %s24, 2
      %s37 = sadd.s32 1, %s32
      %p38 = scmp.ge.s32.totalorder %s37, 1
      %s39 = scalar_select %p38, 0, %s37
      %s40 = sadd.s32 1, %s31
      %s41 = scalar_select %p38, %s40, %s31
      %p42 = scmp.ge.s32.totalorder %s41, 2
      %s43 = scalar_select %p42, 0, %s41
      %s44 = ssub.s32 %s31, %s43
      %s45 = ssub.s32 %s32, %s39
      %s46 = sor.u32 %s44, %s45
      %p47 = scmp.eq.s32.totalorder %s46, 0
      %s49 = sadd.s32 %s48, 1
      %s50 = scalar_select %p47, %s48, %s49
      %p53 = pneg %p47
      %p54 = scmp.eq.s32.totalorder %s24, 1
      %p55 = por %p53, %p54
      %p56 = scmp.ne.s32.totalorder %s48, %s51
      %p57 = scmp.eq.s32.totalorder %s24, 0
      %p58 = por %p56, %p57
      %p59 = scmp.ne.s32.totalorder %s48, %s51
      %p60 = scmp.eq.s32.totalorder %s29, 1
      %p61 = por %p59, %p60
      %p62 = scmp.ne.s32.totalorder %s51, %s52
      %p63 = scmp.eq.s32.totalorder %s29, 0
      %p64 = por %p62, %p63
      %p65 = scmp.ne.s32.totalorder %s51, %s52
      %p66 = scmp.eq.s32.totalorder %s30, 1
      %p67 = por %p65, %p66
      %p69 = scmp.ne.s32.totalorder %s52, %s68
      %p70 = scmp.eq.s32.totalorder %s30, 0
      %p71 = por %p69, %p70
      %s72 = ssub.s32 %s31, %s43
      %p73 = scmp.eq.s32.totalorder %s72, 0
      %s75 = sadd.s32 %s74, 1
      %s76 = scalar_select %p73, %s74, %s75
      %p79 = pneg %p73
      %p80 = scmp.eq.s32.totalorder %s24, 1
      %p81 = por %p79, %p80
      %p82 = scmp.ne.s32.totalorder %s74, %s77
      %p83 = scmp.eq.s32.totalorder %s24, 0
      %p84 = por %p82, %p83
      %p85 = scmp.ne.s32.totalorder %s74, %s77
      %p86 = scmp.eq.s32.totalorder %s29, 1
      %p87 = por %p85, %p86
      %p88 = scmp.ne.s32.totalorder %s77, %s78
      %p89 = scmp.eq.s32.totalorder %s29, 0
      %p90 = por %p88, %p89
      %p91 = scmp.ne.s32.totalorder %s77, %s78
      %p92 = scmp.eq.s32.totalorder %s30, 1
      %p93 = por %p91, %p92
      %p95 = scmp.ne.s32.totalorder %s78, %s94
      %p96 = scmp.eq.s32.totalorder %s30, 0
      %p97 = por %p95, %p96
      %s99 = sadd.s32 %s98, 1
      %p102 = scmp.eq.s32.totalorder %s24, 1
      %p103 = scmp.ne.s32.totalorder %s98, %s100
      %p104 = scmp.eq.s32.totalorder %s24, 0
      %p105 = por %p103, %p104
      %p106 = scmp.ne.s32.totalorder %s98, %s100
      %p107 = scmp.eq.s32.totalorder %s29, 1
      %p108 = por %p106, %p107
      %p109 = scmp.ne.s32.totalorder %s100, %s101
      %p110 = scmp.eq.s32.totalorder %s29, 0
      %p111 = por %p109, %p110
      %p112 = scmp.ne.s32.totalorder %s100, %s101
      %p113 = scmp.eq.s32.totalorder %s30, 1
      %p114 = por %p112, %p113
      %p116 = scmp.ne.s32.totalorder %s101, %s115
      %p117 = scmp.eq.s32.totalorder %s30, 0
      %p118 = por %p116, %p117
      %s120 = sadd.s32 %s119, 1
      %p123 = scmp.eq.s32.totalorder %s24, 1
      %p124 = scmp.ne.s32.totalorder %s119, %s121
      %p125 = scmp.eq.s32.totalorder %s24, 0
      %p126 = por %p124, %p125
      %p127 = scmp.ne.s32.totalorder %s119, %s121
      %p128 = scmp.eq.s32.totalorder %s29, 1
      %p129 = por %p127, %p128
      %p130 = scmp.ne.s32.totalorder %s121, %s122
      %p131 = scmp.eq.s32.totalorder %s29, 0
      %p132 = por %p130, %p131
      %p133 = scmp.ne.s32.totalorder %s121, %s122
      %p134 = scmp.eq.s32.totalorder %s30, 1
      %p135 = por %p133, %p134
      %p137 = scmp.ne.s32.totalorder %s122, %s136
      %p138 = scmp.eq.s32.totalorder %s30, 0
      %p139 = por %p137, %p138
      %s141 = sadd.s32 %s140, 1
      %p144 = scmp.eq.s32.totalorder %s24, 1
      %p145 = scmp.ne.s32.totalorder %s140, %s142
      %p146 = scmp.eq.s32.totalorder %s24, 0
      %p147 = por %p145, %p146
      %p148 = scmp.ne.s32.totalorder %s140, %s142
      %p149 = scmp.eq.s32.totalorder %s29, 1
      %p150 = por %p148, %p149
      %p151 = scmp.ne.s32.totalorder %s142, %s143
      %p152 = scmp.eq.s32.totalorder %s29, 0
      %p153 = por %p151, %p152
      %p154 = scmp.ne.s32.totalorder %s142, %s143
      %p155 = scmp.eq.s32.totalorder %s30, 1
      %p156 = por %p154, %p155
      %p158 = scmp.ne.s32.totalorder %s143, %s157
      %p159 = scmp.eq.s32.totalorder %s30, 0
      %p160 = por %p158, %p159
      %s162 = sadd.s32 %s161, 1
      %p165 = scmp.eq.s32.totalorder %s24, 1
      %p166 = scmp.ne.s32.totalorder %s161, %s163
      %p167 = scmp.eq.s32.totalorder %s24, 0
      %p168 = por %p166, %p167
      %p169 = scmp.ne.s32.totalorder %s161, %s163
      %p170 = scmp.eq.s32.totalorder %s29, 1
      %p171 = por %p169, %p170
      %p172 = scmp.ne.s32.totalorder %s163, %s164
      %p173 = scmp.eq.s32.totalorder %s29, 0
      %p174 = por %p172, %p173
      %p175 = scmp.ne.s32.totalorder %s163, %s164
      %p176 = scmp.eq.s32.totalorder %s30, 1
      %p177 = por %p175, %p176
      %p179 = scmp.ne.s32.totalorder %s164, %s178
      %p180 = scmp.eq.s32.totalorder %s30, 0
      %p181 = por %p179, %p180
      %s183 = sadd.s32 %s182, 1
      %p186 = scmp.eq.s32.totalorder %s24, 1
      %p187 = scmp.ne.s32.totalorder %s182, %s184
      %p188 = scmp.eq.s32.totalorder %s24, 0
      %p189 = por %p187, %p188
      %p190 = scmp.ne.s32.totalorder %s182, %s184
      %p191 = scmp.eq.s32.totalorder %s29, 1
      %p192 = por %p190, %p191
      %p193 = scmp.ne.s32.totalorder %s184, %s185
      %p194 = scmp.eq.s32.totalorder %s29, 0
      %p195 = por %p193, %p194
      %p196 = scmp.ne.s32.totalorder %s184, %s185
      %p197 = scmp.eq.s32.totalorder %s30, 1
      %p198 = por %p196, %p197
      %p200 = scmp.ne.s32.totalorder %s185, %s199
      %p201 = scmp.eq.s32.totalorder %s30, 0
      %p202 = por %p200, %p201
      %s204 = sadd.s32 %s203, 1
      %p207 = scmp.eq.s32.totalorder %s24, 1
      %p208 = scmp.ne.s32.totalorder %s203, %s205
      %p209 = scmp.eq.s32.totalorder %s24, 0
      %p210 = por %p208, %p209
      %p211 = scmp.ne.s32.totalorder %s203, %s205
      %p212 = scmp.eq.s32.totalorder %s29, 1
      %p213 = por %p211, %p212
      %p214 = scmp.ne.s32.totalorder %s205, %s206
      %p215 = scmp.eq.s32.totalorder %s29, 0
      %p216 = por %p214, %p215
      %p217 = scmp.ne.s32.totalorder %s205, %s206
      %p218 = scmp.eq.s32.totalorder %s30, 1
      %p219 = por %p217, %p218
      %p221 = scmp.ne.s32.totalorder %s206, %s220
      %p222 = scmp.eq.s32.totalorder %s30, 0
      %p223 = por %p221, %p222
      %s225 = sadd.s32 %s224, 1
      %p228 = scmp.eq.s32.totalorder %s24, 1
      %p229 = scmp.ne.s32.totalorder %s224, %s226
      %p230 = scmp.eq.s32.totalorder %s24, 0
      %p231 = por %p229, %p230
      %p232 = scmp.ne.s32.totalorder %s224, %s226
      %p233 = scmp.eq.s32.totalorder %s29, 1
      %p234 = por %p232, %p233
      %p235 = scmp.ne.s32.totalorder %s226, %s227
      %p236 = scmp.eq.s32.totalorder %s29, 0
      %p237 = por %p235, %p236
      %p238 = scmp.ne.s32.totalorder %s226, %s227
      %p239 = scmp.eq.s32.totalorder %s30, 1
      %p240 = por %p238, %p239
      %p242 = scmp.ne.s32.totalorder %s227, %s241
      %p243 = scmp.eq.s32.totalorder %s30, 0
      %p244 = por %p242, %p243
      %s246 = sadd.s32 %s245, 1
      %p249 = scmp.eq.s32.totalorder %s24, 1
      %p250 = scmp.ne.s32.totalorder %s245, %s247
      %p251 = scmp.eq.s32.totalorder %s24, 0
      %p252 = por %p250, %p251
      %p253 = scmp.ne.s32.totalorder %s245, %s247
      %p254 = scmp.eq.s32.totalorder %s29, 1
      %p255 = por %p253, %p254
      %p256 = scmp.ne.s32.totalorder %s247, %s248
      %p257 = scmp.eq.s32.totalorder %s29, 0
      %p258 = por %p256, %p257
      %p259 = scmp.ne.s32.totalorder %s247, %s248
      %p260 = scmp.eq.s32.totalorder %s30, 1
      %p261 = por %p259, %p260
      %p263 = scmp.ne.s32.totalorder %s248, %s262
      %p264 = scmp.eq.s32.totalorder %s30, 0
      %p265 = por %p263, %p264
      %s267 = sadd.s32 %s266, 1
      %p270 = scmp.eq.s32.totalorder %s24, 1
      %p271 = scmp.ne.s32.totalorder %s266, %s268
      %p272 = scmp.eq.s32.totalorder %s24, 0
      %p273 = por %p271, %p272
      %p274 = scmp.ne.s32.totalorder %s266, %s268
      %p275 = scmp.eq.s32.totalorder %s29, 1
      %p276 = por %p274, %p275
      %p277 = scmp.ne.s32.totalorder %s268, %s269
      %p278 = scmp.eq.s32.totalorder %s29, 0
      %p279 = por %p277, %p278
      %p280 = scmp.ne.s32.totalorder %s268, %s269
      %p281 = scmp.eq.s32.totalorder %s30, 1
      %p282 = por %p280, %p281
      %p284 = scmp.ne.s32.totalorder %s269, %s283
      %p285 = scmp.eq.s32.totalorder %s30, 0
      %p286 = por %p284, %p285
      %s288 = sadd.s32 %s287, 1
      %p291 = scmp.eq.s32.totalorder %s24, 1
      %p292 = scmp.ne.s32.totalorder %s287, %s289
      %p293 = scmp.eq.s32.totalorder %s24, 0
      %p294 = por %p292, %p293
      %p295 = scmp.ne.s32.totalorder %s287, %s289
      %p296 = scmp.eq.s32.totalorder %s29, 1
      %p297 = por %p295, %p296
      %p298 = scmp.ne.s32.totalorder %s289, %s290
      %p299 = scmp.eq.s32.totalorder %s29, 0
      %p300 = por %p298, %p299
      %p301 = scmp.ne.s32.totalorder %s289, %s290
      %p302 = scmp.eq.s32.totalorder %s30, 1
      %p303 = por %p301, %p302
      %p305 = scmp.ne.s32.totalorder %s290, %s304
      %p306 = scmp.eq.s32.totalorder %s30, 0
      %p307 = por %p305, %p306
      %s309 = sadd.s32 %s308, 1
      %p312 = scmp.eq.s32.totalorder %s24, 1
      %p313 = scmp.ne.s32.totalorder %s308, %s310
      %p314 = scmp.eq.s32.totalorder %s24, 0
      %p315 = por %p313, %p314
      %p316 = scmp.ne.s32.totalorder %s308, %s310
      %p317 = scmp.eq.s32.totalorder %s29, 1
      %p318 = por %p316, %p317
      %p319 = scmp.ne.s32.totalorder %s310, %s311
      %p320 = scmp.eq.s32.totalorder %s29, 0
      %p321 = por %p319, %p320
      %p322 = scmp.ne.s32.totalorder %s310, %s311
      %p323 = scmp.eq.s32.totalorder %s30, 1
      %p324 = por %p322, %p323
      %p326 = scmp.ne.s32.totalorder %s311, %s325
      %p327 = scmp.eq.s32.totalorder %s30, 0
      %p328 = por %p326, %p327
      %s330 = sadd.s32 %s329, 1
      %p333 = scmp.eq.s32.totalorder %s24, 1
      %p334 = scmp.ne.s32.totalorder %s329, %s331
      %p335 = scmp.eq.s32.totalorder %s24, 0
      %p336 = por %p334, %p335
      %p337 = scmp.ne.s32.totalorder %s329, %s331
      %p338 = scmp.eq.s32.totalorder %s29, 1
      %p339 = por %p337, %p338
      %p340 = scmp.ne.s32.totalorder %s331, %s332
      %p341 = scmp.eq.s32.totalorder %s29, 0
      %p342 = por %p340, %p341
      %p343 = scmp.ne.s32.totalorder %s331, %s332
      %p344 = scmp.eq.s32.totalorder %s30, 1
      %p345 = por %p343, %p344
      %p347 = scmp.ne.s32.totalorder %s332, %s346
      %p348 = scmp.eq.s32.totalorder %s30, 0
      %p349 = por %p347, %p348
      %s351 = sadd.s32 %s350, 1
      %p354 = scmp.eq.s32.totalorder %s24, 1
      %p355 = scmp.ne.s32.totalorder %s350, %s352
      %p356 = scmp.eq.s32.totalorder %s24, 0
      %p357 = por %p355, %p356
      %p358 = scmp.ne.s32.totalorder %s350, %s352
      %p359 = scmp.eq.s32.totalorder %s29, 1
      %p360 = por %p358, %p359
      %p361 = scmp.ne.s32.totalorder %s352, %s353
      %p362 = scmp.eq.s32.totalorder %s29, 0
      %p363 = por %p361, %p362
      %p364 = scmp.ne.s32.totalorder %s352, %s353
      %p365 = scmp.eq.s32.totalorder %s30, 1
      %p366 = por %p364, %p365
      %p368 = scmp.ne.s32.totalorder %s353, %s367
      %p369 = scmp.eq.s32.totalorder %s30, 0
      %p370 = por %p368, %p369
      %s371 = ssub.s32 %s31, %s43
      %p372 = scmp.eq.s32.totalorder %s371, 0
      %s374 = sadd.s32 %s373, 1
      %s375 = scalar_select %p372, %s373, %s374
      %p378 = pneg %p372
      %p379 = scmp.eq.s32.totalorder %s24, 1
      %p380 = por %p378, %p379
      %p381 = scmp.ne.s32.totalorder %s373, %s376
      %p382 = scmp.eq.s32.totalorder %s24, 0
      %p383 = por %p381, %p382
      %p384 = scmp.ne.s32.totalorder %s373, %s376
      %p385 = scmp.eq.s32.totalorder %s29, 1
      %p386 = por %p384, %p385
      %p387 = scmp.ne.s32.totalorder %s376, %s377
      %p388 = scmp.eq.s32.totalorder %s29, 0
      %p389 = por %p387, %p388
      %p390 = scmp.ne.s32.totalorder %s376, %s377
      %p391 = scmp.eq.s32.totalorder %s30, 1
      %p392 = por %p390, %p391
      %p394 = scmp.ne.s32.totalorder %s377, %s393
      %p395 = scmp.eq.s32.totalorder %s30, 0
      %p396 = por %p394, %p395
      %p397 = scmp.le.s32.totalorder 1, %s24
      %p398 = scmp.lt.s32.totalorder %s24, 3
      %p399 = pnand %p397, %p398
      %p400 = pneg %p399
      // Predicated region
      $region9: #{skin_cancer_forward.1} parent=5 // pred_check
        _
      $region10: #{skin_cancer_forward.1} parent=5 // pred_check_branch
        %402 = sbr.rel (%p399) target = $region12
      $region11: #{skin_cancer_forward.1} parent=5 // pred_region
        %s403 = ssub.s32 %s24, 1
        // Predicated region
        $region13: #{skin_cancer_forward.1} parent=11 // pred_check
          %p404 = pneg %p111
        $region14: #{skin_cancer_forward.1} parent=11 // pred_check_branch
          %406 = sbr.rel (%p404) target = $region16
        $region15: #{skin_cancer_forward.1} parent=11 // pred_region
          _
        $region16: #{skin_cancer_forward.1} parent=11 // pred_fallthru
          _
        // Predicated region
        $region17: #{skin_cancer_forward.1} parent=11 // pred_check
          %p407 = pneg %p132
        $region18: #{skin_cancer_forward.1} parent=11 // pred_check_branch
          %409 = sbr.rel (%p407) target = $region20
        $region19: #{skin_cancer_forward.1} parent=11 // pred_region
          _
        $region20: #{skin_cancer_forward.1} parent=11 // pred_fallthru
          _
        // Predicated region
        $region21: #{skin_cancer_forward.1} parent=11 // pred_check
          %p410 = pneg %p153
        $region22: #{skin_cancer_forward.1} parent=11 // pred_check_branch
          %412 = sbr.rel (%p410) target = $region24
        $region23: #{skin_cancer_forward.1} parent=11 // pred_region
          _
        $region24: #{skin_cancer_forward.1} parent=11 // pred_fallthru
          _
        // Predicated region
        $region25: #{skin_cancer_forward.1} parent=11 // pred_check
          %p413 = pneg %p174
        $region26: #{skin_cancer_forward.1} parent=11 // pred_check_branch
          %415 = sbr.rel (%p413) target = $region28
        $region27: #{skin_cancer_forward.1} parent=11 // pred_region
          _
        $region28: #{skin_cancer_forward.1} parent=11 // pred_fallthru
          _
        // Predicated region
        $region29: #{skin_cancer_forward.1} parent=11 // pred_check
          %p416 = pneg %p195
        $region30: #{skin_cancer_forward.1} parent=11 // pred_check_branch
          %418 = sbr.rel (%p416) target = $region32
        $region31: #{skin_cancer_forward.1} parent=11 // pred_region
          _
        $region32: #{skin_cancer_forward.1} parent=11 // pred_fallthru
          _
        // Predicated region
        $region33: #{skin_cancer_forward.1} parent=11 // pred_check
          %p419 = pneg %p216
        $region34: #{skin_cancer_forward.1} parent=11 // pred_check_branch
          %421 = sbr.rel (%p419) target = $region36
        $region35: #{skin_cancer_forward.1} parent=11 // pred_region
          _
        $region36: #{skin_cancer_forward.1} parent=11 // pred_fallthru
          _
        // Predicated region
        $region37: #{skin_cancer_forward.1} parent=11 // pred_check
          %p422 = pneg %p237
        $region38: #{skin_cancer_forward.1} parent=11 // pred_check_branch
          %424 = sbr.rel (%p422) target = $region40
        $region39: #{skin_cancer_forward.1} parent=11 // pred_region
          _
        $region40: #{skin_cancer_forward.1} parent=11 // pred_fallthru
          _
        // Predicated region
        $region41: #{skin_cancer_forward.1} parent=11 // pred_check
          %p425 = pneg %p258
        $region42: #{skin_cancer_forward.1} parent=11 // pred_check_branch
          %427 = sbr.rel (%p425) target = $region44
        $region43: #{skin_cancer_forward.1} parent=11 // pred_region
          _
        $region44: #{skin_cancer_forward.1} parent=11 // pred_fallthru
          _
        // Predicated region
        $region45: #{skin_cancer_forward.1} parent=11 // pred_check
          %p428 = pneg %p279
        $region46: #{skin_cancer_forward.1} parent=11 // pred_check_branch
          %430 = sbr.rel (%p428) target = $region48
        $region47: #{skin_cancer_forward.1} parent=11 // pred_region
          _
        $region48: #{skin_cancer_forward.1} parent=11 // pred_fallthru
          _
        // Predicated region
        $region49: #{skin_cancer_forward.1} parent=11 // pred_check
          %p431 = pneg %p300
        $region50: #{skin_cancer_forward.1} parent=11 // pred_check_branch
          %433 = sbr.rel (%p431) target = $region52
        $region51: #{skin_cancer_forward.1} parent=11 // pred_region
          _
        $region52: #{skin_cancer_forward.1} parent=11 // pred_fallthru
          _
        // Predicated region
        $region53: #{skin_cancer_forward.1} parent=11 // pred_check
          %p434 = pneg %p321
        $region54: #{skin_cancer_forward.1} parent=11 // pred_check_branch
          %436 = sbr.rel (%p434) target = $region56
        $region55: #{skin_cancer_forward.1} parent=11 // pred_region
          _
        $region56: #{skin_cancer_forward.1} parent=11 // pred_fallthru
          _
        // Predicated region
        $region57: #{skin_cancer_forward.1} parent=11 // pred_check
          %p437 = pneg %p342
        $region58: #{skin_cancer_forward.1} parent=11 // pred_check_branch
          %439 = sbr.rel (%p437) target = $region60
        $region59: #{skin_cancer_forward.1} parent=11 // pred_region
          _
        $region60: #{skin_cancer_forward.1} parent=11 // pred_fallthru
          _
        // Predicated region
        $region61: #{skin_cancer_forward.1} parent=11 // pred_check
          %p440 = pneg %p363
        $region62: #{skin_cancer_forward.1} parent=11 // pred_check_branch
          %442 = sbr.rel (%p440) target = $region64
        $region63: #{skin_cancer_forward.1} parent=11 // pred_region
          _
        $region64: #{skin_cancer_forward.1} parent=11 // pred_fallthru
          _
      $region12: #{skin_cancer_forward.1} parent=5 // pred_fallthru
        _
      %p443 = scmp.lt.s32.totalorder %s24, 2
      // Predicated region
      $region65: #{skin_cancer_forward.1} parent=5 // pred_check
        %p444 = pneg %p443
      $region66: #{skin_cancer_forward.1} parent=5 // pred_check_branch
        %446 = sbr.rel (%p444) target = $region68
      $region67: #{skin_cancer_forward.1} parent=5 // pred_region
        // Predicated region
        $region69: #{skin_cancer_forward.1} parent=67 // pred_check
          %p447 = pneg %p58
        $region70: #{skin_cancer_forward.1} parent=67 // pred_check_branch
          %449 = sbr.rel (%p447) target = $region72
        $region71: #{skin_cancer_forward.1} parent=67 // pred_region
          %s450 = smul.u32 32, %s32
          %p451 = scmp.lt.s32.totalorder %s31, 1
          %s452 = scalar_select %p451, %s31, 1
          %p453 = scmp.lt.s32.totalorder %s450, 31
          %s454 = scalar_select %p453, %s450, 31
          %s455 = smul.addr %s452, 32
          %s456 = sadd.s32 %s454, %s455
          %s457 = smul.addr %s456, 4
          %s458 = scalar_lea.vmem %s0, %s457
          %s459 = smul.u32 32, %s32
        $region72: #{skin_cancer_forward.1} parent=67 // pred_fallthru
          _
        // Predicated region
        $region73: #{skin_cancer_forward.1} parent=67 // pred_check
          %p460 = pneg %p84
        $region74: #{skin_cancer_forward.1} parent=67 // pred_check_branch
          %462 = sbr.rel (%p460) target = $region76
        $region75: #{skin_cancer_forward.1} parent=67 // pred_region
          %p463 = scmp.lt.s32.totalorder %s31, 1
          %s464 = scalar_select %p463, %s31, 1
          %s465 = scalar_lea.vmem %s1, %s464
        $region76: #{skin_cancer_forward.1} parent=67 // pred_fallthru
          _
      $region68: #{skin_cancer_forward.1} parent=5 // pred_fallthru
        _
      %p466 = scmp.le.s32.totalorder 1, %s24
      %p467 = scmp.lt.s32.totalorder %s24, 3
      %p468 = pnand %p466, %p467
      %p469 = pneg %p468
      // Predicated region
      $region77: #{skin_cancer_forward.1} parent=5 // pred_check
        _
      $region78: #{skin_cancer_forward.1} parent=5 // pred_check_branch
        %471 = sbr.rel (%p468) target = $region80
      $region79: #{skin_cancer_forward.1} parent=5 // pred_region
        %s472 = ssub.s32 %s24, 1
        %s473 = smul.u32 32, %s34
        %p474 = scmp.lt.s32.totalorder %s33, 1
        %s475 = scalar_select %p474, %s33, 1
        %p476 = scmp.lt.s32.totalorder %s473, 31
        %s477 = scalar_select %p476, %s473, 31
        %s478 = smul.addr %s475, 32
        %s479 = sadd.s32 %s477, %s478
        %s480 = smul.addr %s479, 4
        %s481 = scalar_lea.vmem %s0, %s480
        %p482 = pneg %p64
        %p483 = pneg %p61
        %p484 = scmp.lt.s32.totalorder %s33, 1
        %s485 = scalar_select %p484, %s33, 1
        %s486 = scalar_lea.vmem %s1, %s485
        %p487 = pneg %p90
        %p488 = pneg %p87
        %p489 = pneg %p111
        %p490 = pneg %p108
        %p491 = pneg %p132
        %p492 = pneg %p129
        %p493 = pneg %p153
        %p494 = pneg %p150
        %p495 = pneg %p174
        %p496 = pneg %p171
        %p497 = pneg %p195
        %p498 = pneg %p192
        %p499 = pneg %p216
        %p500 = pneg %p213
        %p501 = pneg %p237
        %p502 = pneg %p234
        %p503 = pneg %p258
        %p504 = pneg %p255
        %p505 = pneg %p279
        %p506 = pneg %p276
        %p507 = pneg %p300
        %p508 = pneg %p297
        %p509 = pneg %p321
        %p510 = pneg %p318
        %p511 = pneg %p342
        %p512 = pneg %p339
        %p513 = pneg %p363
        %p514 = pneg %p360
        %p515 = pneg %p389
        %p516 = pneg %p386
        %s517 = sand.u32 %s376, 1
        %s518 = scalar_lea.sflag [#allocation4], %s517
        %s519 = sand.u32 %s376, 1
        %s520 = scalar_lea.vmem [#allocation3], %s519
        %s521 = smul.u32 32, %s34
        %p522 = scmp.lt.s32.totalorder %s33, 1
        %s523 = scalar_select %p522, %s33, 1
        %p524 = scmp.lt.s32.totalorder %s521, 31
        %s525 = scalar_select %p524, %s521, 31
        %s526 = smul.addr %s523, 32
        %s527 = sadd.s32 %s525, %s526
        %s528 = smul.addr %s527, 4
        %s529 = scalar_lea.vmem %s0, %s528
        %s530 = smul.u32 32, %s34
        %p531 = scmp.lt.s32.totalorder %s33, 1
        %s532 = scalar_select %p531, %s33, 1
        %s533 = scalar_lea.vmem %s1, %s532
        %p535 = scmp.eq.s32.totalorder %s34, 0
        // Predicated region
        $region81: #{skin_cancer_forward.1} parent=79 // pred_check
          %p536 = pneg %p535
        $region82: #{skin_cancer_forward.1} parent=79 // pred_check_branch
          %538 = sbr.rel (%p536) target = $region84
        $region83: #{skin_cancer_forward.1} parent=79 // pred_region
          %539 = vst [vmem:[#allocation2] sm:$0xff] 0.0
          %v540 = vlaneseq
          %vm541 = vcmp.ge.s32.totalorder %v540, 0
          %vm542 = vcmp.lt.s32.totalorder %v540, 256
          %vm543 = vmand %vm541, %vm542
          %544 = vst.msk [vmem:[#allocation2 + $0x8] sm:$0x3] %vm543, 0.0
        $region84: #{skin_cancer_forward.1} parent=79 // pred_fallthru
          _
        %v545 = vld [vmem:[%s529] sm:$0xf]
        %v546 = vld [vmem:[%s529 + $0x4] sm:$0xf]
        %v547 = vld [vmem:[%s529 + $0x8] sm:$0xf]
        %v548 = vld [vmem:[%s529 + $0xc] sm:$0xf]
        %v549 = vld [vmem:[%s529 + $0x10] sm:$0xf]
        %v550 = vld [vmem:[%s529 + $0x14] sm:$0xf]
        %v551 = vld [vmem:[%s529 + $0x18] sm:$0xf]
        %v552 = vld [vmem:[%s529 + $0x1c] sm:$0xf]
        %v553 = vld [vmem:[%s529 + $0x20] sm:$0xf]
        %v554 = vld [vmem:[%s529 + $0x24] sm:$0xf]
        %v555 = vld [vmem:[%s529 + $0x28] sm:$0xf]
        %v556 = vld [vmem:[%s529 + $0x2c] sm:$0xf]
        %v557 = vld [vmem:[%s529 + $0x30] sm:$0xf]
        %v558 = vld [vmem:[%s529 + $0x34] sm:$0xf]
        %v559 = vld [vmem:[%s529 + $0x38] sm:$0xf]
        %v560 = vld [vmem:[%s529 + $0x3c] sm:$0xf]
        %v561 = vld [vmem:[%s529 + $0x40] sm:$0xf]
        %v562 = vld [vmem:[%s529 + $0x44] sm:$0xf]
        %v563 = vld [vmem:[%s529 + $0x48] sm:$0xf]
        %v564 = vld [vmem:[%s529 + $0x4c] sm:$0xf]
        %v565 = vld [vmem:[%s529 + $0x50] sm:$0xf]
        %v566 = vld [vmem:[%s529 + $0x54] sm:$0xf]
        %v567 = vld [vmem:[%s529 + $0x58] sm:$0xf]
        %v568 = vld [vmem:[%s529 + $0x5c] sm:$0xf]
        %v569 = vld [vmem:[%s529 + $0x60] sm:$0xf]
        %v570 = vld [vmem:[%s529 + $0x64] sm:$0xf]
        %v571 = vld [vmem:[%s529 + $0x68] sm:$0xf]
        %v572 = vld [vmem:[%s529 + $0x6c] sm:$0xf]
        %v573 = vld [vmem:[%s529 + $0x70] sm:$0xf]
        %v574 = vld [vmem:[%s529 + $0x74] sm:$0xf]
        %v575 = vld [vmem:[%s529 + $0x78] sm:$0xf]
        %v576 = vld [vmem:[%s529 + $0x7c] sm:$0xf]
        %v577 = vld [vmem:[%s2] sm:$0xf]
        %v578 = vld [vmem:[%s2 + $0x4] sm:$0xf]
        %v579 = vld [vmem:[%s2 + $0x8] sm:$0xf]
        %v580 = vld [vmem:[%s2 + $0xc] sm:$0xf]
        %v581 = vld [vmem:[%s3] sm:$0x1]
        %v583 = vperm.slane %v581, 0
        %v617 = vunpack.c.l.b16 %v545
        %v618 = vunpack.c.l.b16 %v546
        %v619 = vunpack.c.l.b16 %v547
        %v620 = vunpack.c.l.b16 %v548
        %v621 = vunpack.c.l.b16 %v549
        %v622 = vunpack.c.l.b16 %v550
        %v623 = vunpack.c.l.b16 %v551
        %v624 = vunpack.c.l.b16 %v552
        %v625 = vunpack.c.l.b16 %v553
        %v626 = vunpack.c.l.b16 %v554
        %v627 = vunpack.c.l.b16 %v555
        %v628 = vunpack.c.l.b16 %v556
        %v629 = vunpack.c.l.b16 %v557
        %v630 = vunpack.c.l.b16 %v558
        %v631 = vunpack.c.l.b16 %v559
        %v632 = vunpack.c.l.b16 %v560
        %v633 = vunpack.c.l.b16 %v561
        %v634 = vunpack.c.l.b16 %v562
        %v635 = vunpack.c.l.b16 %v563
        %v636 = vunpack.c.l.b16 %v564
        %v637 = vunpack.c.l.b16 %v565
        %v638 = vunpack.c.l.b16 %v566
        %v639 = vunpack.c.l.b16 %v567
        %v640 = vunpack.c.l.b16 %v568
        %v641 = vunpack.c.l.b16 %v569
        %v642 = vunpack.c.l.b16 %v570
        %v643 = vunpack.c.l.b16 %v571
        %v644 = vunpack.c.l.b16 %v572
        %v645 = vunpack.c.l.b16 %v573
        %v646 = vunpack.c.l.b16 %v574
        %v647 = vunpack.c.l.b16 %v575
        %v648 = vunpack.c.l.b16 %v576
        %v649 = vpack.c.b16 %v618, %v617
        %v650 = vpack.c.b16 %v620, %v619
        %v651 = vpack.c.b16 %v622, %v621
        %v652 = vpack.c.b16 %v624, %v623
        %v653 = vpack.c.b16 %v626, %v625
        %v654 = vpack.c.b16 %v628, %v627
        %v655 = vpack.c.b16 %v630, %v629
        %v656 = vpack.c.b16 %v632, %v631
        %v657 = vpack.c.b16 %v634, %v633
        %v658 = vpack.c.b16 %v636, %v635
        %v659 = vpack.c.b16 %v638, %v637
        %v660 = vpack.c.b16 %v640, %v639
        %v661 = vpack.c.b16 %v642, %v641
        %v662 = vpack.c.b16 %v644, %v643
        %v663 = vpack.c.b16 %v646, %v645
        %v664 = vpack.c.b16 %v648, %v647
        %v669 = vunpack.c.l.b16 %v577
        %v670 = vunpack.c.l.b16 %v578
        %v671 = vunpack.c.l.b16 %v579
        %v672 = vunpack.c.l.b16 %v580
        %v673 = vpack.c.b16 %v670, %v669
        %v674 = vpack.c.b16 %v672, %v671
        %vm677 = vcmask 261120
        %v679 = vsel %vm677, %v649, 0
        %v682 = vsel %vm677, %v650, 0
        %v685 = vsel %vm677, %v651, 0
        %v688 = vsel %vm677, %v652, 0
        %v691 = vsel %vm677, %v653, 0
        %v694 = vsel %vm677, %v654, 0
        %v697 = vsel %vm677, %v655, 0
        %v700 = vsel %vm677, %v656, 0
        %v703 = vsel %vm677, %v657, 0
        %v706 = vsel %vm677, %v658, 0
        %v709 = vsel %vm677, %v659, 0
        %v712 = vsel %vm677, %v660, 0
        %v715 = vsel %vm677, %v661, 0
        %v718 = vsel %vm677, %v662, 0
        %v721 = vsel %vm677, %v663, 0
        %v724 = vsel %vm677, %v664, 0
        %726 = vmatpush.bf16.msra.mxu0 0
        %727 = vmatpush.bf16.msra.mxu0 0
        %728 = vmatpush.bf16.msra.mxu0 0
        %729 = vmatpush.bf16.msra.mxu0 0
        %730 = vmatpush.bf16.msra.mxu0 0
        %731 = vmatpush.bf16.msra.mxu0 0
        %732 = vmatpush.bf16.msra.mxu0 %v674
        %733 = vmatpush.bf16.msra.mxu0 %v673
        %734 = vmatmul.bf16.gmra.mxu0 %v679
        %v735 = vpop.f32.mrf.mxu0
        %v736 = vadd.f32 %v583, %v735
        %v737 = vpop.f32.mrf.mxu0
        %v738 = vadd.f32 %v583, %v737
        %739 = vmatmul.bf16.gmra.mxu0 %v682
        %v740 = vpop.f32.mrf.mxu0
        %v741 = vadd.f32 %v583, %v740
        %v742 = vpop.f32.mrf.mxu0
        %v743 = vadd.f32 %v583, %v742
        %744 = vmatmul.bf16.gmra.mxu0 %v685
        %v745 = vpop.f32.mrf.mxu0
        %v746 = vadd.f32 %v583, %v745
        %v747 = vpop.f32.mrf.mxu0
        %v748 = vadd.f32 %v583, %v747
        %749 = vmatmul.bf16.gmra.mxu0 %v688
        %v750 = vpop.f32.mrf.mxu0
        %v751 = vadd.f32 %v583, %v750
        %v752 = vpop.f32.mrf.mxu0
        %v753 = vadd.f32 %v583, %v752
        %754 = vmatmul.bf16.gmra.mxu0 %v691
        %v755 = vpop.f32.mrf.mxu0
        %v756 = vadd.f32 %v583, %v755
        %v757 = vpop.f32.mrf.mxu0
        %v758 = vadd.f32 %v583, %v757
        %759 = vmatmul.bf16.gmra.mxu0 %v694
        %v760 = vpop.f32.mrf.mxu0
        %v761 = vadd.f32 %v583, %v760
        %v762 = vpop.f32.mrf.mxu0
        %v763 = vadd.f32 %v583, %v762
        %764 = vmatmul.bf16.gmra.mxu0 %v697
        %v765 = vpop.f32.mrf.mxu0
        %v766 = vadd.f32 %v583, %v765
        %v767 = vpop.f32.mrf.mxu0
        %v768 = vadd.f32 %v583, %v767
        %769 = vmatmul.bf16.gmra.mxu0 %v700
        %v770 = vpop.f32.mrf.mxu0
        %v771 = vadd.f32 %v583, %v770
        %v772 = vpop.f32.mrf.mxu0
        %v773 = vadd.f32 %v583, %v772
        %774 = vmatmul.bf16.gmra.mxu0 %v703
        %v775 = vpop.f32.mrf.mxu0
        %v776 = vadd.f32 %v583, %v775
        %v777 = vpop.f32.mrf.mxu0
        %v778 = vadd.f32 %v583, %v777
        %779 = vmatmul.bf16.gmra.mxu0 %v706
        %v780 = vpop.f32.mrf.mxu0
        %v781 = vadd.f32 %v583, %v780
        %v782 = vpop.f32.mrf.mxu0
        %v783 = vadd.f32 %v583, %v782
        %784 = vmatmul.bf16.gmra.mxu0 %v709
        %v785 = vpop.f32.mrf.mxu0
        %v786 = vadd.f32 %v583, %v785
        %v787 = vpop.f32.mrf.mxu0
        %v788 = vadd.f32 %v583, %v787
        %789 = vmatmul.bf16.gmra.mxu0 %v712
        %v790 = vpop.f32.mrf.mxu0
        %v791 = vadd.f32 %v583, %v790
        %v792 = vpop.f32.mrf.mxu0
        %v793 = vadd.f32 %v583, %v792
        %794 = vmatmul.bf16.gmra.mxu0 %v715
        %v795 = vpop.f32.mrf.mxu0
        %v796 = vadd.f32 %v583, %v795
        %v797 = vpop.f32.mrf.mxu0
        %v798 = vadd.f32 %v583, %v797
        %799 = vmatmul.bf16.gmra.mxu0 %v718
        %v800 = vpop.f32.mrf.mxu0
        %v801 = vadd.f32 %v583, %v800
        %v802 = vpop.f32.mrf.mxu0
        %v803 = vadd.f32 %v583, %v802
        %804 = vmatmul.bf16.gmra.mxu0 %v721
        %v805 = vpop.f32.mrf.mxu0
        %v806 = vadd.f32 %v583, %v805
        %v807 = vpop.f32.mrf.mxu0
        %v808 = vadd.f32 %v583, %v807
        %809 = vmatmul.bf16.gmra.mxu0 %v724
        %v810 = vpop.f32.mrf.mxu0
        %v811 = vadd.f32 %v583, %v810
        %v812 = vpop.f32.mrf.mxu0
        %v813 = vadd.f32 %v583, %v812
        %814 = vdwg.mxu0
        %v815 = vsub.f32 0.0, %v736
        %v816 = vsub.f32 0.0, %v738
        %v817 = vsub.f32 0.0, %v741
        %v818 = vsub.f32 0.0, %v743
        %v819 = vsub.f32 0.0, %v746
        %v820 = vsub.f32 0.0, %v748
        %v821 = vsub.f32 0.0, %v751
        %v822 = vsub.f32 0.0, %v753
        %v823 = vsub.f32 0.0, %v756
        %v824 = vsub.f32 0.0, %v758
        %v825 = vsub.f32 0.0, %v761
        %v826 = vsub.f32 0.0, %v763
        %v827 = vsub.f32 0.0, %v766
        %v828 = vsub.f32 0.0, %v768
        %v829 = vsub.f32 0.0, %v771
        %v830 = vsub.f32 0.0, %v773
        %v831 = vsub.f32 0.0, %v776
        %v832 = vsub.f32 0.0, %v778
        %v833 = vsub.f32 0.0, %v781
        %v834 = vsub.f32 0.0, %v783
        %v835 = vsub.f32 0.0, %v786
        %v836 = vsub.f32 0.0, %v788
        %v837 = vsub.f32 0.0, %v791
        %v838 = vsub.f32 0.0, %v793
        %v839 = vsub.f32 0.0, %v796
        %v840 = vsub.f32 0.0, %v798
        %v841 = vsub.f32 0.0, %v801
        %v842 = vsub.f32 0.0, %v803
        %v843 = vsub.f32 0.0, %v806
        %v844 = vsub.f32 0.0, %v808
        %v845 = vsub.f32 0.0, %v811
        %v846 = vsub.f32 0.0, %v813
        %v847 = vmul.f32 %v815, 1.442695
        %v848 = vpow.pop %v847
        %v849 = vmul.f32 %v816, 1.442695
        %v850 = vpow.pop %v849
        %v851 = vmul.f32 %v817, 1.442695
        %v852 = vpow.pop %v851
        %v853 = vmul.f32 %v818, 1.442695
        %v854 = vpow.pop %v853
        %v855 = vmul.f32 %v819, 1.442695
        %v856 = vpow.pop %v855
        %v857 = vmul.f32 %v820, 1.442695
        %v858 = vpow.pop %v857
        %v859 = vmul.f32 %v821, 1.442695
        %v860 = vpow.pop %v859
        %v861 = vmul.f32 %v822, 1.442695
        %v862 = vpow.pop %v861
        %v863 = vmul.f32 %v823, 1.442695
        %v864 = vpow.pop %v863
        %v865 = vmul.f32 %v824, 1.442695
        %v866 = vpow.pop %v865
        %v867 = vmul.f32 %v825, 1.442695
        %v868 = vpow.pop %v867
        %v869 = vmul.f32 %v826, 1.442695
        %v870 = vpow.pop %v869
        %v871 = vmul.f32 %v827, 1.442695
        %v872 = vpow.pop %v871
        %v873 = vmul.f32 %v828, 1.442695
        %v874 = vpow.pop %v873
        %v875 = vmul.f32 %v829, 1.442695
        %v876 = vpow.pop %v875
        %v877 = vmul.f32 %v830, 1.442695
        %v878 = vpow.pop %v877
        %v879 = vmul.f32 %v831, 1.442695
        %v880 = vpow.pop %v879
        %v881 = vmul.f32 %v832, 1.442695
        %v882 = vpow.pop %v881
        %v883 = vmul.f32 %v833, 1.442695
        %v884 = vpow.pop %v883
        %v885 = vmul.f32 %v834, 1.442695
        %v886 = vpow.pop %v885
        %v887 = vmul.f32 %v835, 1.442695
        %v888 = vpow.pop %v887
        %v889 = vmul.f32 %v836, 1.442695
        %v890 = vpow.pop %v889
        %v891 = vmul.f32 %v837, 1.442695
        %v892 = vpow.pop %v891
        %v893 = vmul.f32 %v838, 1.442695
        %v894 = vpow.pop %v893
        %v895 = vmul.f32 %v839, 1.442695
        %v896 = vpow.pop %v895
        %v897 = vmul.f32 %v840, 1.442695
        %v898 = vpow.pop %v897
        %v899 = vmul.f32 %v841, 1.442695
        %v900 = vpow.pop %v899
        %v901 = vmul.f32 %v842, 1.442695
        %v902 = vpow.pop %v901
        %v903 = vmul.f32 %v843, 1.442695
        %v904 = vpow.pop %v903
        %v905 = vmul.f32 %v844, 1.442695
        %v906 = vpow.pop %v905
        %v907 = vmul.f32 %v845, 1.442695
        %v908 = vpow.pop %v907
        %v909 = vmul.f32 %v846, 1.442695
        %v910 = vpow.pop %v909
        %v911 = vadd.f32 %v848, 1.0
        %v912 = vadd.f32 %v850, 1.0
        %v913 = vadd.f32 %v852, 1.0
        %v914 = vadd.f32 %v854, 1.0
        %v915 = vadd.f32 %v856, 1.0
        %v916 = vadd.f32 %v858, 1.0
        %v917 = vadd.f32 %v860, 1.0
        %v918 = vadd.f32 %v862, 1.0
        %v919 = vadd.f32 %v864, 1.0
        %v920 = vadd.f32 %v866, 1.0
        %v921 = vadd.f32 %v868, 1.0
        %v922 = vadd.f32 %v870, 1.0
        %v923 = vadd.f32 %v872, 1.0
        %v924 = vadd.f32 %v874, 1.0
        %v925 = vadd.f32 %v876, 1.0
        %v926 = vadd.f32 %v878, 1.0
        %v927 = vadd.f32 %v880, 1.0
        %v928 = vadd.f32 %v882, 1.0
        %v929 = vadd.f32 %v884, 1.0
        %v930 = vadd.f32 %v886, 1.0
        %v931 = vadd.f32 %v888, 1.0
        %v932 = vadd.f32 %v890, 1.0
        %v933 = vadd.f32 %v892, 1.0
        %v934 = vadd.f32 %v894, 1.0
        %v935 = vadd.f32 %v896, 1.0
        %v936 = vadd.f32 %v898, 1.0
        %v937 = vadd.f32 %v900, 1.0
        %v938 = vadd.f32 %v902, 1.0
        %v939 = vadd.f32 %v904, 1.0
        %v940 = vadd.f32 %v906, 1.0
        %v941 = vadd.f32 %v908, 1.0
        %v942 = vadd.f32 %v910, 1.0
        %v943 = vrcp.pop %v911
        %v944 = vrcp.pop %v912
        %v945 = vrcp.pop %v913
        %v946 = vrcp.pop %v914
        %v947 = vrcp.pop %v915
        %v948 = vrcp.pop %v916
        %v949 = vrcp.pop %v917
        %v950 = vrcp.pop %v918
        %v951 = vrcp.pop %v919
        %v952 = vrcp.pop %v920
        %v953 = vrcp.pop %v921
        %v954 = vrcp.pop %v922
        %v955 = vrcp.pop %v923
        %v956 = vrcp.pop %v924
        %v957 = vrcp.pop %v925
        %v958 = vrcp.pop %v926
        %v959 = vrcp.pop %v927
        %v960 = vrcp.pop %v928
        %v961 = vrcp.pop %v929
        %v962 = vrcp.pop %v930
        %v963 = vrcp.pop %v931
        %v964 = vrcp.pop %v932
        %v965 = vrcp.pop %v933
        %v966 = vrcp.pop %v934
        %v967 = vrcp.pop %v935
        %v968 = vrcp.pop %v936
        %v969 = vrcp.pop %v937
        %v970 = vrcp.pop %v938
        %v971 = vrcp.pop %v939
        %v972 = vrcp.pop %v940
        %v973 = vrcp.pop %v941
        %v974 = vrcp.pop %v942
        %v975 = vmul.f32 %v736, %v943
        %v976 = vmul.f32 %v738, %v944
        %v977 = vmul.f32 %v741, %v945
        %v978 = vmul.f32 %v743, %v946
        %v979 = vmul.f32 %v746, %v947
        %v980 = vmul.f32 %v748, %v948
        %v981 = vmul.f32 %v751, %v949
        %v982 = vmul.f32 %v753, %v950
        %v983 = vmul.f32 %v756, %v951
        %v984 = vmul.f32 %v758, %v952
        %v985 = vmul.f32 %v761, %v953
        %v986 = vmul.f32 %v763, %v954
        %v987 = vmul.f32 %v766, %v955
        %v988 = vmul.f32 %v768, %v956
        %v989 = vmul.f32 %v771, %v957
        %v990 = vmul.f32 %v773, %v958
        %v991 = vmul.f32 %v776, %v959
        %v992 = vmul.f32 %v778, %v960
        %v993 = vmul.f32 %v781, %v961
        %v994 = vmul.f32 %v783, %v962
        %v995 = vmul.f32 %v786, %v963
        %v996 = vmul.f32 %v788, %v964
        %v997 = vmul.f32 %v791, %v965
        %v998 = vmul.f32 %v793, %v966
        %v999 = vmul.f32 %v796, %v967
        %v1000 = vmul.f32 %v798, %v968
        %v1001 = vmul.f32 %v801, %v969
        %v1002 = vmul.f32 %v803, %v970
        %v1003 = vmul.f32 %v806, %v971
        %v1004 = vmul.f32 %v808, %v972
        %v1005 = vmul.f32 %v811, %v973
        %v1006 = vmul.f32 %v813, %v974
        %v1007 = vpack.c.bf16 %v976, %v975
        %v1008 = vpack.c.bf16 %v978, %v977
        %v1009 = vpack.c.bf16 %v980, %v979
        %v1010 = vpack.c.bf16 %v982, %v981
        %v1011 = vpack.c.bf16 %v984, %v983
        %v1012 = vpack.c.bf16 %v986, %v985
        %v1013 = vpack.c.bf16 %v988, %v987
        %v1014 = vpack.c.bf16 %v990, %v989
        %v1015 = vpack.c.bf16 %v992, %v991
        %v1016 = vpack.c.bf16 %v994, %v993
        %v1017 = vpack.c.bf16 %v996, %v995
        %v1018 = vpack.c.bf16 %v998, %v997
        %v1019 = vpack.c.bf16 %v1000, %v999
        %v1020 = vpack.c.bf16 %v1002, %v1001
        %v1021 = vpack.c.bf16 %v1004, %v1003
        %v1022 = vpack.c.bf16 %v1006, %v1005
        %v1023 = vld [vmem:[%s4] sm:$0xff]
        %v1024 = vld [vmem:[%s4 + $0x8] sm:$0xff]
        %v1025 = vld [vmem:[%s4 + $0x10] sm:$0xff]
        %v1026 = vld [vmem:[%s4 + $0x18] sm:$0xff]
        %v1027 = vld [vmem:[%s4 + $0x20] sm:$0xff]
        %v1028 = vld [vmem:[%s4 + $0x28] sm:$0xff]
        %v1029 = vld [vmem:[%s4 + $0x30] sm:$0xff]
        %v1030 = vld [vmem:[%s4 + $0x38] sm:$0xff]
        %v1031 = vld [vmem:[%s4 + $0x40] sm:$0xff]
        %v1032 = vld [vmem:[%s4 + $0x48] sm:$0xff]
        %v1033 = vld [vmem:[%s4 + $0x50] sm:$0xff]
        %v1034 = vld [vmem:[%s4 + $0x58] sm:$0xff]
        %v1035 = vld [vmem:[%s4 + $0x60] sm:$0xff]
        %v1036 = vld [vmem:[%s4 + $0x68] sm:$0xff]
        %v1037 = vld [vmem:[%s4 + $0x70] sm:$0xff]
        %v1038 = vld [vmem:[%s4 + $0x78] sm:$0xff]
        %v1039 = vld [vmem:[%s4 + $0x80] sm:$0xff]
        %v1040 = vld [vmem:[%s4 + $0x88] sm:$0xff]
        %v1041 = vld [vmem:[%s4 + $0x90] sm:$0xff]
        %v1042 = vld [vmem:[%s4 + $0x98] sm:$0xff]
        %v1043 = vld [vmem:[%s5] sm:$0xff]
        %v1044 = vld [vmem:[%s5 + $0x8] sm:$0x3]
        %v1047 = vperm.slane %v1043, 0
        %v1048 = vperm.slane %v1043, 1
        %v1049 = vperm.slane %v1043, 2
        %v1050 = vperm.slane %v1043, 3
        %v1051 = vperm.slane %v1043, 4
        %v1052 = vperm.slane %v1043, 5
        %v1053 = vperm.slane %v1043, 6
        %v1054 = vperm.slane %v1043, 7
        %v1055 = vperm.slane %v1044, 0
        %v1056 = vperm.slane %v1044, 1
        %v1087 = vunpack.c.l.b16 %v1023
        %v1088 = vunpack.c.h.b16 %v1023
        %v1089 = vunpack.c.l.b16 %v1024
        %v1090 = vunpack.c.h.b16 %v1024
        %v1091 = vunpack.c.l.b16 %v1025
        %v1092 = vunpack.c.h.b16 %v1025
        %v1093 = vunpack.c.l.b16 %v1026
        %v1094 = vunpack.c.h.b16 %v1026
        %v1095 = vunpack.c.l.b16 %v1027
        %v1096 = vunpack.c.h.b16 %v1027
        %v1097 = vunpack.c.l.b16 %v1028
        %v1098 = vunpack.c.h.b16 %v1028
        %v1099 = vunpack.c.l.b16 %v1029
        %v1100 = vunpack.c.h.b16 %v1029
        %v1101 = vunpack.c.l.b16 %v1030
        %v1102 = vunpack.c.h.b16 %v1030
        %v1103 = vunpack.c.l.b16 %v1031
        %v1104 = vunpack.c.h.b16 %v1031
        %v1105 = vunpack.c.l.b16 %v1032
        %v1106 = vunpack.c.h.b16 %v1032
        %v1107 = vunpack.c.l.b16 %v1033
        %v1108 = vunpack.c.h.b16 %v1033
        %v1109 = vunpack.c.l.b16 %v1034
        %v1110 = vunpack.c.h.b16 %v1034
        %v1111 = vunpack.c.l.b16 %v1035
        %v1112 = vunpack.c.h.b16 %v1035
        %v1113 = vunpack.c.l.b16 %v1036
        %v1114 = vunpack.c.h.b16 %v1036
        %v1115 = vunpack.c.l.b16 %v1037
        %v1116 = vunpack.c.h.b16 %v1037
        %v1117 = vunpack.c.l.b16 %v1038
        %v1118 = vunpack.c.h.b16 %v1038
        %v1119 = vunpack.c.l.b16 %v1039
        %v1120 = vunpack.c.h.b16 %v1039
        %v1121 = vunpack.c.l.b16 %v1040
        %v1122 = vunpack.c.h.b16 %v1040
        %v1123 = vunpack.c.l.b16 %v1041
        %v1124 = vunpack.c.h.b16 %v1041
        %v1125 = vunpack.c.l.b16 %v1042
        %v1126 = vunpack.c.h.b16 %v1042
        %v1127 = vpack.c.b16 %v1097, %v1087
        %v1128 = vpack.c.b16 %v1098, %v1088
        %v1129 = vpack.c.b16 %v1099, %v1089
        %v1130 = vpack.c.b16 %v1100, %v1090
        %v1131 = vpack.c.b16 %v1101, %v1091
        %v1132 = vpack.c.b16 %v1102, %v1092
        %v1133 = vpack.c.b16 %v1103, %v1093
        %v1134 = vpack.c.b16 %v1104, %v1094
        %v1135 = vpack.c.b16 %v1105, %v1095
        %v1136 = vpack.c.b16 %v1106, %v1096
        %v1137 = vpack.c.b16 %v1117, %v1107
        %v1138 = vpack.c.b16 %v1118, %v1108
        %v1139 = vpack.c.b16 %v1119, %v1109
        %v1140 = vpack.c.b16 %v1120, %v1110
        %v1141 = vpack.c.b16 %v1121, %v1111
        %v1142 = vpack.c.b16 %v1122, %v1112
        %v1143 = vpack.c.b16 %v1123, %v1113
        %v1144 = vpack.c.b16 %v1124, %v1114
        %v1145 = vpack.c.b16 %v1125, %v1115
        %v1146 = vpack.c.b16 %v1126, %v1116
        %v1168 = vsel %vm677, %v1007, 0
        %v1171 = vsel %vm677, %v1008, 0
        %v1174 = vsel %vm677, %v1009, 0
        %v1177 = vsel %vm677, %v1010, 0
        %v1180 = vsel %vm677, %v1011, 0
        %v1183 = vsel %vm677, %v1012, 0
        %v1186 = vsel %vm677, %v1013, 0
        %v1189 = vsel %vm677, %v1014, 0
        %v1192 = vsel %vm677, %v1015, 0
        %v1195 = vsel %vm677, %v1016, 0
        %v1198 = vsel %vm677, %v1017, 0
        %v1201 = vsel %vm677, %v1018, 0
        %v1204 = vsel %vm677, %v1019, 0
        %v1207 = vsel %vm677, %v1020, 0
        %v1210 = vsel %vm677, %v1021, 0
        %v1213 = vsel %vm677, %v1022, 0
        %1215 = vmatpush.bf16.msra.mxu0 0
        %1216 = vmatpush.bf16.msra.mxu0 0
        %1217 = vmatpush.bf16.msra.mxu0 0
        %1218 = vmatpush.bf16.msra.mxu0 0
        %1219 = vmatpush.bf16.msra.mxu0 0
        %1220 = vmatpush.bf16.msra.mxu0 0
        %1221 = vmatpush.bf16.msra.mxu0 %v1137
        %1222 = vmatpush.bf16.msra.mxu0 %v1127
        %1223 = vmatmul.bf16.gmra.mxu0 %v1168
        %v1224 = vpop.f32.mrf.mxu0
        %v1225 = vadd.f32 %v1047, %v1224
        %v1226 = vpop.f32.mrf.mxu0
        %v1227 = vadd.f32 %v1047, %v1226
        %1228 = vmatmul.bf16.gmra.mxu0 %v1171
        %v1229 = vpop.f32.mrf.mxu0
        %v1230 = vadd.f32 %v1047, %v1229
        %v1231 = vpop.f32.mrf.mxu0
        %v1232 = vadd.f32 %v1047, %v1231
        %1233 = vmatmul.bf16.gmra.mxu0 %v1174
        %v1234 = vpop.f32.mrf.mxu0
        %v1235 = vadd.f32 %v1047, %v1234
        %v1236 = vpop.f32.mrf.mxu0
        %v1237 = vadd.f32 %v1047, %v1236
        %1238 = vmatmul.bf16.gmra.mxu0 %v1177
        %v1239 = vpop.f32.mrf.mxu0
        %v1240 = vadd.f32 %v1047, %v1239
        %v1241 = vpop.f32.mrf.mxu0
        %v1242 = vadd.f32 %v1047, %v1241
        %1243 = vmatmul.bf16.gmra.mxu0 %v1180
        %v1244 = vpop.f32.mrf.mxu0
        %v1245 = vadd.f32 %v1047, %v1244
        %v1246 = vpop.f32.mrf.mxu0
        %v1247 = vadd.f32 %v1047, %v1246
        %1248 = vmatmul.bf16.gmra.mxu0 %v1183
        %v1249 = vpop.f32.mrf.mxu0
        %v1250 = vadd.f32 %v1047, %v1249
        %v1251 = vpop.f32.mrf.mxu0
        %v1252 = vadd.f32 %v1047, %v1251
        %1253 = vmatmul.bf16.gmra.mxu0 %v1186
        %v1254 = vpop.f32.mrf.mxu0
        %v1255 = vadd.f32 %v1047, %v1254
        %v1256 = vpop.f32.mrf.mxu0
        %v1257 = vadd.f32 %v1047, %v1256
        %1258 = vmatmul.bf16.gmra.mxu0 %v1189
        %v1259 = vpop.f32.mrf.mxu0
        %v1260 = vadd.f32 %v1047, %v1259
        %v1261 = vpop.f32.mrf.mxu0
        %v1262 = vadd.f32 %v1047, %v1261
        %1263 = vmatmul.bf16.gmra.mxu0 %v1192
        %v1264 = vpop.f32.mrf.mxu0
        %v1265 = vadd.f32 %v1047, %v1264
        %v1266 = vpop.f32.mrf.mxu0
        %v1267 = vadd.f32 %v1047, %v1266
        %1268 = vmatmul.bf16.gmra.mxu0 %v1195
        %v1269 = vpop.f32.mrf.mxu0
        %v1270 = vadd.f32 %v1047, %v1269
        %v1271 = vpop.f32.mrf.mxu0
        %v1272 = vadd.f32 %v1047, %v1271
        %1273 = vmatmul.bf16.gmra.mxu0 %v1198
        %v1274 = vpop.f32.mrf.mxu0
        %v1275 = vadd.f32 %v1047, %v1274
        %v1276 = vpop.f32.mrf.mxu0
        %v1277 = vadd.f32 %v1047, %v1276
        %1278 = vmatmul.bf16.gmra.mxu0 %v1201
        %v1279 = vpop.f32.mrf.mxu0
        %v1280 = vadd.f32 %v1047, %v1279
        %v1281 = vpop.f32.mrf.mxu0
        %v1282 = vadd.f32 %v1047, %v1281
        %1283 = vmatmul.bf16.gmra.mxu0 %v1204
        %v1284 = vpop.f32.mrf.mxu0
        %v1285 = vadd.f32 %v1047, %v1284
        %v1286 = vpop.f32.mrf.mxu0
        %v1287 = vadd.f32 %v1047, %v1286
        %1288 = vmatmul.bf16.gmra.mxu0 %v1207
        %v1289 = vpop.f32.mrf.mxu0
        %v1290 = vadd.f32 %v1047, %v1289
        %v1291 = vpop.f32.mrf.mxu0
        %v1292 = vadd.f32 %v1047, %v1291
        %1293 = vmatmul.bf16.gmra.mxu0 %v1210
        %v1294 = vpop.f32.mrf.mxu0
        %v1295 = vadd.f32 %v1047, %v1294
        %v1296 = vpop.f32.mrf.mxu0
        %v1297 = vadd.f32 %v1047, %v1296
        %1298 = vmatmul.bf16.gmra.mxu0 %v1213
        %v1299 = vpop.f32.mrf.mxu0
        %v1300 = vadd.f32 %v1047, %v1299
        %v1301 = vpop.f32.mrf.mxu0
        %v1302 = vadd.f32 %v1047, %v1301
        %1303 = vdwg.mxu0
        %1304 = vmatpush.bf16.msra.mxu0 0
        %1305 = vmatpush.bf16.msra.mxu0 0
        %1306 = vmatpush.bf16.msra.mxu0 0
        %1307 = vmatpush.bf16.msra.mxu0 0
        %1308 = vmatpush.bf16.msra.mxu0 0
        %1309 = vmatpush.bf16.msra.mxu0 0
        %1310 = vmatpush.bf16.msra.mxu0 %v1138
        %1311 = vmatpush.bf16.msra.mxu0 %v1128
        %1312 = vmatmul.bf16.gmra.mxu0 %v1168
        %v1313 = vpop.f32.mrf.mxu0
        %v1314 = vadd.f32 %v1048, %v1313
        %v1315 = vpop.f32.mrf.mxu0
        %v1316 = vadd.f32 %v1048, %v1315
        %1317 = vmatmul.bf16.gmra.mxu0 %v1171
        %v1318 = vpop.f32.mrf.mxu0
        %v1319 = vadd.f32 %v1048, %v1318
        %v1320 = vpop.f32.mrf.mxu0
        %v1321 = vadd.f32 %v1048, %v1320
        %1322 = vmatmul.bf16.gmra.mxu0 %v1174
        %v1323 = vpop.f32.mrf.mxu0
        %v1324 = vadd.f32 %v1048, %v1323
        %v1325 = vpop.f32.mrf.mxu0
        %v1326 = vadd.f32 %v1048, %v1325
        %1327 = vmatmul.bf16.gmra.mxu0 %v1177
        %v1328 = vpop.f32.mrf.mxu0
        %v1329 = vadd.f32 %v1048, %v1328
        %v1330 = vpop.f32.mrf.mxu0
        %v1331 = vadd.f32 %v1048, %v1330
        %1332 = vmatmul.bf16.gmra.mxu0 %v1180
        %v1333 = vpop.f32.mrf.mxu0
        %v1334 = vadd.f32 %v1048, %v1333
        %v1335 = vpop.f32.mrf.mxu0
        %v1336 = vadd.f32 %v1048, %v1335
        %1337 = vmatmul.bf16.gmra.mxu0 %v1183
        %v1338 = vpop.f32.mrf.mxu0
        %v1339 = vadd.f32 %v1048, %v1338
        %v1340 = vpop.f32.mrf.mxu0
        %v1341 = vadd.f32 %v1048, %v1340
        %1342 = vmatmul.bf16.gmra.mxu0 %v1186
        %v1343 = vpop.f32.mrf.mxu0
        %v1344 = vadd.f32 %v1048, %v1343
        %v1345 = vpop.f32.mrf.mxu0
        %v1346 = vadd.f32 %v1048, %v1345
        %1347 = vmatmul.bf16.gmra.mxu0 %v1189
        %v1348 = vpop.f32.mrf.mxu0
        %v1349 = vadd.f32 %v1048, %v1348
        %v1350 = vpop.f32.mrf.mxu0
        %v1351 = vadd.f32 %v1048, %v1350
        %1352 = vmatmul.bf16.gmra.mxu0 %v1192
        %v1353 = vpop.f32.mrf.mxu0
        %v1354 = vadd.f32 %v1048, %v1353
        %v1355 = vpop.f32.mrf.mxu0
        %v1356 = vadd.f32 %v1048, %v1355
        %1357 = vmatmul.bf16.gmra.mxu0 %v1195
        %v1358 = vpop.f32.mrf.mxu0
        %v1359 = vadd.f32 %v1048, %v1358
        %v1360 = vpop.f32.mrf.mxu0
        %v1361 = vadd.f32 %v1048, %v1360
        %1362 = vmatmul.bf16.gmra.mxu0 %v1198
        %v1363 = vpop.f32.mrf.mxu0
        %v1364 = vadd.f32 %v1048, %v1363
        %v1365 = vpop.f32.mrf.mxu0
        %v1366 = vadd.f32 %v1048, %v1365
        %1367 = vmatmul.bf16.gmra.mxu0 %v1201
        %v1368 = vpop.f32.mrf.mxu0
        %v1369 = vadd.f32 %v1048, %v1368
        %v1370 = vpop.f32.mrf.mxu0
        %v1371 = vadd.f32 %v1048, %v1370
        %1372 = vmatmul.bf16.gmra.mxu0 %v1204
        %v1373 = vpop.f32.mrf.mxu0
        %v1374 = vadd.f32 %v1048, %v1373
        %v1375 = vpop.f32.mrf.mxu0
        %v1376 = vadd.f32 %v1048, %v1375
        %1377 = vmatmul.bf16.gmra.mxu0 %v1207
        %v1378 = vpop.f32.mrf.mxu0
        %v1379 = vadd.f32 %v1048, %v1378
        %v1380 = vpop.f32.mrf.mxu0
        %v1381 = vadd.f32 %v1048, %v1380
        %1382 = vmatmul.bf16.gmra.mxu0 %v1210
        %v1383 = vpop.f32.mrf.mxu0
        %v1384 = vadd.f32 %v1048, %v1383
        %v1385 = vpop.f32.mrf.mxu0
        %v1386 = vadd.f32 %v1048, %v1385
        %1387 = vmatmul.bf16.gmra.mxu0 %v1213
        %v1388 = vpop.f32.mrf.mxu0
        %v1389 = vadd.f32 %v1048, %v1388
        %v1390 = vpop.f32.mrf.mxu0
        %v1391 = vadd.f32 %v1048, %v1390
        %1392 = vdwg.mxu0
        %1393 = vmatpush.bf16.msra.mxu0 0
        %1394 = vmatpush.bf16.msra.mxu0 0
        %1395 = vmatpush.bf16.msra.mxu0 0
        %1396 = vmatpush.bf16.msra.mxu0 0
        %1397 = vmatpush.bf16.msra.mxu0 0
        %1398 = vmatpush.bf16.msra.mxu0 0
        %1399 = vmatpush.bf16.msra.mxu0 %v1139
        %1400 = vmatpush.bf16.msra.mxu0 %v1129
        %1401 = vmatmul.bf16.gmra.mxu0 %v1168
        %v1402 = vpop.f32.mrf.mxu0
        %v1403 = vadd.f32 %v1049, %v1402
        %v1404 = vpop.f32.mrf.mxu0
        %v1405 = vadd.f32 %v1049, %v1404
        %1406 = vmatmul.bf16.gmra.mxu0 %v1171
        %v1407 = vpop.f32.mrf.mxu0
        %v1408 = vadd.f32 %v1049, %v1407
        %v1409 = vpop.f32.mrf.mxu0
        %v1410 = vadd.f32 %v1049, %v1409
        %1411 = vmatmul.bf16.gmra.mxu0 %v1174
        %v1412 = vpop.f32.mrf.mxu0
        %v1413 = vadd.f32 %v1049, %v1412
        %v1414 = vpop.f32.mrf.mxu0
        %v1415 = vadd.f32 %v1049, %v1414
        %1416 = vmatmul.bf16.gmra.mxu0 %v1177
        %v1417 = vpop.f32.mrf.mxu0
        %v1418 = vadd.f32 %v1049, %v1417
        %v1419 = vpop.f32.mrf.mxu0
        %v1420 = vadd.f32 %v1049, %v1419
        %1421 = vmatmul.bf16.gmra.mxu0 %v1180
        %v1422 = vpop.f32.mrf.mxu0
        %v1423 = vadd.f32 %v1049, %v1422
        %v1424 = vpop.f32.mrf.mxu0
        %v1425 = vadd.f32 %v1049, %v1424
        %1426 = vmatmul.bf16.gmra.mxu0 %v1183
        %v1427 = vpop.f32.mrf.mxu0
        %v1428 = vadd.f32 %v1049, %v1427
        %v1429 = vpop.f32.mrf.mxu0
        %v1430 = vadd.f32 %v1049, %v1429
        %1431 = vmatmul.bf16.gmra.mxu0 %v1186
        %v1432 = vpop.f32.mrf.mxu0
        %v1433 = vadd.f32 %v1049, %v1432
        %v1434 = vpop.f32.mrf.mxu0
        %v1435 = vadd.f32 %v1049, %v1434
        %1436 = vmatmul.bf16.gmra.mxu0 %v1189
        %v1437 = vpop.f32.mrf.mxu0
        %v1438 = vadd.f32 %v1049, %v1437
        %v1439 = vpop.f32.mrf.mxu0
        %v1440 = vadd.f32 %v1049, %v1439
        %1441 = vmatmul.bf16.gmra.mxu0 %v1192
        %v1442 = vpop.f32.mrf.mxu0
        %v1443 = vadd.f32 %v1049, %v1442
        %v1444 = vpop.f32.mrf.mxu0
        %v1445 = vadd.f32 %v1049, %v1444
        %1446 = vmatmul.bf16.gmra.mxu0 %v1195
        %v1447 = vpop.f32.mrf.mxu0
        %v1448 = vadd.f32 %v1049, %v1447
        %v1449 = vpop.f32.mrf.mxu0
        %v1450 = vadd.f32 %v1049, %v1449
        %1451 = vmatmul.bf16.gmra.mxu0 %v1198
        %v1452 = vpop.f32.mrf.mxu0
        %v1453 = vadd.f32 %v1049, %v1452
        %v1454 = vpop.f32.mrf.mxu0
        %v1455 = vadd.f32 %v1049, %v1454
        %1456 = vmatmul.bf16.gmra.mxu0 %v1201
        %v1457 = vpop.f32.mrf.mxu0
        %v1458 = vadd.f32 %v1049, %v1457
        %v1459 = vpop.f32.mrf.mxu0
        %v1460 = vadd.f32 %v1049, %v1459
        %1461 = vmatmul.bf16.gmra.mxu0 %v1204
        %v1462 = vpop.f32.mrf.mxu0
        %v1463 = vadd.f32 %v1049, %v1462
        %v1464 = vpop.f32.mrf.mxu0
        %v1465 = vadd.f32 %v1049, %v1464
        %1466 = vmatmul.bf16.gmra.mxu0 %v1207
        %v1467 = vpop.f32.mrf.mxu0
        %v1468 = vadd.f32 %v1049, %v1467
        %v1469 = vpop.f32.mrf.mxu0
        %v1470 = vadd.f32 %v1049, %v1469
        %1471 = vmatmul.bf16.gmra.mxu0 %v1210
        %v1472 = vpop.f32.mrf.mxu0
        %v1473 = vadd.f32 %v1049, %v1472
        %v1474 = vpop.f32.mrf.mxu0
        %v1475 = vadd.f32 %v1049, %v1474
        %1476 = vmatmul.bf16.gmra.mxu0 %v1213
        %v1477 = vpop.f32.mrf.mxu0
        %v1478 = vadd.f32 %v1049, %v1477
        %v1479 = vpop.f32.mrf.mxu0
        %v1480 = vadd.f32 %v1049, %v1479
        %1481 = vdwg.mxu0
        %1482 = vmatpush.bf16.msra.mxu0 0
        %1483 = vmatpush.bf16.msra.mxu0 0
        %1484 = vmatpush.bf16.msra.mxu0 0
        %1485 = vmatpush.bf16.msra.mxu0 0
        %1486 = vmatpush.bf16.msra.mxu0 0
        %1487 = vmatpush.bf16.msra.mxu0 0
        %1488 = vmatpush.bf16.msra.mxu0 %v1140
        %1489 = vmatpush.bf16.msra.mxu0 %v1130
        %1490 = vmatmul.bf16.gmra.mxu0 %v1168
        %v1491 = vpop.f32.mrf.mxu0
        %v1492 = vadd.f32 %v1050, %v1491
        %v1493 = vpop.f32.mrf.mxu0
        %v1494 = vadd.f32 %v1050, %v1493
        %1495 = vmatmul.bf16.gmra.mxu0 %v1171
        %v1496 = vpop.f32.mrf.mxu0
        %v1497 = vadd.f32 %v1050, %v1496
        %v1498 = vpop.f32.mrf.mxu0
        %v1499 = vadd.f32 %v1050, %v1498
        %1500 = vmatmul.bf16.gmra.mxu0 %v1174
        %v1501 = vpop.f32.mrf.mxu0
        %v1502 = vadd.f32 %v1050, %v1501
        %v1503 = vpop.f32.mrf.mxu0
        %v1504 = vadd.f32 %v1050, %v1503
        %1505 = vmatmul.bf16.gmra.mxu0 %v1177
        %v1506 = vpop.f32.mrf.mxu0
        %v1507 = vadd.f32 %v1050, %v1506
        %v1508 = vpop.f32.mrf.mxu0
        %v1509 = vadd.f32 %v1050, %v1508
        %1510 = vmatmul.bf16.gmra.mxu0 %v1180
        %v1511 = vpop.f32.mrf.mxu0
        %v1512 = vadd.f32 %v1050, %v1511
        %v1513 = vpop.f32.mrf.mxu0
        %v1514 = vadd.f32 %v1050, %v1513
        %1515 = vmatmul.bf16.gmra.mxu0 %v1183
        %v1516 = vpop.f32.mrf.mxu0
        %v1517 = vadd.f32 %v1050, %v1516
        %v1518 = vpop.f32.mrf.mxu0
        %v1519 = vadd.f32 %v1050, %v1518
        %1520 = vmatmul.bf16.gmra.mxu0 %v1186
        %v1521 = vpop.f32.mrf.mxu0
        %v1522 = vadd.f32 %v1050, %v1521
        %v1523 = vpop.f32.mrf.mxu0
        %v1524 = vadd.f32 %v1050, %v1523
        %1525 = vmatmul.bf16.gmra.mxu0 %v1189
        %v1526 = vpop.f32.mrf.mxu0
        %v1527 = vadd.f32 %v1050, %v1526
        %v1528 = vpop.f32.mrf.mxu0
        %v1529 = vadd.f32 %v1050, %v1528
        %1530 = vmatmul.bf16.gmra.mxu0 %v1192
        %v1531 = vpop.f32.mrf.mxu0
        %v1532 = vadd.f32 %v1050, %v1531
        %v1533 = vpop.f32.mrf.mxu0
        %v1534 = vadd.f32 %v1050, %v1533
        %1535 = vmatmul.bf16.gmra.mxu0 %v1195
        %v1536 = vpop.f32.mrf.mxu0
        %v1537 = vadd.f32 %v1050, %v1536
        %v1538 = vpop.f32.mrf.mxu0
        %v1539 = vadd.f32 %v1050, %v1538
        %1540 = vmatmul.bf16.gmra.mxu0 %v1198
        %v1541 = vpop.f32.mrf.mxu0
        %v1542 = vadd.f32 %v1050, %v1541
        %v1543 = vpop.f32.mrf.mxu0
        %v1544 = vadd.f32 %v1050, %v1543
        %1545 = vmatmul.bf16.gmra.mxu0 %v1201
        %v1546 = vpop.f32.mrf.mxu0
        %v1547 = vadd.f32 %v1050, %v1546
        %v1548 = vpop.f32.mrf.mxu0
        %v1549 = vadd.f32 %v1050, %v1548
        %1550 = vmatmul.bf16.gmra.mxu0 %v1204
        %v1551 = vpop.f32.mrf.mxu0
        %v1552 = vadd.f32 %v1050, %v1551
        %v1553 = vpop.f32.mrf.mxu0
        %v1554 = vadd.f32 %v1050, %v1553
        %1555 = vmatmul.bf16.gmra.mxu0 %v1207
        %v1556 = vpop.f32.mrf.mxu0
        %v1557 = vadd.f32 %v1050, %v1556
        %v1558 = vpop.f32.mrf.mxu0
        %v1559 = vadd.f32 %v1050, %v1558
        %1560 = vmatmul.bf16.gmra.mxu0 %v1210
        %v1561 = vpop.f32.mrf.mxu0
        %v1562 = vadd.f32 %v1050, %v1561
        %v1563 = vpop.f32.mrf.mxu0
        %v1564 = vadd.f32 %v1050, %v1563
        %1565 = vmatmul.bf16.gmra.mxu0 %v1213
        %v1566 = vpop.f32.mrf.mxu0
        %v1567 = vadd.f32 %v1050, %v1566
        %v1568 = vpop.f32.mrf.mxu0
        %v1569 = vadd.f32 %v1050, %v1568
        %1570 = vdwg.mxu0
        %1571 = vmatpush.bf16.msra.mxu0 0
        %1572 = vmatpush.bf16.msra.mxu0 0
        %1573 = vmatpush.bf16.msra.mxu0 0
        %1574 = vmatpush.bf16.msra.mxu0 0
        %1575 = vmatpush.bf16.msra.mxu0 0
        %1576 = vmatpush.bf16.msra.mxu0 0
        %1577 = vmatpush.bf16.msra.mxu0 %v1141
        %1578 = vmatpush.bf16.msra.mxu0 %v1131
        %1579 = vmatmul.bf16.gmra.mxu0 %v1168
        %v1580 = vpop.f32.mrf.mxu0
        %v1581 = vadd.f32 %v1051, %v1580
        %v1582 = vpop.f32.mrf.mxu0
        %v1583 = vadd.f32 %v1051, %v1582
        %1584 = vmatmul.bf16.gmra.mxu0 %v1171
        %v1585 = vpop.f32.mrf.mxu0
        %v1586 = vadd.f32 %v1051, %v1585
        %v1587 = vpop.f32.mrf.mxu0
        %v1588 = vadd.f32 %v1051, %v1587
        %1589 = vmatmul.bf16.gmra.mxu0 %v1174
        %v1590 = vpop.f32.mrf.mxu0
        %v1591 = vadd.f32 %v1051, %v1590
        %v1592 = vpop.f32.mrf.mxu0
        %v1593 = vadd.f32 %v1051, %v1592
        %1594 = vmatmul.bf16.gmra.mxu0 %v1177
        %v1595 = vpop.f32.mrf.mxu0
        %v1596 = vadd.f32 %v1051, %v1595
        %v1597 = vpop.f32.mrf.mxu0
        %v1598 = vadd.f32 %v1051, %v1597
        %1599 = vmatmul.bf16.gmra.mxu0 %v1180
        %v1600 = vpop.f32.mrf.mxu0
        %v1601 = vadd.f32 %v1051, %v1600
        %v1602 = vpop.f32.mrf.mxu0
        %v1603 = vadd.f32 %v1051, %v1602
        %1604 = vmatmul.bf16.gmra.mxu0 %v1183
        %v1605 = vpop.f32.mrf.mxu0
        %v1606 = vadd.f32 %v1051, %v1605
        %v1607 = vpop.f32.mrf.mxu0
        %v1608 = vadd.f32 %v1051, %v1607
        %1609 = vmatmul.bf16.gmra.mxu0 %v1186
        %v1610 = vpop.f32.mrf.mxu0
        %v1611 = vadd.f32 %v1051, %v1610
        %v1612 = vpop.f32.mrf.mxu0
        %v1613 = vadd.f32 %v1051, %v1612
        %1614 = vmatmul.bf16.gmra.mxu0 %v1189
        %v1615 = vpop.f32.mrf.mxu0
        %v1616 = vadd.f32 %v1051, %v1615
        %v1617 = vpop.f32.mrf.mxu0
        %v1618 = vadd.f32 %v1051, %v1617
        %1619 = vmatmul.bf16.gmra.mxu0 %v1192
        %v1620 = vpop.f32.mrf.mxu0
        %v1621 = vadd.f32 %v1051, %v1620
        %v1622 = vpop.f32.mrf.mxu0
        %v1623 = vadd.f32 %v1051, %v1622
        %1624 = vmatmul.bf16.gmra.mxu0 %v1195
        %v1625 = vpop.f32.mrf.mxu0
        %v1626 = vadd.f32 %v1051, %v1625
        %v1627 = vpop.f32.mrf.mxu0
        %v1628 = vadd.f32 %v1051, %v1627
        %1629 = vmatmul.bf16.gmra.mxu0 %v1198
        %v1630 = vpop.f32.mrf.mxu0
        %v1631 = vadd.f32 %v1051, %v1630
        %v1632 = vpop.f32.mrf.mxu0
        %v1633 = vadd.f32 %v1051, %v1632
        %1634 = vmatmul.bf16.gmra.mxu0 %v1201
        %v1635 = vpop.f32.mrf.mxu0
        %v1636 = vadd.f32 %v1051, %v1635
        %v1637 = vpop.f32.mrf.mxu0
        %v1638 = vadd.f32 %v1051, %v1637
        %1639 = vmatmul.bf16.gmra.mxu0 %v1204
        %v1640 = vpop.f32.mrf.mxu0
        %v1641 = vadd.f32 %v1051, %v1640
        %v1642 = vpop.f32.mrf.mxu0
        %v1643 = vadd.f32 %v1051, %v1642
        %1644 = vmatmul.bf16.gmra.mxu0 %v1207
        %v1645 = vpop.f32.mrf.mxu0
        %v1646 = vadd.f32 %v1051, %v1645
        %v1647 = vpop.f32.mrf.mxu0
        %v1648 = vadd.f32 %v1051, %v1647
        %1649 = vmatmul.bf16.gmra.mxu0 %v1210
        %v1650 = vpop.f32.mrf.mxu0
        %v1651 = vadd.f32 %v1051, %v1650
        %v1652 = vpop.f32.mrf.mxu0
        %v1653 = vadd.f32 %v1051, %v1652
        %1654 = vmatmul.bf16.gmra.mxu0 %v1213
        %v1655 = vpop.f32.mrf.mxu0
        %v1656 = vadd.f32 %v1051, %v1655
        %v1657 = vpop.f32.mrf.mxu0
        %v1658 = vadd.f32 %v1051, %v1657
        %1659 = vdwg.mxu0
        %1660 = vmatpush.bf16.msra.mxu0 0
        %1661 = vmatpush.bf16.msra.mxu0 0
        %1662 = vmatpush.bf16.msra.mxu0 0
        %1663 = vmatpush.bf16.msra.mxu0 0
        %1664 = vmatpush.bf16.msra.mxu0 0
        %1665 = vmatpush.bf16.msra.mxu0 0
        %1666 = vmatpush.bf16.msra.mxu0 %v1142
        %1667 = vmatpush.bf16.msra.mxu0 %v1132
        %1668 = vmatmul.bf16.gmra.mxu0 %v1168
        %v1669 = vpop.f32.mrf.mxu0
        %v1670 = vadd.f32 %v1052, %v1669
        %v1671 = vpop.f32.mrf.mxu0
        %v1672 = vadd.f32 %v1052, %v1671
        %1673 = vmatmul.bf16.gmra.mxu0 %v1171
        %v1674 = vpop.f32.mrf.mxu0
        %v1675 = vadd.f32 %v1052, %v1674
        %v1676 = vpop.f32.mrf.mxu0
        %v1677 = vadd.f32 %v1052, %v1676
        %1678 = vmatmul.bf16.gmra.mxu0 %v1174
        %v1679 = vpop.f32.mrf.mxu0
        %v1680 = vadd.f32 %v1052, %v1679
        %v1681 = vpop.f32.mrf.mxu0
        %v1682 = vadd.f32 %v1052, %v1681
        %1683 = vmatmul.bf16.gmra.mxu0 %v1177
        %v1684 = vpop.f32.mrf.mxu0
        %v1685 = vadd.f32 %v1052, %v1684
        %v1686 = vpop.f32.mrf.mxu0
        %v1687 = vadd.f32 %v1052, %v1686
        %1688 = vmatmul.bf16.gmra.mxu0 %v1180
        %v1689 = vpop.f32.mrf.mxu0
        %v1690 = vadd.f32 %v1052, %v1689
        %v1691 = vpop.f32.mrf.mxu0
        %v1692 = vadd.f32 %v1052, %v1691
        %1693 = vmatmul.bf16.gmra.mxu0 %v1183
        %v1694 = vpop.f32.mrf.mxu0
        %v1695 = vadd.f32 %v1052, %v1694
        %v1696 = vpop.f32.mrf.mxu0
        %v1697 = vadd.f32 %v1052, %v1696
        %1698 = vmatmul.bf16.gmra.mxu0 %v1186
        %v1699 = vpop.f32.mrf.mxu0
        %v1700 = vadd.f32 %v1052, %v1699
        %v1701 = vpop.f32.mrf.mxu0
        %v1702 = vadd.f32 %v1052, %v1701
        %1703 = vmatmul.bf16.gmra.mxu0 %v1189
        %v1704 = vpop.f32.mrf.mxu0
        %v1705 = vadd.f32 %v1052, %v1704
        %v1706 = vpop.f32.mrf.mxu0
        %v1707 = vadd.f32 %v1052, %v1706
        %1708 = vmatmul.bf16.gmra.mxu0 %v1192
        %v1709 = vpop.f32.mrf.mxu0
        %v1710 = vadd.f32 %v1052, %v1709
        %v1711 = vpop.f32.mrf.mxu0
        %v1712 = vadd.f32 %v1052, %v1711
        %1713 = vmatmul.bf16.gmra.mxu0 %v1195
        %v1714 = vpop.f32.mrf.mxu0
        %v1715 = vadd.f32 %v1052, %v1714
        %v1716 = vpop.f32.mrf.mxu0
        %v1717 = vadd.f32 %v1052, %v1716
        %1718 = vmatmul.bf16.gmra.mxu0 %v1198
        %v1719 = vpop.f32.mrf.mxu0
        %v1720 = vadd.f32 %v1052, %v1719
        %v1721 = vpop.f32.mrf.mxu0
        %v1722 = vadd.f32 %v1052, %v1721
        %1723 = vmatmul.bf16.gmra.mxu0 %v1201
        %v1724 = vpop.f32.mrf.mxu0
        %v1725 = vadd.f32 %v1052, %v1724
        %v1726 = vpop.f32.mrf.mxu0
        %v1727 = vadd.f32 %v1052, %v1726
        %1728 = vmatmul.bf16.gmra.mxu0 %v1204
        %v1729 = vpop.f32.mrf.mxu0
        %v1730 = vadd.f32 %v1052, %v1729
        %v1731 = vpop.f32.mrf.mxu0
        %v1732 = vadd.f32 %v1052, %v1731
        %1733 = vmatmul.bf16.gmra.mxu0 %v1207
        %v1734 = vpop.f32.mrf.mxu0
        %v1735 = vadd.f32 %v1052, %v1734
        %v1736 = vpop.f32.mrf.mxu0
        %v1737 = vadd.f32 %v1052, %v1736
        %1738 = vmatmul.bf16.gmra.mxu0 %v1210
        %v1739 = vpop.f32.mrf.mxu0
        %v1740 = vadd.f32 %v1052, %v1739
        %v1741 = vpop.f32.mrf.mxu0
        %v1742 = vadd.f32 %v1052, %v1741
        %1743 = vmatmul.bf16.gmra.mxu0 %v1213
        %v1744 = vpop.f32.mrf.mxu0
        %v1745 = vadd.f32 %v1052, %v1744
        %v1746 = vpop.f32.mrf.mxu0
        %v1747 = vadd.f32 %v1052, %v1746
        %1748 = vdwg.mxu0
        %1749 = vmatpush.bf16.msra.mxu0 0
        %1750 = vmatpush.bf16.msra.mxu0 0
        %1751 = vmatpush.bf16.msra.mxu0 0
        %1752 = vmatpush.bf16.msra.mxu0 0
        %1753 = vmatpush.bf16.msra.mxu0 0
        %1754 = vmatpush.bf16.msra.mxu0 0
        %1755 = vmatpush.bf16.msra.mxu0 %v1143
        %1756 = vmatpush.bf16.msra.mxu0 %v1133
        %1757 = vmatmul.bf16.gmra.mxu0 %v1168
        %v1758 = vpop.f32.mrf.mxu0
        %v1759 = vadd.f32 %v1053, %v1758
        %v1760 = vpop.f32.mrf.mxu0
        %v1761 = vadd.f32 %v1053, %v1760
        %1762 = vmatmul.bf16.gmra.mxu0 %v1171
        %v1763 = vpop.f32.mrf.mxu0
        %v1764 = vadd.f32 %v1053, %v1763
        %v1765 = vpop.f32.mrf.mxu0
        %v1766 = vadd.f32 %v1053, %v1765
        %1767 = vmatmul.bf16.gmra.mxu0 %v1174
        %v1768 = vpop.f32.mrf.mxu0
        %v1769 = vadd.f32 %v1053, %v1768
        %v1770 = vpop.f32.mrf.mxu0
        %v1771 = vadd.f32 %v1053, %v1770
        %1772 = vmatmul.bf16.gmra.mxu0 %v1177
        %v1773 = vpop.f32.mrf.mxu0
        %v1774 = vadd.f32 %v1053, %v1773
        %v1775 = vpop.f32.mrf.mxu0
        %v1776 = vadd.f32 %v1053, %v1775
        %1777 = vmatmul.bf16.gmra.mxu0 %v1180
        %v1778 = vpop.f32.mrf.mxu0
        %v1779 = vadd.f32 %v1053, %v1778
        %v1780 = vpop.f32.mrf.mxu0
        %v1781 = vadd.f32 %v1053, %v1780
        %1782 = vmatmul.bf16.gmra.mxu0 %v1183
        %v1783 = vpop.f32.mrf.mxu0
        %v1784 = vadd.f32 %v1053, %v1783
        %v1785 = vpop.f32.mrf.mxu0
        %v1786 = vadd.f32 %v1053, %v1785
        %1787 = vmatmul.bf16.gmra.mxu0 %v1186
        %v1788 = vpop.f32.mrf.mxu0
        %v1789 = vadd.f32 %v1053, %v1788
        %v1790 = vpop.f32.mrf.mxu0
        %v1791 = vadd.f32 %v1053, %v1790
        %1792 = vmatmul.bf16.gmra.mxu0 %v1189
        %v1793 = vpop.f32.mrf.mxu0
        %v1794 = vadd.f32 %v1053, %v1793
        %v1795 = vpop.f32.mrf.mxu0
        %v1796 = vadd.f32 %v1053, %v1795
        %1797 = vmatmul.bf16.gmra.mxu0 %v1192
        %v1798 = vpop.f32.mrf.mxu0
        %v1799 = vadd.f32 %v1053, %v1798
        %v1800 = vpop.f32.mrf.mxu0
        %v1801 = vadd.f32 %v1053, %v1800
        %1802 = vmatmul.bf16.gmra.mxu0 %v1195
        %v1803 = vpop.f32.mrf.mxu0
        %v1804 = vadd.f32 %v1053, %v1803
        %v1805 = vpop.f32.mrf.mxu0
        %v1806 = vadd.f32 %v1053, %v1805
        %1807 = vmatmul.bf16.gmra.mxu0 %v1198
        %v1808 = vpop.f32.mrf.mxu0
        %v1809 = vadd.f32 %v1053, %v1808
        %v1810 = vpop.f32.mrf.mxu0
        %v1811 = vadd.f32 %v1053, %v1810
        %1812 = vmatmul.bf16.gmra.mxu0 %v1201
        %v1813 = vpop.f32.mrf.mxu0
        %v1814 = vadd.f32 %v1053, %v1813
        %v1815 = vpop.f32.mrf.mxu0
        %v1816 = vadd.f32 %v1053, %v1815
        %1817 = vmatmul.bf16.gmra.mxu0 %v1204
        %v1818 = vpop.f32.mrf.mxu0
        %v1819 = vadd.f32 %v1053, %v1818
        %v1820 = vpop.f32.mrf.mxu0
        %v1821 = vadd.f32 %v1053, %v1820
        %1822 = vmatmul.bf16.gmra.mxu0 %v1207
        %v1823 = vpop.f32.mrf.mxu0
        %v1824 = vadd.f32 %v1053, %v1823
        %v1825 = vpop.f32.mrf.mxu0
        %v1826 = vadd.f32 %v1053, %v1825
        %1827 = vmatmul.bf16.gmra.mxu0 %v1210
        %v1828 = vpop.f32.mrf.mxu0
        %v1829 = vadd.f32 %v1053, %v1828
        %v1830 = vpop.f32.mrf.mxu0
        %v1831 = vadd.f32 %v1053, %v1830
        %1832 = vmatmul.bf16.gmra.mxu0 %v1213
        %v1833 = vpop.f32.mrf.mxu0
        %v1834 = vadd.f32 %v1053, %v1833
        %v1835 = vpop.f32.mrf.mxu0
        %v1836 = vadd.f32 %v1053, %v1835
        %1837 = vdwg.mxu0
        %1838 = vmatpush.bf16.msra.mxu0 0
        %1839 = vmatpush.bf16.msra.mxu0 0
        %1840 = vmatpush.bf16.msra.mxu0 0
        %1841 = vmatpush.bf16.msra.mxu0 0
        %1842 = vmatpush.bf16.msra.mxu0 0
        %1843 = vmatpush.bf16.msra.mxu0 0
        %1844 = vmatpush.bf16.msra.mxu0 %v1144
        %1845 = vmatpush.bf16.msra.mxu0 %v1134
        %1846 = vmatmul.bf16.gmra.mxu0 %v1168
        %v1847 = vpop.f32.mrf.mxu0
        %v1848 = vadd.f32 %v1054, %v1847
        %v1849 = vpop.f32.mrf.mxu0
        %v1850 = vadd.f32 %v1054, %v1849
        %1851 = vmatmul.bf16.gmra.mxu0 %v1171
        %v1852 = vpop.f32.mrf.mxu0
        %v1853 = vadd.f32 %v1054, %v1852
        %v1854 = vpop.f32.mrf.mxu0
        %v1855 = vadd.f32 %v1054, %v1854
        %1856 = vmatmul.bf16.gmra.mxu0 %v1174
        %v1857 = vpop.f32.mrf.mxu0
        %v1858 = vadd.f32 %v1054, %v1857
        %v1859 = vpop.f32.mrf.mxu0
        %v1860 = vadd.f32 %v1054, %v1859
        %1861 = vmatmul.bf16.gmra.mxu0 %v1177
        %v1862 = vpop.f32.mrf.mxu0
        %v1863 = vadd.f32 %v1054, %v1862
        %v1864 = vpop.f32.mrf.mxu0
        %v1865 = vadd.f32 %v1054, %v1864
        %1866 = vmatmul.bf16.gmra.mxu0 %v1180
        %v1867 = vpop.f32.mrf.mxu0
        %v1868 = vadd.f32 %v1054, %v1867
        %v1869 = vpop.f32.mrf.mxu0
        %v1870 = vadd.f32 %v1054, %v1869
        %1871 = vmatmul.bf16.gmra.mxu0 %v1183
        %v1872 = vpop.f32.mrf.mxu0
        %v1873 = vadd.f32 %v1054, %v1872
        %v1874 = vpop.f32.mrf.mxu0
        %v1875 = vadd.f32 %v1054, %v1874
        %1876 = vmatmul.bf16.gmra.mxu0 %v1186
        %v1877 = vpop.f32.mrf.mxu0
        %v1878 = vadd.f32 %v1054, %v1877
        %v1879 = vpop.f32.mrf.mxu0
        %v1880 = vadd.f32 %v1054, %v1879
        %1881 = vmatmul.bf16.gmra.mxu0 %v1189
        %v1882 = vpop.f32.mrf.mxu0
        %v1883 = vadd.f32 %v1054, %v1882
        %v1884 = vpop.f32.mrf.mxu0
        %v1885 = vadd.f32 %v1054, %v1884
        %1886 = vmatmul.bf16.gmra.mxu0 %v1192
        %v1887 = vpop.f32.mrf.mxu0
        %v1888 = vadd.f32 %v1054, %v1887
        %v1889 = vpop.f32.mrf.mxu0
        %v1890 = vadd.f32 %v1054, %v1889
        %1891 = vmatmul.bf16.gmra.mxu0 %v1195
        %v1892 = vpop.f32.mrf.mxu0
        %v1893 = vadd.f32 %v1054, %v1892
        %v1894 = vpop.f32.mrf.mxu0
        %v1895 = vadd.f32 %v1054, %v1894
        %1896 = vmatmul.bf16.gmra.mxu0 %v1198
        %v1897 = vpop.f32.mrf.mxu0
        %v1898 = vadd.f32 %v1054, %v1897
        %v1899 = vpop.f32.mrf.mxu0
        %v1900 = vadd.f32 %v1054, %v1899
        %1901 = vmatmul.bf16.gmra.mxu0 %v1201
        %v1902 = vpop.f32.mrf.mxu0
        %v1903 = vadd.f32 %v1054, %v1902
        %v1904 = vpop.f32.mrf.mxu0
        %v1905 = vadd.f32 %v1054, %v1904
        %1906 = vmatmul.bf16.gmra.mxu0 %v1204
        %v1907 = vpop.f32.mrf.mxu0
        %v1908 = vadd.f32 %v1054, %v1907
        %v1909 = vpop.f32.mrf.mxu0
        %v1910 = vadd.f32 %v1054, %v1909
        %1911 = vmatmul.bf16.gmra.mxu0 %v1207
        %v1912 = vpop.f32.mrf.mxu0
        %v1913 = vadd.f32 %v1054, %v1912
        %v1914 = vpop.f32.mrf.mxu0
        %v1915 = vadd.f32 %v1054, %v1914
        %1916 = vmatmul.bf16.gmra.mxu0 %v1210
        %v1917 = vpop.f32.mrf.mxu0
        %v1918 = vadd.f32 %v1054, %v1917
        %v1919 = vpop.f32.mrf.mxu0
        %v1920 = vadd.f32 %v1054, %v1919
        %1921 = vmatmul.bf16.gmra.mxu0 %v1213
        %v1922 = vpop.f32.mrf.mxu0
        %v1923 = vadd.f32 %v1054, %v1922
        %v1924 = vpop.f32.mrf.mxu0
        %v1925 = vadd.f32 %v1054, %v1924
        %1926 = vdwg.mxu0
        %1927 = vmatpush.bf16.msra.mxu0 0
        %1928 = vmatpush.bf16.msra.mxu0 0
        %1929 = vmatpush.bf16.msra.mxu0 0
        %1930 = vmatpush.bf16.msra.mxu0 0
        %1931 = vmatpush.bf16.msra.mxu0 0
        %1932 = vmatpush.bf16.msra.mxu0 0
        %1933 = vmatpush.bf16.msra.mxu0 %v1145
        %1934 = vmatpush.bf16.msra.mxu0 %v1135
        %1935 = vmatmul.bf16.gmra.mxu0 %v1168
        %v1936 = vpop.f32.mrf.mxu0
        %v1937 = vadd.f32 %v1055, %v1936
        %v1938 = vpop.f32.mrf.mxu0
        %v1939 = vadd.f32 %v1055, %v1938
        %1940 = vmatmul.bf16.gmra.mxu0 %v1171
        %v1941 = vpop.f32.mrf.mxu0
        %v1942 = vadd.f32 %v1055, %v1941
        %v1943 = vpop.f32.mrf.mxu0
        %v1944 = vadd.f32 %v1055, %v1943
        %1945 = vmatmul.bf16.gmra.mxu0 %v1174
        %v1946 = vpop.f32.mrf.mxu0
        %v1947 = vadd.f32 %v1055, %v1946
        %v1948 = vpop.f32.mrf.mxu0
        %v1949 = vadd.f32 %v1055, %v1948
        %1950 = vmatmul.bf16.gmra.mxu0 %v1177
        %v1951 = vpop.f32.mrf.mxu0
        %v1952 = vadd.f32 %v1055, %v1951
        %v1953 = vpop.f32.mrf.mxu0
        %v1954 = vadd.f32 %v1055, %v1953
        %1955 = vmatmul.bf16.gmra.mxu0 %v1180
        %v1956 = vpop.f32.mrf.mxu0
        %v1957 = vadd.f32 %v1055, %v1956
        %v1958 = vpop.f32.mrf.mxu0
        %v1959 = vadd.f32 %v1055, %v1958
        %1960 = vmatmul.bf16.gmra.mxu0 %v1183
        %v1961 = vpop.f32.mrf.mxu0
        %v1962 = vadd.f32 %v1055, %v1961
        %v1963 = vpop.f32.mrf.mxu0
        %v1964 = vadd.f32 %v1055, %v1963
        %1965 = vmatmul.bf16.gmra.mxu0 %v1186
        %v1966 = vpop.f32.mrf.mxu0
        %v1967 = vadd.f32 %v1055, %v1966
        %v1968 = vpop.f32.mrf.mxu0
        %v1969 = vadd.f32 %v1055, %v1968
        %1970 = vmatmul.bf16.gmra.mxu0 %v1189
        %v1971 = vpop.f32.mrf.mxu0
        %v1972 = vadd.f32 %v1055, %v1971
        %v1973 = vpop.f32.mrf.mxu0
        %v1974 = vadd.f32 %v1055, %v1973
        %1975 = vmatmul.bf16.gmra.mxu0 %v1192
        %v1976 = vpop.f32.mrf.mxu0
        %v1977 = vadd.f32 %v1055, %v1976
        %v1978 = vpop.f32.mrf.mxu0
        %v1979 = vadd.f32 %v1055, %v1978
        %1980 = vmatmul.bf16.gmra.mxu0 %v1195
        %v1981 = vpop.f32.mrf.mxu0
        %v1982 = vadd.f32 %v1055, %v1981
        %v1983 = vpop.f32.mrf.mxu0
        %v1984 = vadd.f32 %v1055, %v1983
        %1985 = vmatmul.bf16.gmra.mxu0 %v1198
        %v1986 = vpop.f32.mrf.mxu0
        %v1987 = vadd.f32 %v1055, %v1986
        %v1988 = vpop.f32.mrf.mxu0
        %v1989 = vadd.f32 %v1055, %v1988
        %1990 = vmatmul.bf16.gmra.mxu0 %v1201
        %v1991 = vpop.f32.mrf.mxu0
        %v1992 = vadd.f32 %v1055, %v1991
        %v1993 = vpop.f32.mrf.mxu0
        %v1994 = vadd.f32 %v1055, %v1993
        %1995 = vmatmul.bf16.gmra.mxu0 %v1204
        %v1996 = vpop.f32.mrf.mxu0
        %v1997 = vadd.f32 %v1055, %v1996
        %v1998 = vpop.f32.mrf.mxu0
        %v1999 = vadd.f32 %v1055, %v1998
        %2000 = vmatmul.bf16.gmra.mxu0 %v1207
        %v2001 = vpop.f32.mrf.mxu0
        %v2002 = vadd.f32 %v1055, %v2001
        %v2003 = vpop.f32.mrf.mxu0
        %v2004 = vadd.f32 %v1055, %v2003
        %2005 = vmatmul.bf16.gmra.mxu0 %v1210
        %v2006 = vpop.f32.mrf.mxu0
        %v2007 = vadd.f32 %v1055, %v2006
        %v2008 = vpop.f32.mrf.mxu0
        %v2009 = vadd.f32 %v1055, %v2008
        %2010 = vmatmul.bf16.gmra.mxu0 %v1213
        %v2011 = vpop.f32.mrf.mxu0
        %v2012 = vadd.f32 %v1055, %v2011
        %v2013 = vpop.f32.mrf.mxu0
        %v2014 = vadd.f32 %v1055, %v2013
        %2015 = vdwg.mxu0
        %2016 = vmatpush.bf16.msra.mxu0 0
        %2017 = vmatpush.bf16.msra.mxu0 0
        %2018 = vmatpush.bf16.msra.mxu0 0
        %2019 = vmatpush.bf16.msra.mxu0 0
        %2020 = vmatpush.bf16.msra.mxu0 0
        %2021 = vmatpush.bf16.msra.mxu0 0
        %2022 = vmatpush.bf16.msra.mxu0 %v1146
        %2023 = vmatpush.bf16.msra.mxu0 %v1136
        %2024 = vmatmul.bf16.gmra.mxu0 %v1168
        %v2025 = vpop.f32.mrf.mxu0
        %v2026 = vadd.f32 %v1056, %v2025
        %v2027 = vpop.f32.mrf.mxu0
        %v2028 = vadd.f32 %v1056, %v2027
        %2029 = vmatmul.bf16.gmra.mxu0 %v1171
        %v2030 = vpop.f32.mrf.mxu0
        %v2031 = vadd.f32 %v1056, %v2030
        %v2032 = vpop.f32.mrf.mxu0
        %v2033 = vadd.f32 %v1056, %v2032
        %2034 = vmatmul.bf16.gmra.mxu0 %v1174
        %v2035 = vpop.f32.mrf.mxu0
        %v2036 = vadd.f32 %v1056, %v2035
        %v2037 = vpop.f32.mrf.mxu0
        %v2038 = vadd.f32 %v1056, %v2037
        %2039 = vmatmul.bf16.gmra.mxu0 %v1177
        %v2040 = vpop.f32.mrf.mxu0
        %v2041 = vadd.f32 %v1056, %v2040
        %v2042 = vpop.f32.mrf.mxu0
        %v2043 = vadd.f32 %v1056, %v2042
        %2044 = vmatmul.bf16.gmra.mxu0 %v1180
        %v2045 = vpop.f32.mrf.mxu0
        %v2046 = vadd.f32 %v1056, %v2045
        %v2047 = vpop.f32.mrf.mxu0
        %v2048 = vadd.f32 %v1056, %v2047
        %2049 = vmatmul.bf16.gmra.mxu0 %v1183
        %v2050 = vpop.f32.mrf.mxu0
        %v2051 = vadd.f32 %v1056, %v2050
        %v2052 = vpop.f32.mrf.mxu0
        %v2053 = vadd.f32 %v1056, %v2052
        %2054 = vmatmul.bf16.gmra.mxu0 %v1186
        %v2055 = vpop.f32.mrf.mxu0
        %v2056 = vadd.f32 %v1056, %v2055
        %v2057 = vpop.f32.mrf.mxu0
        %v2058 = vadd.f32 %v1056, %v2057
        %2059 = vmatmul.bf16.gmra.mxu0 %v1189
        %v2060 = vpop.f32.mrf.mxu0
        %v2061 = vadd.f32 %v1056, %v2060
        %v2062 = vpop.f32.mrf.mxu0
        %v2063 = vadd.f32 %v1056, %v2062
        %2064 = vmatmul.bf16.gmra.mxu0 %v1192
        %v2065 = vpop.f32.mrf.mxu0
        %v2066 = vadd.f32 %v1056, %v2065
        %v2067 = vpop.f32.mrf.mxu0
        %v2068 = vadd.f32 %v1056, %v2067
        %2069 = vmatmul.bf16.gmra.mxu0 %v1195
        %v2070 = vpop.f32.mrf.mxu0
        %v2071 = vadd.f32 %v1056, %v2070
        %v2072 = vpop.f32.mrf.mxu0
        %v2073 = vadd.f32 %v1056, %v2072
        %2074 = vmatmul.bf16.gmra.mxu0 %v1198
        %v2075 = vpop.f32.mrf.mxu0
        %v2076 = vadd.f32 %v1056, %v2075
        %v2077 = vpop.f32.mrf.mxu0
        %v2078 = vadd.f32 %v1056, %v2077
        %2079 = vmatmul.bf16.gmra.mxu0 %v1201
        %v2080 = vpop.f32.mrf.mxu0
        %v2081 = vadd.f32 %v1056, %v2080
        %v2082 = vpop.f32.mrf.mxu0
        %v2083 = vadd.f32 %v1056, %v2082
        %2084 = vmatmul.bf16.gmra.mxu0 %v1204
        %v2085 = vpop.f32.mrf.mxu0
        %v2086 = vadd.f32 %v1056, %v2085
        %v2087 = vpop.f32.mrf.mxu0
        %v2088 = vadd.f32 %v1056, %v2087
        %2089 = vmatmul.bf16.gmra.mxu0 %v1207
        %v2090 = vpop.f32.mrf.mxu0
        %v2091 = vadd.f32 %v1056, %v2090
        %v2092 = vpop.f32.mrf.mxu0
        %v2093 = vadd.f32 %v1056, %v2092
        %2094 = vmatmul.bf16.gmra.mxu0 %v1210
        %v2095 = vpop.f32.mrf.mxu0
        %v2096 = vadd.f32 %v1056, %v2095
        %v2097 = vpop.f32.mrf.mxu0
        %v2098 = vadd.f32 %v1056, %v2097
        %2099 = vmatmul.bf16.gmra.mxu0 %v1213
        %v2100 = vpop.f32.mrf.mxu0
        %v2101 = vadd.f32 %v1056, %v2100
        %v2102 = vpop.f32.mrf.mxu0
        %v2103 = vadd.f32 %v1056, %v2102
        %2104 = vdwg.mxu0
        %v2105 = vsub.f32 0.0, %v1225
        %v2106 = vsub.f32 0.0, %v1314
        %v2107 = vsub.f32 0.0, %v1403
        %v2108 = vsub.f32 0.0, %v1492
        %v2109 = vsub.f32 0.0, %v1581
        %v2110 = vsub.f32 0.0, %v1670
        %v2111 = vsub.f32 0.0, %v1759
        %v2112 = vsub.f32 0.0, %v1848
        %v2113 = vsub.f32 0.0, %v1937
        %v2114 = vsub.f32 0.0, %v2026
        %v2115 = vsub.f32 0.0, %v1227
        %v2116 = vsub.f32 0.0, %v1316
        %v2117 = vsub.f32 0.0, %v1405
        %v2118 = vsub.f32 0.0, %v1494
        %v2119 = vsub.f32 0.0, %v1583
        %v2120 = vsub.f32 0.0, %v1672
        %v2121 = vsub.f32 0.0, %v1761
        %v2122 = vsub.f32 0.0, %v1850
        %v2123 = vsub.f32 0.0, %v1939
        %v2124 = vsub.f32 0.0, %v2028
        %v2125 = vsub.f32 0.0, %v1230
        %v2126 = vsub.f32 0.0, %v1319
        %v2127 = vsub.f32 0.0, %v1408
        %v2128 = vsub.f32 0.0, %v1497
        %v2129 = vsub.f32 0.0, %v1586
        %v2130 = vsub.f32 0.0, %v1675
        %v2131 = vsub.f32 0.0, %v1764
        %v2132 = vsub.f32 0.0, %v1853
        %v2133 = vsub.f32 0.0, %v1942
        %v2134 = vsub.f32 0.0, %v2031
        %v2135 = vsub.f32 0.0, %v1232
        %v2136 = vsub.f32 0.0, %v1321
        %v2137 = vsub.f32 0.0, %v1410
        %v2138 = vsub.f32 0.0, %v1499
        %v2139 = vsub.f32 0.0, %v1588
        %v2140 = vsub.f32 0.0, %v1677
        %v2141 = vsub.f32 0.0, %v1766
        %v2142 = vsub.f32 0.0, %v1855
        %v2143 = vsub.f32 0.0, %v1944
        %v2144 = vsub.f32 0.0, %v2033
        %v2145 = vsub.f32 0.0, %v1235
        %v2146 = vsub.f32 0.0, %v1324
        %v2147 = vsub.f32 0.0, %v1413
        %v2148 = vsub.f32 0.0, %v1502
        %v2149 = vsub.f32 0.0, %v1591
        %v2150 = vsub.f32 0.0, %v1680
        %v2151 = vsub.f32 0.0, %v1769
        %v2152 = vsub.f32 0.0, %v1858
        %v2153 = vsub.f32 0.0, %v1947
        %v2154 = vsub.f32 0.0, %v2036
        %v2155 = vsub.f32 0.0, %v1237
        %v2156 = vsub.f32 0.0, %v1326
        %v2157 = vsub.f32 0.0, %v1415
        %v2158 = vsub.f32 0.0, %v1504
        %v2159 = vsub.f32 0.0, %v1593
        %v2160 = vsub.f32 0.0, %v1682
        %v2161 = vsub.f32 0.0, %v1771
        %v2162 = vsub.f32 0.0, %v1860
        %v2163 = vsub.f32 0.0, %v1949
        %v2164 = vsub.f32 0.0, %v2038
        %v2165 = vsub.f32 0.0, %v1240
        %v2166 = vsub.f32 0.0, %v1329
        %v2167 = vsub.f32 0.0, %v1418
        %v2168 = vsub.f32 0.0, %v1507
        %v2169 = vsub.f32 0.0, %v1596
        %v2170 = vsub.f32 0.0, %v1685
        %v2171 = vsub.f32 0.0, %v1774
        %v2172 = vsub.f32 0.0, %v1863
        %v2173 = vsub.f32 0.0, %v1952
        %v2174 = vsub.f32 0.0, %v2041
        %v2175 = vsub.f32 0.0, %v1242
        %v2176 = vsub.f32 0.0, %v1331
        %v2177 = vsub.f32 0.0, %v1420
        %v2178 = vsub.f32 0.0, %v1509
        %v2179 = vsub.f32 0.0, %v1598
        %v2180 = vsub.f32 0.0, %v1687
        %v2181 = vsub.f32 0.0, %v1776
        %v2182 = vsub.f32 0.0, %v1865
        %v2183 = vsub.f32 0.0, %v1954
        %v2184 = vsub.f32 0.0, %v2043
        %v2185 = vsub.f32 0.0, %v1245
        %v2186 = vsub.f32 0.0, %v1334
        %v2187 = vsub.f32 0.0, %v1423
        %v2188 = vsub.f32 0.0, %v1512
        %v2189 = vsub.f32 0.0, %v1601
        %v2190 = vsub.f32 0.0, %v1690
        %v2191 = vsub.f32 0.0, %v1779
        %v2192 = vsub.f32 0.0, %v1868
        %v2193 = vsub.f32 0.0, %v1957
        %v2194 = vsub.f32 0.0, %v2046
        %v2195 = vsub.f32 0.0, %v1247
        %v2196 = vsub.f32 0.0, %v1336
        %v2197 = vsub.f32 0.0, %v1425
        %v2198 = vsub.f32 0.0, %v1514
        %v2199 = vsub.f32 0.0, %v1603
        %v2200 = vsub.f32 0.0, %v1692
        %v2201 = vsub.f32 0.0, %v1781
        %v2202 = vsub.f32 0.0, %v1870
        %v2203 = vsub.f32 0.0, %v1959
        %v2204 = vsub.f32 0.0, %v2048
        %v2205 = vsub.f32 0.0, %v1250
        %v2206 = vsub.f32 0.0, %v1339
        %v2207 = vsub.f32 0.0, %v1428
        %v2208 = vsub.f32 0.0, %v1517
        %v2209 = vsub.f32 0.0, %v1606
        %v2210 = vsub.f32 0.0, %v1695
        %v2211 = vsub.f32 0.0, %v1784
        %v2212 = vsub.f32 0.0, %v1873
        %v2213 = vsub.f32 0.0, %v1962
        %v2214 = vsub.f32 0.0, %v2051
        %v2215 = vsub.f32 0.0, %v1252
        %v2216 = vsub.f32 0.0, %v1341
        %v2217 = vsub.f32 0.0, %v1430
        %v2218 = vsub.f32 0.0, %v1519
        %v2219 = vsub.f32 0.0, %v1608
        %v2220 = vsub.f32 0.0, %v1697
        %v2221 = vsub.f32 0.0, %v1786
        %v2222 = vsub.f32 0.0, %v1875
        %v2223 = vsub.f32 0.0, %v1964
        %v2224 = vsub.f32 0.0, %v2053
        %v2225 = vsub.f32 0.0, %v1255
        %v2226 = vsub.f32 0.0, %v1344
        %v2227 = vsub.f32 0.0, %v1433
        %v2228 = vsub.f32 0.0, %v1522
        %v2229 = vsub.f32 0.0, %v1611
        %v2230 = vsub.f32 0.0, %v1700
        %v2231 = vsub.f32 0.0, %v1789
        %v2232 = vsub.f32 0.0, %v1878
        %v2233 = vsub.f32 0.0, %v1967
        %v2234 = vsub.f32 0.0, %v2056
        %v2235 = vsub.f32 0.0, %v1257
        %v2236 = vsub.f32 0.0, %v1346
        %v2237 = vsub.f32 0.0, %v1435
        %v2238 = vsub.f32 0.0, %v1524
        %v2239 = vsub.f32 0.0, %v1613
        %v2240 = vsub.f32 0.0, %v1702
        %v2241 = vsub.f32 0.0, %v1791
        %v2242 = vsub.f32 0.0, %v1880
        %v2243 = vsub.f32 0.0, %v1969
        %v2244 = vsub.f32 0.0, %v2058
        %v2245 = vsub.f32 0.0, %v1260
        %v2246 = vsub.f32 0.0, %v1349
        %v2247 = vsub.f32 0.0, %v1438
        %v2248 = vsub.f32 0.0, %v1527
        %v2249 = vsub.f32 0.0, %v1616
        %v2250 = vsub.f32 0.0, %v1705
        %v2251 = vsub.f32 0.0, %v1794
        %v2252 = vsub.f32 0.0, %v1883
        %v2253 = vsub.f32 0.0, %v1972
        %v2254 = vsub.f32 0.0, %v2061
        %v2255 = vsub.f32 0.0, %v1262
        %v2256 = vsub.f32 0.0, %v1351
        %v2257 = vsub.f32 0.0, %v1440
        %v2258 = vsub.f32 0.0, %v1529
        %v2259 = vsub.f32 0.0, %v1618
        %v2260 = vsub.f32 0.0, %v1707
        %v2261 = vsub.f32 0.0, %v1796
        %v2262 = vsub.f32 0.0, %v1885
        %v2263 = vsub.f32 0.0, %v1974
        %v2264 = vsub.f32 0.0, %v2063
        %v2265 = vsub.f32 0.0, %v1265
        %v2266 = vsub.f32 0.0, %v1354
        %v2267 = vsub.f32 0.0, %v1443
        %v2268 = vsub.f32 0.0, %v1532
        %v2269 = vsub.f32 0.0, %v1621
        %v2270 = vsub.f32 0.0, %v1710
        %v2271 = vsub.f32 0.0, %v1799
        %v2272 = vsub.f32 0.0, %v1888
        %v2273 = vsub.f32 0.0, %v1977
        %v2274 = vsub.f32 0.0, %v2066
        %v2275 = vsub.f32 0.0, %v1267
        %v2276 = vsub.f32 0.0, %v1356
        %v2277 = vsub.f32 0.0, %v1445
        %v2278 = vsub.f32 0.0, %v1534
        %v2279 = vsub.f32 0.0, %v1623
        %v2280 = vsub.f32 0.0, %v1712
        %v2281 = vsub.f32 0.0, %v1801
        %v2282 = vsub.f32 0.0, %v1890
        %v2283 = vsub.f32 0.0, %v1979
        %v2284 = vsub.f32 0.0, %v2068
        %v2285 = vsub.f32 0.0, %v1270
        %v2286 = vsub.f32 0.0, %v1359
        %v2287 = vsub.f32 0.0, %v1448
        %v2288 = vsub.f32 0.0, %v1537
        %v2289 = vsub.f32 0.0, %v1626
        %v2290 = vsub.f32 0.0, %v1715
        %v2291 = vsub.f32 0.0, %v1804
        %v2292 = vsub.f32 0.0, %v1893
        %v2293 = vsub.f32 0.0, %v1982
        %v2294 = vsub.f32 0.0, %v2071
        %v2295 = vsub.f32 0.0, %v1272
        %v2296 = vsub.f32 0.0, %v1361
        %v2297 = vsub.f32 0.0, %v1450
        %v2298 = vsub.f32 0.0, %v1539
        %v2299 = vsub.f32 0.0, %v1628
        %v2300 = vsub.f32 0.0, %v1717
        %v2301 = vsub.f32 0.0, %v1806
        %v2302 = vsub.f32 0.0, %v1895
        %v2303 = vsub.f32 0.0, %v1984
        %v2304 = vsub.f32 0.0, %v2073
        %v2305 = vsub.f32 0.0, %v1275
        %v2306 = vsub.f32 0.0, %v1364
        %v2307 = vsub.f32 0.0, %v1453
        %v2308 = vsub.f32 0.0, %v1542
        %v2309 = vsub.f32 0.0, %v1631
        %v2310 = vsub.f32 0.0, %v1720
        %v2311 = vsub.f32 0.0, %v1809
        %v2312 = vsub.f32 0.0, %v1898
        %v2313 = vsub.f32 0.0, %v1987
        %v2314 = vsub.f32 0.0, %v2076
        %v2315 = vsub.f32 0.0, %v1277
        %v2316 = vsub.f32 0.0, %v1366
        %v2317 = vsub.f32 0.0, %v1455
        %v2318 = vsub.f32 0.0, %v1544
        %v2319 = vsub.f32 0.0, %v1633
        %v2320 = vsub.f32 0.0, %v1722
        %v2321 = vsub.f32 0.0, %v1811
        %v2322 = vsub.f32 0.0, %v1900
        %v2323 = vsub.f32 0.0, %v1989
        %v2324 = vsub.f32 0.0, %v2078
        %v2325 = vsub.f32 0.0, %v1280
        %v2326 = vsub.f32 0.0, %v1369
        %v2327 = vsub.f32 0.0, %v1458
        %v2328 = vsub.f32 0.0, %v1547
        %v2329 = vsub.f32 0.0, %v1636
        %v2330 = vsub.f32 0.0, %v1725
        %v2331 = vsub.f32 0.0, %v1814
        %v2332 = vsub.f32 0.0, %v1903
        %v2333 = vsub.f32 0.0, %v1992
        %v2334 = vsub.f32 0.0, %v2081
        %v2335 = vsub.f32 0.0, %v1282
        %v2336 = vsub.f32 0.0, %v1371
        %v2337 = vsub.f32 0.0, %v1460
        %v2338 = vsub.f32 0.0, %v1549
        %v2339 = vsub.f32 0.0, %v1638
        %v2340 = vsub.f32 0.0, %v1727
        %v2341 = vsub.f32 0.0, %v1816
        %v2342 = vsub.f32 0.0, %v1905
        %v2343 = vsub.f32 0.0, %v1994
        %v2344 = vsub.f32 0.0, %v2083
        %v2345 = vsub.f32 0.0, %v1285
        %v2346 = vsub.f32 0.0, %v1374
        %v2347 = vsub.f32 0.0, %v1463
        %v2348 = vsub.f32 0.0, %v1552
        %v2349 = vsub.f32 0.0, %v1641
        %v2350 = vsub.f32 0.0, %v1730
        %v2351 = vsub.f32 0.0, %v1819
        %v2352 = vsub.f32 0.0, %v1908
        %v2353 = vsub.f32 0.0, %v1997
        %v2354 = vsub.f32 0.0, %v2086
        %v2355 = vsub.f32 0.0, %v1287
        %v2356 = vsub.f32 0.0, %v1376
        %v2357 = vsub.f32 0.0, %v1465
        %v2358 = vsub.f32 0.0, %v1554
        %v2359 = vsub.f32 0.0, %v1643
        %v2360 = vsub.f32 0.0, %v1732
        %v2361 = vsub.f32 0.0, %v1821
        %v2362 = vsub.f32 0.0, %v1910
        %v2363 = vsub.f32 0.0, %v1999
        %v2364 = vsub.f32 0.0, %v2088
        %v2365 = vsub.f32 0.0, %v1290
        %v2366 = vsub.f32 0.0, %v1379
        %v2367 = vsub.f32 0.0, %v1468
        %v2368 = vsub.f32 0.0, %v1557
        %v2369 = vsub.f32 0.0, %v1646
        %v2370 = vsub.f32 0.0, %v1735
        %v2371 = vsub.f32 0.0, %v1824
        %v2372 = vsub.f32 0.0, %v1913
        %v2373 = vsub.f32 0.0, %v2002
        %v2374 = vsub.f32 0.0, %v2091
        %v2375 = vsub.f32 0.0, %v1292
        %v2376 = vsub.f32 0.0, %v1381
        %v2377 = vsub.f32 0.0, %v1470
        %v2378 = vsub.f32 0.0, %v1559
        %v2379 = vsub.f32 0.0, %v1648
        %v2380 = vsub.f32 0.0, %v1737
        %v2381 = vsub.f32 0.0, %v1826
        %v2382 = vsub.f32 0.0, %v1915
        %v2383 = vsub.f32 0.0, %v2004
        %v2384 = vsub.f32 0.0, %v2093
        %v2385 = vsub.f32 0.0, %v1295
        %v2386 = vsub.f32 0.0, %v1384
        %v2387 = vsub.f32 0.0, %v1473
        %v2388 = vsub.f32 0.0, %v1562
        %v2389 = vsub.f32 0.0, %v1651
        %v2390 = vsub.f32 0.0, %v1740
        %v2391 = vsub.f32 0.0, %v1829
        %v2392 = vsub.f32 0.0, %v1918
        %v2393 = vsub.f32 0.0, %v2007
        %v2394 = vsub.f32 0.0, %v2096
        %v2395 = vsub.f32 0.0, %v1297
        %v2396 = vsub.f32 0.0, %v1386
        %v2397 = vsub.f32 0.0, %v1475
        %v2398 = vsub.f32 0.0, %v1564
        %v2399 = vsub.f32 0.0, %v1653
        %v2400 = vsub.f32 0.0, %v1742
        %v2401 = vsub.f32 0.0, %v1831
        %v2402 = vsub.f32 0.0, %v1920
        %v2403 = vsub.f32 0.0, %v2009
        %v2404 = vsub.f32 0.0, %v2098
        %v2405 = vsub.f32 0.0, %v1300
        %v2406 = vsub.f32 0.0, %v1389
        %v2407 = vsub.f32 0.0, %v1478
        %v2408 = vsub.f32 0.0, %v1567
        %v2409 = vsub.f32 0.0, %v1656
        %v2410 = vsub.f32 0.0, %v1745
        %v2411 = vsub.f32 0.0, %v1834
        %v2412 = vsub.f32 0.0, %v1923
        %v2413 = vsub.f32 0.0, %v2012
        %v2414 = vsub.f32 0.0, %v2101
        %v2415 = vsub.f32 0.0, %v1302
        %v2416 = vsub.f32 0.0, %v1391
        %v2417 = vsub.f32 0.0, %v1480
        %v2418 = vsub.f32 0.0, %v1569
        %v2419 = vsub.f32 0.0, %v1658
        %v2420 = vsub.f32 0.0, %v1747
        %v2421 = vsub.f32 0.0, %v1836
        %v2422 = vsub.f32 0.0, %v1925
        %v2423 = vsub.f32 0.0, %v2014
        %v2424 = vsub.f32 0.0, %v2103
        %v2425 = vmul.f32 %v2105, 1.442695
        %v2426 = vpow.pop %v2425
        %v2427 = vmul.f32 %v2106, 1.442695
        %v2428 = vpow.pop %v2427
        %v2429 = vmul.f32 %v2107, 1.442695
        %v2430 = vpow.pop %v2429
        %v2431 = vmul.f32 %v2108, 1.442695
        %v2432 = vpow.pop %v2431
        %v2433 = vmul.f32 %v2109, 1.442695
        %v2434 = vpow.pop %v2433
        %v2435 = vmul.f32 %v2110, 1.442695
        %v2436 = vpow.pop %v2435
        %v2437 = vmul.f32 %v2111, 1.442695
        %v2438 = vpow.pop %v2437
        %v2439 = vmul.f32 %v2112, 1.442695
        %v2440 = vpow.pop %v2439
        %v2441 = vmul.f32 %v2113, 1.442695
        %v2442 = vpow.pop %v2441
        %v2443 = vmul.f32 %v2114, 1.442695
        %v2444 = vpow.pop %v2443
        %v2445 = vmul.f32 %v2115, 1.442695
        %v2446 = vpow.pop %v2445
        %v2447 = vmul.f32 %v2116, 1.442695
        %v2448 = vpow.pop %v2447
        %v2449 = vmul.f32 %v2117, 1.442695
        %v2450 = vpow.pop %v2449
        %v2451 = vmul.f32 %v2118, 1.442695
        %v2452 = vpow.pop %v2451
        %v2453 = vmul.f32 %v2119, 1.442695
        %v2454 = vpow.pop %v2453
        %v2455 = vmul.f32 %v2120, 1.442695
        %v2456 = vpow.pop %v2455
        %v2457 = vmul.f32 %v2121, 1.442695
        %v2458 = vpow.pop %v2457
        %v2459 = vmul.f32 %v2122, 1.442695
        %v2460 = vpow.pop %v2459
        %v2461 = vmul.f32 %v2123, 1.442695
        %v2462 = vpow.pop %v2461
        %v2463 = vmul.f32 %v2124, 1.442695
        %v2464 = vpow.pop %v2463
        %v2465 = vmul.f32 %v2125, 1.442695
        %v2466 = vpow.pop %v2465
        %v2467 = vmul.f32 %v2126, 1.442695
        %v2468 = vpow.pop %v2467
        %v2469 = vmul.f32 %v2127, 1.442695
        %v2470 = vpow.pop %v2469
        %v2471 = vmul.f32 %v2128, 1.442695
        %v2472 = vpow.pop %v2471
        %v2473 = vmul.f32 %v2129, 1.442695
        %v2474 = vpow.pop %v2473
        %v2475 = vmul.f32 %v2130, 1.442695
        %v2476 = vpow.pop %v2475
        %v2477 = vmul.f32 %v2131, 1.442695
        %v2478 = vpow.pop %v2477
        %v2479 = vmul.f32 %v2132, 1.442695
        %v2480 = vpow.pop %v2479
        %v2481 = vmul.f32 %v2133, 1.442695
        %v2482 = vpow.pop %v2481
        %v2483 = vmul.f32 %v2134, 1.442695
        %v2484 = vpow.pop %v2483
        %v2485 = vmul.f32 %v2135, 1.442695
        %v2486 = vpow.pop %v2485
        %v2487 = vmul.f32 %v2136, 1.442695
        %v2488 = vpow.pop %v2487
        %v2489 = vmul.f32 %v2137, 1.442695
        %v2490 = vpow.pop %v2489
        %v2491 = vmul.f32 %v2138, 1.442695
        %v2492 = vpow.pop %v2491
        %v2493 = vmul.f32 %v2139, 1.442695
        %v2494 = vpow.pop %v2493
        %v2495 = vmul.f32 %v2140, 1.442695
        %v2496 = vpow.pop %v2495
        %v2497 = vmul.f32 %v2141, 1.442695
        %v2498 = vpow.pop %v2497
        %v2499 = vmul.f32 %v2142, 1.442695
        %v2500 = vpow.pop %v2499
        %v2501 = vmul.f32 %v2143, 1.442695
        %v2502 = vpow.pop %v2501
        %v2503 = vmul.f32 %v2144, 1.442695
        %v2504 = vpow.pop %v2503
        %v2505 = vmul.f32 %v2145, 1.442695
        %v2506 = vpow.pop %v2505
        %v2507 = vmul.f32 %v2146, 1.442695
        %v2508 = vpow.pop %v2507
        %v2509 = vmul.f32 %v2147, 1.442695
        %v2510 = vpow.pop %v2509
        %v2511 = vmul.f32 %v2148, 1.442695
        %v2512 = vpow.pop %v2511
        %v2513 = vmul.f32 %v2149, 1.442695
        %v2514 = vpow.pop %v2513
        %v2515 = vmul.f32 %v2150, 1.442695
        %v2516 = vpow.pop %v2515
        %v2517 = vmul.f32 %v2151, 1.442695
        %v2518 = vpow.pop %v2517
        %v2519 = vmul.f32 %v2152, 1.442695
        %v2520 = vpow.pop %v2519
        %v2521 = vmul.f32 %v2153, 1.442695
        %v2522 = vpow.pop %v2521
        %v2523 = vmul.f32 %v2154, 1.442695
        %v2524 = vpow.pop %v2523
        %v2525 = vmul.f32 %v2155, 1.442695
        %v2526 = vpow.pop %v2525
        %v2527 = vmul.f32 %v2156, 1.442695
        %v2528 = vpow.pop %v2527
        %v2529 = vmul.f32 %v2157, 1.442695
        %v2530 = vpow.pop %v2529
        %v2531 = vmul.f32 %v2158, 1.442695
        %v2532 = vpow.pop %v2531
        %v2533 = vmul.f32 %v2159, 1.442695
        %v2534 = vpow.pop %v2533
        %v2535 = vmul.f32 %v2160, 1.442695
        %v2536 = vpow.pop %v2535
        %v2537 = vmul.f32 %v2161, 1.442695
        %v2538 = vpow.pop %v2537
        %v2539 = vmul.f32 %v2162, 1.442695
        %v2540 = vpow.pop %v2539
        %v2541 = vmul.f32 %v2163, 1.442695
        %v2542 = vpow.pop %v2541
        %v2543 = vmul.f32 %v2164, 1.442695
        %v2544 = vpow.pop %v2543
        %v2545 = vmul.f32 %v2165, 1.442695
        %v2546 = vpow.pop %v2545
        %v2547 = vmul.f32 %v2166, 1.442695
        %v2548 = vpow.pop %v2547
        %v2549 = vmul.f32 %v2167, 1.442695
        %v2550 = vpow.pop %v2549
        %v2551 = vmul.f32 %v2168, 1.442695
        %v2552 = vpow.pop %v2551
        %v2553 = vmul.f32 %v2169, 1.442695
        %v2554 = vpow.pop %v2553
        %v2555 = vmul.f32 %v2170, 1.442695
        %v2556 = vpow.pop %v2555
        %v2557 = vmul.f32 %v2171, 1.442695
        %v2558 = vpow.pop %v2557
        %v2559 = vmul.f32 %v2172, 1.442695
        %v2560 = vpow.pop %v2559
        %v2561 = vmul.f32 %v2173, 1.442695
        %v2562 = vpow.pop %v2561
        %v2563 = vmul.f32 %v2174, 1.442695
        %v2564 = vpow.pop %v2563
        %v2565 = vmul.f32 %v2175, 1.442695
        %v2566 = vpow.pop %v2565
        %v2567 = vmul.f32 %v2176, 1.442695
        %v2568 = vpow.pop %v2567
        %v2569 = vmul.f32 %v2177, 1.442695
        %v2570 = vpow.pop %v2569
        %v2571 = vmul.f32 %v2178, 1.442695
        %v2572 = vpow.pop %v2571
        %v2573 = vmul.f32 %v2179, 1.442695
        %v2574 = vpow.pop %v2573
        %v2575 = vmul.f32 %v2180, 1.442695
        %v2576 = vpow.pop %v2575
        %v2577 = vmul.f32 %v2181, 1.442695
        %v2578 = vpow.pop %v2577
        %v2579 = vmul.f32 %v2182, 1.442695
        %v2580 = vpow.pop %v2579
        %v2581 = vmul.f32 %v2183, 1.442695
        %v2582 = vpow.pop %v2581
        %v2583 = vmul.f32 %v2184, 1.442695
        %v2584 = vpow.pop %v2583
        %v2585 = vmul.f32 %v2185, 1.442695
        %v2586 = vpow.pop %v2585
        %v2587 = vmul.f32 %v2186, 1.442695
        %v2588 = vpow.pop %v2587
        %v2589 = vmul.f32 %v2187, 1.442695
        %v2590 = vpow.pop %v2589
        %v2591 = vmul.f32 %v2188, 1.442695
        %v2592 = vpow.pop %v2591
        %v2593 = vmul.f32 %v2189, 1.442695
        %v2594 = vpow.pop %v2593
        %v2595 = vmul.f32 %v2190, 1.442695
        %v2596 = vpow.pop %v2595
        %v2597 = vmul.f32 %v2191, 1.442695
        %v2598 = vpow.pop %v2597
        %v2599 = vmul.f32 %v2192, 1.442695
        %v2600 = vpow.pop %v2599
        %v2601 = vmul.f32 %v2193, 1.442695
        %v2602 = vpow.pop %v2601
        %v2603 = vmul.f32 %v2194, 1.442695
        %v2604 = vpow.pop %v2603
        %v2605 = vmul.f32 %v2195, 1.442695
        %v2606 = vpow.pop %v2605
        %v2607 = vmul.f32 %v2196, 1.442695
        %v2608 = vpow.pop %v2607
        %v2609 = vmul.f32 %v2197, 1.442695
        %v2610 = vpow.pop %v2609
        %v2611 = vmul.f32 %v2198, 1.442695
        %v2612 = vpow.pop %v2611
        %v2613 = vmul.f32 %v2199, 1.442695
        %v2614 = vpow.pop %v2613
        %v2615 = vmul.f32 %v2200, 1.442695
        %v2616 = vpow.pop %v2615
        %v2617 = vmul.f32 %v2201, 1.442695
        %v2618 = vpow.pop %v2617
        %v2619 = vmul.f32 %v2202, 1.442695
        %v2620 = vpow.pop %v2619
        %v2621 = vmul.f32 %v2203, 1.442695
        %v2622 = vpow.pop %v2621
        %v2623 = vmul.f32 %v2204, 1.442695
        %v2624 = vpow.pop %v2623
        %v2625 = vmul.f32 %v2205, 1.442695
        %v2626 = vpow.pop %v2625
        %v2627 = vmul.f32 %v2206, 1.442695
        %v2628 = vpow.pop %v2627
        %v2629 = vmul.f32 %v2207, 1.442695
        %v2630 = vpow.pop %v2629
        %v2631 = vmul.f32 %v2208, 1.442695
        %v2632 = vpow.pop %v2631
        %v2633 = vmul.f32 %v2209, 1.442695
        %v2634 = vpow.pop %v2633
        %v2635 = vmul.f32 %v2210, 1.442695
        %v2636 = vpow.pop %v2635
        %v2637 = vmul.f32 %v2211, 1.442695
        %v2638 = vpow.pop %v2637
        %v2639 = vmul.f32 %v2212, 1.442695
        %v2640 = vpow.pop %v2639
        %v2641 = vmul.f32 %v2213, 1.442695
        %v2642 = vpow.pop %v2641
        %v2643 = vmul.f32 %v2214, 1.442695
        %v2644 = vpow.pop %v2643
        %v2645 = vmul.f32 %v2215, 1.442695
        %v2646 = vpow.pop %v2645
        %v2647 = vmul.f32 %v2216, 1.442695
        %v2648 = vpow.pop %v2647
        %v2649 = vmul.f32 %v2217, 1.442695
        %v2650 = vpow.pop %v2649
        %v2651 = vmul.f32 %v2218, 1.442695
        %v2652 = vpow.pop %v2651
        %v2653 = vmul.f32 %v2219, 1.442695
        %v2654 = vpow.pop %v2653
        %v2655 = vmul.f32 %v2220, 1.442695
        %v2656 = vpow.pop %v2655
        %v2657 = vmul.f32 %v2221, 1.442695
        %v2658 = vpow.pop %v2657
        %v2659 = vmul.f32 %v2222, 1.442695
        %v2660 = vpow.pop %v2659
        %v2661 = vmul.f32 %v2223, 1.442695
        %v2662 = vpow.pop %v2661
        %v2663 = vmul.f32 %v2224, 1.442695
        %v2664 = vpow.pop %v2663
        %v2665 = vmul.f32 %v2225, 1.442695
        %v2666 = vpow.pop %v2665
        %v2667 = vmul.f32 %v2226, 1.442695
        %v2668 = vpow.pop %v2667
        %v2669 = vmul.f32 %v2227, 1.442695
        %v2670 = vpow.pop %v2669
        %v2671 = vmul.f32 %v2228, 1.442695
        %v2672 = vpow.pop %v2671
        %v2673 = vmul.f32 %v2229, 1.442695
        %v2674 = vpow.pop %v2673
        %v2675 = vmul.f32 %v2230, 1.442695
        %v2676 = vpow.pop %v2675
        %v2677 = vmul.f32 %v2231, 1.442695
        %v2678 = vpow.pop %v2677
        %v2679 = vmul.f32 %v2232, 1.442695
        %v2680 = vpow.pop %v2679
        %v2681 = vmul.f32 %v2233, 1.442695
        %v2682 = vpow.pop %v2681
        %v2683 = vmul.f32 %v2234, 1.442695
        %v2684 = vpow.pop %v2683
        %v2685 = vmul.f32 %v2235, 1.442695
        %v2686 = vpow.pop %v2685
        %v2687 = vmul.f32 %v2236, 1.442695
        %v2688 = vpow.pop %v2687
        %v2689 = vmul.f32 %v2237, 1.442695
        %v2690 = vpow.pop %v2689
        %v2691 = vmul.f32 %v2238, 1.442695
        %v2692 = vpow.pop %v2691
        %v2693 = vmul.f32 %v2239, 1.442695
        %v2694 = vpow.pop %v2693
        %v2695 = vmul.f32 %v2240, 1.442695
        %v2696 = vpow.pop %v2695
        %v2697 = vmul.f32 %v2241, 1.442695
        %v2698 = vpow.pop %v2697
        %v2699 = vmul.f32 %v2242, 1.442695
        %v2700 = vpow.pop %v2699
        %v2701 = vmul.f32 %v2243, 1.442695
        %v2702 = vpow.pop %v2701
        %v2703 = vmul.f32 %v2244, 1.442695
        %v2704 = vpow.pop %v2703
        %v2705 = vmul.f32 %v2245, 1.442695
        %v2706 = vpow.pop %v2705
        %v2707 = vmul.f32 %v2246, 1.442695
        %v2708 = vpow.pop %v2707
        %v2709 = vmul.f32 %v2247, 1.442695
        %v2710 = vpow.pop %v2709
        %v2711 = vmul.f32 %v2248, 1.442695
        %v2712 = vpow.pop %v2711
        %v2713 = vmul.f32 %v2249, 1.442695
        %v2714 = vpow.pop %v2713
        %v2715 = vmul.f32 %v2250, 1.442695
        %v2716 = vpow.pop %v2715
        %v2717 = vmul.f32 %v2251, 1.442695
        %v2718 = vpow.pop %v2717
        %v2719 = vmul.f32 %v2252, 1.442695
        %v2720 = vpow.pop %v2719
        %v2721 = vmul.f32 %v2253, 1.442695
        %v2722 = vpow.pop %v2721
        %v2723 = vmul.f32 %v2254, 1.442695
        %v2724 = vpow.pop %v2723
        %v2725 = vmul.f32 %v2255, 1.442695
        %v2726 = vpow.pop %v2725
        %v2727 = vmul.f32 %v2256, 1.442695
        %v2728 = vpow.pop %v2727
        %v2729 = vmul.f32 %v2257, 1.442695
        %v2730 = vpow.pop %v2729
        %v2731 = vmul.f32 %v2258, 1.442695
        %v2732 = vpow.pop %v2731
        %v2733 = vmul.f32 %v2259, 1.442695
        %v2734 = vpow.pop %v2733
        %v2735 = vmul.f32 %v2260, 1.442695
        %v2736 = vpow.pop %v2735
        %v2737 = vmul.f32 %v2261, 1.442695
        %v2738 = vpow.pop %v2737
        %v2739 = vmul.f32 %v2262, 1.442695
        %v2740 = vpow.pop %v2739
        %v2741 = vmul.f32 %v2263, 1.442695
        %v2742 = vpow.pop %v2741
        %v2743 = vmul.f32 %v2264, 1.442695
        %v2744 = vpow.pop %v2743
        %v2745 = vmul.f32 %v2265, 1.442695
        %v2746 = vpow.pop %v2745
        %v2747 = vmul.f32 %v2266, 1.442695
        %v2748 = vpow.pop %v2747
        %v2749 = vmul.f32 %v2267, 1.442695
        %v2750 = vpow.pop %v2749
        %v2751 = vmul.f32 %v2268, 1.442695
        %v2752 = vpow.pop %v2751
        %v2753 = vmul.f32 %v2269, 1.442695
        %v2754 = vpow.pop %v2753
        %v2755 = vmul.f32 %v2270, 1.442695
        %v2756 = vpow.pop %v2755
        %v2757 = vmul.f32 %v2271, 1.442695
        %v2758 = vpow.pop %v2757
        %v2759 = vmul.f32 %v2272, 1.442695
        %v2760 = vpow.pop %v2759
        %v2761 = vmul.f32 %v2273, 1.442695
        %v2762 = vpow.pop %v2761
        %v2763 = vmul.f32 %v2274, 1.442695
        %v2764 = vpow.pop %v2763
        %v2765 = vmul.f32 %v2275, 1.442695
        %v2766 = vpow.pop %v2765
        %v2767 = vmul.f32 %v2276, 1.442695
        %v2768 = vpow.pop %v2767
        %v2769 = vmul.f32 %v2277, 1.442695
        %v2770 = vpow.pop %v2769
        %v2771 = vmul.f32 %v2278, 1.442695
        %v2772 = vpow.pop %v2771
        %v2773 = vmul.f32 %v2279, 1.442695
        %v2774 = vpow.pop %v2773
        %v2775 = vmul.f32 %v2280, 1.442695
        %v2776 = vpow.pop %v2775
        %v2777 = vmul.f32 %v2281, 1.442695
        %v2778 = vpow.pop %v2777
        %v2779 = vmul.f32 %v2282, 1.442695
        %v2780 = vpow.pop %v2779
        %v2781 = vmul.f32 %v2283, 1.442695
        %v2782 = vpow.pop %v2781
        %v2783 = vmul.f32 %v2284, 1.442695
        %v2784 = vpow.pop %v2783
        %v2785 = vmul.f32 %v2285, 1.442695
        %v2786 = vpow.pop %v2785
        %v2787 = vmul.f32 %v2286, 1.442695
        %v2788 = vpow.pop %v2787
        %v2789 = vmul.f32 %v2287, 1.442695
        %v2790 = vpow.pop %v2789
        %v2791 = vmul.f32 %v2288, 1.442695
        %v2792 = vpow.pop %v2791
        %v2793 = vmul.f32 %v2289, 1.442695
        %v2794 = vpow.pop %v2793
        %v2795 = vmul.f32 %v2290, 1.442695
        %v2796 = vpow.pop %v2795
        %v2797 = vmul.f32 %v2291, 1.442695
        %v2798 = vpow.pop %v2797
        %v2799 = vmul.f32 %v2292, 1.442695
        %v2800 = vpow.pop %v2799
        %v2801 = vmul.f32 %v2293, 1.442695
        %v2802 = vpow.pop %v2801
        %v2803 = vmul.f32 %v2294, 1.442695
        %v2804 = vpow.pop %v2803
        %v2805 = vmul.f32 %v2295, 1.442695
        %v2806 = vpow.pop %v2805
        %v2807 = vmul.f32 %v2296, 1.442695
        %v2808 = vpow.pop %v2807
        %v2809 = vmul.f32 %v2297, 1.442695
        %v2810 = vpow.pop %v2809
        %v2811 = vmul.f32 %v2298, 1.442695
        %v2812 = vpow.pop %v2811
        %v2813 = vmul.f32 %v2299, 1.442695
        %v2814 = vpow.pop %v2813
        %v2815 = vmul.f32 %v2300, 1.442695
        %v2816 = vpow.pop %v2815
        %v2817 = vmul.f32 %v2301, 1.442695
        %v2818 = vpow.pop %v2817
        %v2819 = vmul.f32 %v2302, 1.442695
        %v2820 = vpow.pop %v2819
        %v2821 = vmul.f32 %v2303, 1.442695
        %v2822 = vpow.pop %v2821
        %v2823 = vmul.f32 %v2304, 1.442695
        %v2824 = vpow.pop %v2823
        %v2825 = vmul.f32 %v2305, 1.442695
        %v2826 = vpow.pop %v2825
        %v2827 = vmul.f32 %v2306, 1.442695
        %v2828 = vpow.pop %v2827
        %v2829 = vmul.f32 %v2307, 1.442695
        %v2830 = vpow.pop %v2829
        %v2831 = vmul.f32 %v2308, 1.442695
        %v2832 = vpow.pop %v2831
        %v2833 = vmul.f32 %v2309, 1.442695
        %v2834 = vpow.pop %v2833
        %v2835 = vmul.f32 %v2310, 1.442695
        %v2836 = vpow.pop %v2835
        %v2837 = vmul.f32 %v2311, 1.442695
        %v2838 = vpow.pop %v2837
        %v2839 = vmul.f32 %v2312, 1.442695
        %v2840 = vpow.pop %v2839
        %v2841 = vmul.f32 %v2313, 1.442695
        %v2842 = vpow.pop %v2841
        %v2843 = vmul.f32 %v2314, 1.442695
        %v2844 = vpow.pop %v2843
        %v2845 = vmul.f32 %v2315, 1.442695
        %v2846 = vpow.pop %v2845
        %v2847 = vmul.f32 %v2316, 1.442695
        %v2848 = vpow.pop %v2847
        %v2849 = vmul.f32 %v2317, 1.442695
        %v2850 = vpow.pop %v2849
        %v2851 = vmul.f32 %v2318, 1.442695
        %v2852 = vpow.pop %v2851
        %v2853 = vmul.f32 %v2319, 1.442695
        %v2854 = vpow.pop %v2853
        %v2855 = vmul.f32 %v2320, 1.442695
        %v2856 = vpow.pop %v2855
        %v2857 = vmul.f32 %v2321, 1.442695
        %v2858 = vpow.pop %v2857
        %v2859 = vmul.f32 %v2322, 1.442695
        %v2860 = vpow.pop %v2859
        %v2861 = vmul.f32 %v2323, 1.442695
        %v2862 = vpow.pop %v2861
        %v2863 = vmul.f32 %v2324, 1.442695
        %v2864 = vpow.pop %v2863
        %v2865 = vmul.f32 %v2325, 1.442695
        %v2866 = vpow.pop %v2865
        %v2867 = vmul.f32 %v2326, 1.442695
        %v2868 = vpow.pop %v2867
        %v2869 = vmul.f32 %v2327, 1.442695
        %v2870 = vpow.pop %v2869
        %v2871 = vmul.f32 %v2328, 1.442695
        %v2872 = vpow.pop %v2871
        %v2873 = vmul.f32 %v2329, 1.442695
        %v2874 = vpow.pop %v2873
        %v2875 = vmul.f32 %v2330, 1.442695
        %v2876 = vpow.pop %v2875
        %v2877 = vmul.f32 %v2331, 1.442695
        %v2878 = vpow.pop %v2877
        %v2879 = vmul.f32 %v2332, 1.442695
        %v2880 = vpow.pop %v2879
        %v2881 = vmul.f32 %v2333, 1.442695
        %v2882 = vpow.pop %v2881
        %v2883 = vmul.f32 %v2334, 1.442695
        %v2884 = vpow.pop %v2883
        %v2885 = vmul.f32 %v2335, 1.442695
        %v2886 = vpow.pop %v2885
        %v2887 = vmul.f32 %v2336, 1.442695
        %v2888 = vpow.pop %v2887
        %v2889 = vmul.f32 %v2337, 1.442695
        %v2890 = vpow.pop %v2889
        %v2891 = vmul.f32 %v2338, 1.442695
        %v2892 = vpow.pop %v2891
        %v2893 = vmul.f32 %v2339, 1.442695
        %v2894 = vpow.pop %v2893
        %v2895 = vmul.f32 %v2340, 1.442695
        %v2896 = vpow.pop %v2895
        %v2897 = vmul.f32 %v2341, 1.442695
        %v2898 = vpow.pop %v2897
        %v2899 = vmul.f32 %v2342, 1.442695
        %v2900 = vpow.pop %v2899
        %v2901 = vmul.f32 %v2343, 1.442695
        %v2902 = vpow.pop %v2901
        %v2903 = vmul.f32 %v2344, 1.442695
        %v2904 = vpow.pop %v2903
        %v2905 = vmul.f32 %v2345, 1.442695
        %v2906 = vpow.pop %v2905
        %v2907 = vmul.f32 %v2346, 1.442695
        %v2908 = vpow.pop %v2907
        %v2909 = vmul.f32 %v2347, 1.442695
        %v2910 = vpow.pop %v2909
        %v2911 = vmul.f32 %v2348, 1.442695
        %v2912 = vpow.pop %v2911
        %v2913 = vmul.f32 %v2349, 1.442695
        %v2914 = vpow.pop %v2913
        %v2915 = vmul.f32 %v2350, 1.442695
        %v2916 = vpow.pop %v2915
        %v2917 = vmul.f32 %v2351, 1.442695
        %v2918 = vpow.pop %v2917
        %v2919 = vmul.f32 %v2352, 1.442695
        %v2920 = vpow.pop %v2919
        %v2921 = vmul.f32 %v2353, 1.442695
        %v2922 = vpow.pop %v2921
        %v2923 = vmul.f32 %v2354, 1.442695
        %v2924 = vpow.pop %v2923
        %v2925 = vmul.f32 %v2355, 1.442695
        %v2926 = vpow.pop %v2925
        %v2927 = vmul.f32 %v2356, 1.442695
        %v2928 = vpow.pop %v2927
        %v2929 = vmul.f32 %v2357, 1.442695
        %v2930 = vpow.pop %v2929
        %v2931 = vmul.f32 %v2358, 1.442695
        %v2932 = vpow.pop %v2931
        %v2933 = vmul.f32 %v2359, 1.442695
        %v2934 = vpow.pop %v2933
        %v2935 = vmul.f32 %v2360, 1.442695
        %v2936 = vpow.pop %v2935
        %v2937 = vmul.f32 %v2361, 1.442695
        %v2938 = vpow.pop %v2937
        %v2939 = vmul.f32 %v2362, 1.442695
        %v2940 = vpow.pop %v2939
        %v2941 = vmul.f32 %v2363, 1.442695
        %v2942 = vpow.pop %v2941
        %v2943 = vmul.f32 %v2364, 1.442695
        %v2944 = vpow.pop %v2943
        %v2945 = vmul.f32 %v2365, 1.442695
        %v2946 = vpow.pop %v2945
        %v2947 = vmul.f32 %v2366, 1.442695
        %v2948 = vpow.pop %v2947
        %v2949 = vmul.f32 %v2367, 1.442695
        %v2950 = vpow.pop %v2949
        %v2951 = vmul.f32 %v2368, 1.442695
        %v2952 = vpow.pop %v2951
        %v2953 = vmul.f32 %v2369, 1.442695
        %v2954 = vpow.pop %v2953
        %v2955 = vmul.f32 %v2370, 1.442695
        %v2956 = vpow.pop %v2955
        %v2957 = vmul.f32 %v2371, 1.442695
        %v2958 = vpow.pop %v2957
        %v2959 = vmul.f32 %v2372, 1.442695
        %v2960 = vpow.pop %v2959
        %v2961 = vmul.f32 %v2373, 1.442695
        %v2962 = vpow.pop %v2961
        %v2963 = vmul.f32 %v2374, 1.442695
        %v2964 = vpow.pop %v2963
        %v2965 = vmul.f32 %v2375, 1.442695
        %v2966 = vpow.pop %v2965
        %v2967 = vmul.f32 %v2376, 1.442695
        %v2968 = vpow.pop %v2967
        %v2969 = vmul.f32 %v2377, 1.442695
        %v2970 = vpow.pop %v2969
        %v2971 = vmul.f32 %v2378, 1.442695
        %v2972 = vpow.pop %v2971
        %v2973 = vmul.f32 %v2379, 1.442695
        %v2974 = vpow.pop %v2973
        %v2975 = vmul.f32 %v2380, 1.442695
        %v2976 = vpow.pop %v2975
        %v2977 = vmul.f32 %v2381, 1.442695
        %v2978 = vpow.pop %v2977
        %v2979 = vmul.f32 %v2382, 1.442695
        %v2980 = vpow.pop %v2979
        %v2981 = vmul.f32 %v2383, 1.442695
        %v2982 = vpow.pop %v2981
        %v2983 = vmul.f32 %v2384, 1.442695
        %v2984 = vpow.pop %v2983
        %v2985 = vmul.f32 %v2385, 1.442695
        %v2986 = vpow.pop %v2985
        %v2987 = vmul.f32 %v2386, 1.442695
        %v2988 = vpow.pop %v2987
        %v2989 = vmul.f32 %v2387, 1.442695
        %v2990 = vpow.pop %v2989
        %v2991 = vmul.f32 %v2388, 1.442695
        %v2992 = vpow.pop %v2991
        %v2993 = vmul.f32 %v2389, 1.442695
        %v2994 = vpow.pop %v2993
        %v2995 = vmul.f32 %v2390, 1.442695
        %v2996 = vpow.pop %v2995
        %v2997 = vmul.f32 %v2391, 1.442695
        %v2998 = vpow.pop %v2997
        %v2999 = vmul.f32 %v2392, 1.442695
        %v3000 = vpow.pop %v2999
        %v3001 = vmul.f32 %v2393, 1.442695
        %v3002 = vpow.pop %v3001
        %v3003 = vmul.f32 %v2394, 1.442695
        %v3004 = vpow.pop %v3003
        %v3005 = vmul.f32 %v2395, 1.442695
        %v3006 = vpow.pop %v3005
        %v3007 = vmul.f32 %v2396, 1.442695
        %v3008 = vpow.pop %v3007
        %v3009 = vmul.f32 %v2397, 1.442695
        %v3010 = vpow.pop %v3009
        %v3011 = vmul.f32 %v2398, 1.442695
        %v3012 = vpow.pop %v3011
        %v3013 = vmul.f32 %v2399, 1.442695
        %v3014 = vpow.pop %v3013
        %v3015 = vmul.f32 %v2400, 1.442695
        %v3016 = vpow.pop %v3015
        %v3017 = vmul.f32 %v2401, 1.442695
        %v3018 = vpow.pop %v3017
        %v3019 = vmul.f32 %v2402, 1.442695
        %v3020 = vpow.pop %v3019
        %v3021 = vmul.f32 %v2403, 1.442695
        %v3022 = vpow.pop %v3021
        %v3023 = vmul.f32 %v2404, 1.442695
        %v3024 = vpow.pop %v3023
        %v3025 = vmul.f32 %v2405, 1.442695
        %v3026 = vpow.pop %v3025
        %v3027 = vmul.f32 %v2406, 1.442695
        %v3028 = vpow.pop %v3027
        %v3029 = vmul.f32 %v2407, 1.442695
        %v3030 = vpow.pop %v3029
        %v3031 = vmul.f32 %v2408, 1.442695
        %v3032 = vpow.pop %v3031
        %v3033 = vmul.f32 %v2409, 1.442695
        %v3034 = vpow.pop %v3033
        %v3035 = vmul.f32 %v2410, 1.442695
        %v3036 = vpow.pop %v3035
        %v3037 = vmul.f32 %v2411, 1.442695
        %v3038 = vpow.pop %v3037
        %v3039 = vmul.f32 %v2412, 1.442695
        %v3040 = vpow.pop %v3039
        %v3041 = vmul.f32 %v2413, 1.442695
        %v3042 = vpow.pop %v3041
        %v3043 = vmul.f32 %v2414, 1.442695
        %v3044 = vpow.pop %v3043
        %v3045 = vmul.f32 %v2415, 1.442695
        %v3046 = vpow.pop %v3045
        %v3047 = vmul.f32 %v2416, 1.442695
        %v3048 = vpow.pop %v3047
        %v3049 = vmul.f32 %v2417, 1.442695
        %v3050 = vpow.pop %v3049
        %v3051 = vmul.f32 %v2418, 1.442695
        %v3052 = vpow.pop %v3051
        %v3053 = vmul.f32 %v2419, 1.442695
        %v3054 = vpow.pop %v3053
        %v3055 = vmul.f32 %v2420, 1.442695
        %v3056 = vpow.pop %v3055
        %v3057 = vmul.f32 %v2421, 1.442695
        %v3058 = vpow.pop %v3057
        %v3059 = vmul.f32 %v2422, 1.442695
        %v3060 = vpow.pop %v3059
        %v3061 = vmul.f32 %v2423, 1.442695
        %v3062 = vpow.pop %v3061
        %v3063 = vmul.f32 %v2424, 1.442695
        %v3064 = vpow.pop %v3063
        %v3065 = vadd.f32 %v2426, 1.0
        %v3066 = vadd.f32 %v2428, 1.0
        %v3067 = vadd.f32 %v2430, 1.0
        %v3068 = vadd.f32 %v2432, 1.0
        %v3069 = vadd.f32 %v2434, 1.0
        %v3070 = vadd.f32 %v2436, 1.0
        %v3071 = vadd.f32 %v2438, 1.0
        %v3072 = vadd.f32 %v2440, 1.0
        %v3073 = vadd.f32 %v2442, 1.0
        %v3074 = vadd.f32 %v2444, 1.0
        %v3075 = vadd.f32 %v2446, 1.0
        %v3076 = vadd.f32 %v2448, 1.0
        %v3077 = vadd.f32 %v2450, 1.0
        %v3078 = vadd.f32 %v2452, 1.0
        %v3079 = vadd.f32 %v2454, 1.0
        %v3080 = vadd.f32 %v2456, 1.0
        %v3081 = vadd.f32 %v2458, 1.0
        %v3082 = vadd.f32 %v2460, 1.0
        %v3083 = vadd.f32 %v2462, 1.0
        %v3084 = vadd.f32 %v2464, 1.0
        %v3085 = vadd.f32 %v2466, 1.0
        %v3086 = vadd.f32 %v2468, 1.0
        %v3087 = vadd.f32 %v2470, 1.0
        %v3088 = vadd.f32 %v2472, 1.0
        %v3089 = vadd.f32 %v2474, 1.0
        %v3090 = vadd.f32 %v2476, 1.0
        %v3091 = vadd.f32 %v2478, 1.0
        %v3092 = vadd.f32 %v2480, 1.0
        %v3093 = vadd.f32 %v2482, 1.0
        %v3094 = vadd.f32 %v2484, 1.0
        %v3095 = vadd.f32 %v2486, 1.0
        %v3096 = vadd.f32 %v2488, 1.0
        %v3097 = vadd.f32 %v2490, 1.0
        %v3098 = vadd.f32 %v2492, 1.0
        %v3099 = vadd.f32 %v2494, 1.0
        %v3100 = vadd.f32 %v2496, 1.0
        %v3101 = vadd.f32 %v2498, 1.0
        %v3102 = vadd.f32 %v2500, 1.0
        %v3103 = vadd.f32 %v2502, 1.0
        %v3104 = vadd.f32 %v2504, 1.0
        %v3105 = vadd.f32 %v2506, 1.0
        %v3106 = vadd.f32 %v2508, 1.0
        %v3107 = vadd.f32 %v2510, 1.0
        %v3108 = vadd.f32 %v2512, 1.0
        %v3109 = vadd.f32 %v2514, 1.0
        %v3110 = vadd.f32 %v2516, 1.0
        %v3111 = vadd.f32 %v2518, 1.0
        %v3112 = vadd.f32 %v2520, 1.0
        %v3113 = vadd.f32 %v2522, 1.0
        %v3114 = vadd.f32 %v2524, 1.0
        %v3115 = vadd.f32 %v2526, 1.0
        %v3116 = vadd.f32 %v2528, 1.0
        %v3117 = vadd.f32 %v2530, 1.0
        %v3118 = vadd.f32 %v2532, 1.0
        %v3119 = vadd.f32 %v2534, 1.0
        %v3120 = vadd.f32 %v2536, 1.0
        %v3121 = vadd.f32 %v2538, 1.0
        %v3122 = vadd.f32 %v2540, 1.0
        %v3123 = vadd.f32 %v2542, 1.0
        %v3124 = vadd.f32 %v2544, 1.0
        %v3125 = vadd.f32 %v2546, 1.0
        %v3126 = vadd.f32 %v2548, 1.0
        %v3127 = vadd.f32 %v2550, 1.0
        %v3128 = vadd.f32 %v2552, 1.0
        %v3129 = vadd.f32 %v2554, 1.0
        %v3130 = vadd.f32 %v2556, 1.0
        %v3131 = vadd.f32 %v2558, 1.0
        %v3132 = vadd.f32 %v2560, 1.0
        %v3133 = vadd.f32 %v2562, 1.0
        %v3134 = vadd.f32 %v2564, 1.0
        %v3135 = vadd.f32 %v2566, 1.0
        %v3136 = vadd.f32 %v2568, 1.0
        %v3137 = vadd.f32 %v2570, 1.0
        %v3138 = vadd.f32 %v2572, 1.0
        %v3139 = vadd.f32 %v2574, 1.0
        %v3140 = vadd.f32 %v2576, 1.0
        %v3141 = vadd.f32 %v2578, 1.0
        %v3142 = vadd.f32 %v2580, 1.0
        %v3143 = vadd.f32 %v2582, 1.0
        %v3144 = vadd.f32 %v2584, 1.0
        %v3145 = vadd.f32 %v2586, 1.0
        %v3146 = vadd.f32 %v2588, 1.0
        %v3147 = vadd.f32 %v2590, 1.0
        %v3148 = vadd.f32 %v2592, 1.0
        %v3149 = vadd.f32 %v2594, 1.0
        %v3150 = vadd.f32 %v2596, 1.0
        %v3151 = vadd.f32 %v2598, 1.0
        %v3152 = vadd.f32 %v2600, 1.0
        %v3153 = vadd.f32 %v2602, 1.0
        %v3154 = vadd.f32 %v2604, 1.0
        %v3155 = vadd.f32 %v2606, 1.0
        %v3156 = vadd.f32 %v2608, 1.0
        %v3157 = vadd.f32 %v2610, 1.0
        %v3158 = vadd.f32 %v2612, 1.0
        %v3159 = vadd.f32 %v2614, 1.0
        %v3160 = vadd.f32 %v2616, 1.0
        %v3161 = vadd.f32 %v2618, 1.0
        %v3162 = vadd.f32 %v2620, 1.0
        %v3163 = vadd.f32 %v2622, 1.0
        %v3164 = vadd.f32 %v2624, 1.0
        %v3165 = vadd.f32 %v2626, 1.0
        %v3166 = vadd.f32 %v2628, 1.0
        %v3167 = vadd.f32 %v2630, 1.0
        %v3168 = vadd.f32 %v2632, 1.0
        %v3169 = vadd.f32 %v2634, 1.0
        %v3170 = vadd.f32 %v2636, 1.0
        %v3171 = vadd.f32 %v2638, 1.0
        %v3172 = vadd.f32 %v2640, 1.0
        %v3173 = vadd.f32 %v2642, 1.0
        %v3174 = vadd.f32 %v2644, 1.0
        %v3175 = vadd.f32 %v2646, 1.0
        %v3176 = vadd.f32 %v2648, 1.0
        %v3177 = vadd.f32 %v2650, 1.0
        %v3178 = vadd.f32 %v2652, 1.0
        %v3179 = vadd.f32 %v2654, 1.0
        %v3180 = vadd.f32 %v2656, 1.0
        %v3181 = vadd.f32 %v2658, 1.0
        %v3182 = vadd.f32 %v2660, 1.0
        %v3183 = vadd.f32 %v2662, 1.0
        %v3184 = vadd.f32 %v2664, 1.0
        %v3185 = vadd.f32 %v2666, 1.0
        %v3186 = vadd.f32 %v2668, 1.0
        %v3187 = vadd.f32 %v2670, 1.0
        %v3188 = vadd.f32 %v2672, 1.0
        %v3189 = vadd.f32 %v2674, 1.0
        %v3190 = vadd.f32 %v2676, 1.0
        %v3191 = vadd.f32 %v2678, 1.0
        %v3192 = vadd.f32 %v2680, 1.0
        %v3193 = vadd.f32 %v2682, 1.0
        %v3194 = vadd.f32 %v2684, 1.0
        %v3195 = vadd.f32 %v2686, 1.0
        %v3196 = vadd.f32 %v2688, 1.0
        %v3197 = vadd.f32 %v2690, 1.0
        %v3198 = vadd.f32 %v2692, 1.0
        %v3199 = vadd.f32 %v2694, 1.0
        %v3200 = vadd.f32 %v2696, 1.0
        %v3201 = vadd.f32 %v2698, 1.0
        %v3202 = vadd.f32 %v2700, 1.0
        %v3203 = vadd.f32 %v2702, 1.0
        %v3204 = vadd.f32 %v2704, 1.0
        %v3205 = vadd.f32 %v2706, 1.0
        %v3206 = vadd.f32 %v2708, 1.0
        %v3207 = vadd.f32 %v2710, 1.0
        %v3208 = vadd.f32 %v2712, 1.0
        %v3209 = vadd.f32 %v2714, 1.0
        %v3210 = vadd.f32 %v2716, 1.0
        %v3211 = vadd.f32 %v2718, 1.0
        %v3212 = vadd.f32 %v2720, 1.0
        %v3213 = vadd.f32 %v2722, 1.0
        %v3214 = vadd.f32 %v2724, 1.0
        %v3215 = vadd.f32 %v2726, 1.0
        %v3216 = vadd.f32 %v2728, 1.0
        %v3217 = vadd.f32 %v2730, 1.0
        %v3218 = vadd.f32 %v2732, 1.0
        %v3219 = vadd.f32 %v2734, 1.0
        %v3220 = vadd.f32 %v2736, 1.0
        %v3221 = vadd.f32 %v2738, 1.0
        %v3222 = vadd.f32 %v2740, 1.0
        %v3223 = vadd.f32 %v2742, 1.0
        %v3224 = vadd.f32 %v2744, 1.0
        %v3225 = vadd.f32 %v2746, 1.0
        %v3226 = vadd.f32 %v2748, 1.0
        %v3227 = vadd.f32 %v2750, 1.0
        %v3228 = vadd.f32 %v2752, 1.0
        %v3229 = vadd.f32 %v2754, 1.0
        %v3230 = vadd.f32 %v2756, 1.0
        %v3231 = vadd.f32 %v2758, 1.0
        %v3232 = vadd.f32 %v2760, 1.0
        %v3233 = vadd.f32 %v2762, 1.0
        %v3234 = vadd.f32 %v2764, 1.0
        %v3235 = vadd.f32 %v2766, 1.0
        %v3236 = vadd.f32 %v2768, 1.0
        %v3237 = vadd.f32 %v2770, 1.0
        %v3238 = vadd.f32 %v2772, 1.0
        %v3239 = vadd.f32 %v2774, 1.0
        %v3240 = vadd.f32 %v2776, 1.0
        %v3241 = vadd.f32 %v2778, 1.0
        %v3242 = vadd.f32 %v2780, 1.0
        %v3243 = vadd.f32 %v2782, 1.0
        %v3244 = vadd.f32 %v2784, 1.0
        %v3245 = vadd.f32 %v2786, 1.0
        %v3246 = vadd.f32 %v2788, 1.0
        %v3247 = vadd.f32 %v2790, 1.0
        %v3248 = vadd.f32 %v2792, 1.0
        %v3249 = vadd.f32 %v2794, 1.0
        %v3250 = vadd.f32 %v2796, 1.0
        %v3251 = vadd.f32 %v2798, 1.0
        %v3252 = vadd.f32 %v2800, 1.0
        %v3253 = vadd.f32 %v2802, 1.0
        %v3254 = vadd.f32 %v2804, 1.0
        %v3255 = vadd.f32 %v2806, 1.0
        %v3256 = vadd.f32 %v2808, 1.0
        %v3257 = vadd.f32 %v2810, 1.0
        %v3258 = vadd.f32 %v2812, 1.0
        %v3259 = vadd.f32 %v2814, 1.0
        %v3260 = vadd.f32 %v2816, 1.0
        %v3261 = vadd.f32 %v2818, 1.0
        %v3262 = vadd.f32 %v2820, 1.0
        %v3263 = vadd.f32 %v2822, 1.0
        %v3264 = vadd.f32 %v2824, 1.0
        %v3265 = vadd.f32 %v2826, 1.0
        %v3266 = vadd.f32 %v2828, 1.0
        %v3267 = vadd.f32 %v2830, 1.0
        %v3268 = vadd.f32 %v2832, 1.0
        %v3269 = vadd.f32 %v2834, 1.0
        %v3270 = vadd.f32 %v2836, 1.0
        %v3271 = vadd.f32 %v2838, 1.0
        %v3272 = vadd.f32 %v2840, 1.0
        %v3273 = vadd.f32 %v2842, 1.0
        %v3274 = vadd.f32 %v2844, 1.0
        %v3275 = vadd.f32 %v2846, 1.0
        %v3276 = vadd.f32 %v2848, 1.0
        %v3277 = vadd.f32 %v2850, 1.0
        %v3278 = vadd.f32 %v2852, 1.0
        %v3279 = vadd.f32 %v2854, 1.0
        %v3280 = vadd.f32 %v2856, 1.0
        %v3281 = vadd.f32 %v2858, 1.0
        %v3282 = vadd.f32 %v2860, 1.0
        %v3283 = vadd.f32 %v2862, 1.0
        %v3284 = vadd.f32 %v2864, 1.0
        %v3285 = vadd.f32 %v2866, 1.0
        %v3286 = vadd.f32 %v2868, 1.0
        %v3287 = vadd.f32 %v2870, 1.0
        %v3288 = vadd.f32 %v2872, 1.0
        %v3289 = vadd.f32 %v2874, 1.0
        %v3290 = vadd.f32 %v2876, 1.0
        %v3291 = vadd.f32 %v2878, 1.0
        %v3292 = vadd.f32 %v2880, 1.0
        %v3293 = vadd.f32 %v2882, 1.0
        %v3294 = vadd.f32 %v2884, 1.0
        %v3295 = vadd.f32 %v2886, 1.0
        %v3296 = vadd.f32 %v2888, 1.0
        %v3297 = vadd.f32 %v2890, 1.0
        %v3298 = vadd.f32 %v2892, 1.0
        %v3299 = vadd.f32 %v2894, 1.0
        %v3300 = vadd.f32 %v2896, 1.0
        %v3301 = vadd.f32 %v2898, 1.0
        %v3302 = vadd.f32 %v2900, 1.0
        %v3303 = vadd.f32 %v2902, 1.0
        %v3304 = vadd.f32 %v2904, 1.0
        %v3305 = vadd.f32 %v2906, 1.0
        %v3306 = vadd.f32 %v2908, 1.0
        %v3307 = vadd.f32 %v2910, 1.0
        %v3308 = vadd.f32 %v2912, 1.0
        %v3309 = vadd.f32 %v2914, 1.0
        %v3310 = vadd.f32 %v2916, 1.0
        %v3311 = vadd.f32 %v2918, 1.0
        %v3312 = vadd.f32 %v2920, 1.0
        %v3313 = vadd.f32 %v2922, 1.0
        %v3314 = vadd.f32 %v2924, 1.0
        %v3315 = vadd.f32 %v2926, 1.0
        %v3316 = vadd.f32 %v2928, 1.0
        %v3317 = vadd.f32 %v2930, 1.0
        %v3318 = vadd.f32 %v2932, 1.0
        %v3319 = vadd.f32 %v2934, 1.0
        %v3320 = vadd.f32 %v2936, 1.0
        %v3321 = vadd.f32 %v2938, 1.0
        %v3322 = vadd.f32 %v2940, 1.0
        %v3323 = vadd.f32 %v2942, 1.0
        %v3324 = vadd.f32 %v2944, 1.0
        %v3325 = vadd.f32 %v2946, 1.0
        %v3326 = vadd.f32 %v2948, 1.0
        %v3327 = vadd.f32 %v2950, 1.0
        %v3328 = vadd.f32 %v2952, 1.0
        %v3329 = vadd.f32 %v2954, 1.0
        %v3330 = vadd.f32 %v2956, 1.0
        %v3331 = vadd.f32 %v2958, 1.0
        %v3332 = vadd.f32 %v2960, 1.0
        %v3333 = vadd.f32 %v2962, 1.0
        %v3334 = vadd.f32 %v2964, 1.0
        %v3335 = vadd.f32 %v2966, 1.0
        %v3336 = vadd.f32 %v2968, 1.0
        %v3337 = vadd.f32 %v2970, 1.0
        %v3338 = vadd.f32 %v2972, 1.0
        %v3339 = vadd.f32 %v2974, 1.0
        %v3340 = vadd.f32 %v2976, 1.0
        %v3341 = vadd.f32 %v2978, 1.0
        %v3342 = vadd.f32 %v2980, 1.0
        %v3343 = vadd.f32 %v2982, 1.0
        %v3344 = vadd.f32 %v2984, 1.0
        %v3345 = vadd.f32 %v2986, 1.0
        %v3346 = vadd.f32 %v2988, 1.0
        %v3347 = vadd.f32 %v2990, 1.0
        %v3348 = vadd.f32 %v2992, 1.0
        %v3349 = vadd.f32 %v2994, 1.0
        %v3350 = vadd.f32 %v2996, 1.0
        %v3351 = vadd.f32 %v2998, 1.0
        %v3352 = vadd.f32 %v3000, 1.0
        %v3353 = vadd.f32 %v3002, 1.0
        %v3354 = vadd.f32 %v3004, 1.0
        %v3355 = vadd.f32 %v3006, 1.0
        %v3356 = vadd.f32 %v3008, 1.0
        %v3357 = vadd.f32 %v3010, 1.0
        %v3358 = vadd.f32 %v3012, 1.0
        %v3359 = vadd.f32 %v3014, 1.0
        %v3360 = vadd.f32 %v3016, 1.0
        %v3361 = vadd.f32 %v3018, 1.0
        %v3362 = vadd.f32 %v3020, 1.0
        %v3363 = vadd.f32 %v3022, 1.0
        %v3364 = vadd.f32 %v3024, 1.0
        %v3365 = vadd.f32 %v3026, 1.0
        %v3366 = vadd.f32 %v3028, 1.0
        %v3367 = vadd.f32 %v3030, 1.0
        %v3368 = vadd.f32 %v3032, 1.0
        %v3369 = vadd.f32 %v3034, 1.0
        %v3370 = vadd.f32 %v3036, 1.0
        %v3371 = vadd.f32 %v3038, 1.0
        %v3372 = vadd.f32 %v3040, 1.0
        %v3373 = vadd.f32 %v3042, 1.0
        %v3374 = vadd.f32 %v3044, 1.0
        %v3375 = vadd.f32 %v3046, 1.0
        %v3376 = vadd.f32 %v3048, 1.0
        %v3377 = vadd.f32 %v3050, 1.0
        %v3378 = vadd.f32 %v3052, 1.0
        %v3379 = vadd.f32 %v3054, 1.0
        %v3380 = vadd.f32 %v3056, 1.0
        %v3381 = vadd.f32 %v3058, 1.0
        %v3382 = vadd.f32 %v3060, 1.0
        %v3383 = vadd.f32 %v3062, 1.0
        %v3384 = vadd.f32 %v3064, 1.0
        %v3385 = vrcp.pop %v3065
        %v3386 = vrcp.pop %v3066
        %v3387 = vrcp.pop %v3067
        %v3388 = vrcp.pop %v3068
        %v3389 = vrcp.pop %v3069
        %v3390 = vrcp.pop %v3070
        %v3391 = vrcp.pop %v3071
        %v3392 = vrcp.pop %v3072
        %v3393 = vrcp.pop %v3073
        %v3394 = vrcp.pop %v3074
        %v3395 = vrcp.pop %v3075
        %v3396 = vrcp.pop %v3076
        %v3397 = vrcp.pop %v3077
        %v3398 = vrcp.pop %v3078
        %v3399 = vrcp.pop %v3079
        %v3400 = vrcp.pop %v3080
        %v3401 = vrcp.pop %v3081
        %v3402 = vrcp.pop %v3082
        %v3403 = vrcp.pop %v3083
        %v3404 = vrcp.pop %v3084
        %v3405 = vrcp.pop %v3085
        %v3406 = vrcp.pop %v3086
        %v3407 = vrcp.pop %v3087
        %v3408 = vrcp.pop %v3088
        %v3409 = vrcp.pop %v3089
        %v3410 = vrcp.pop %v3090
        %v3411 = vrcp.pop %v3091
        %v3412 = vrcp.pop %v3092
        %v3413 = vrcp.pop %v3093
        %v3414 = vrcp.pop %v3094
        %v3415 = vrcp.pop %v3095
        %v3416 = vrcp.pop %v3096
        %v3417 = vrcp.pop %v3097
        %v3418 = vrcp.pop %v3098
        %v3419 = vrcp.pop %v3099
        %v3420 = vrcp.pop %v3100
        %v3421 = vrcp.pop %v3101
        %v3422 = vrcp.pop %v3102
        %v3423 = vrcp.pop %v3103
        %v3424 = vrcp.pop %v3104
        %v3425 = vrcp.pop %v3105
        %v3426 = vrcp.pop %v3106
        %v3427 = vrcp.pop %v3107
        %v3428 = vrcp.pop %v3108
        %v3429 = vrcp.pop %v3109
        %v3430 = vrcp.pop %v3110
        %v3431 = vrcp.pop %v3111
        %v3432 = vrcp.pop %v3112
        %v3433 = vrcp.pop %v3113
        %v3434 = vrcp.pop %v3114
        %v3435 = vrcp.pop %v3115
        %v3436 = vrcp.pop %v3116
        %v3437 = vrcp.pop %v3117
        %v3438 = vrcp.pop %v3118
        %v3439 = vrcp.pop %v3119
        %v3440 = vrcp.pop %v3120
        %v3441 = vrcp.pop %v3121
        %v3442 = vrcp.pop %v3122
        %v3443 = vrcp.pop %v3123
        %v3444 = vrcp.pop %v3124
        %v3445 = vrcp.pop %v3125
        %v3446 = vrcp.pop %v3126
        %v3447 = vrcp.pop %v3127
        %v3448 = vrcp.pop %v3128
        %v3449 = vrcp.pop %v3129
        %v3450 = vrcp.pop %v3130
        %v3451 = vrcp.pop %v3131
        %v3452 = vrcp.pop %v3132
        %v3453 = vrcp.pop %v3133
        %v3454 = vrcp.pop %v3134
        %v3455 = vrcp.pop %v3135
        %v3456 = vrcp.pop %v3136
        %v3457 = vrcp.pop %v3137
        %v3458 = vrcp.pop %v3138
        %v3459 = vrcp.pop %v3139
        %v3460 = vrcp.pop %v3140
        %v3461 = vrcp.pop %v3141
        %v3462 = vrcp.pop %v3142
        %v3463 = vrcp.pop %v3143
        %v3464 = vrcp.pop %v3144
        %v3465 = vrcp.pop %v3145
        %v3466 = vrcp.pop %v3146
        %v3467 = vrcp.pop %v3147
        %v3468 = vrcp.pop %v3148
        %v3469 = vrcp.pop %v3149
        %v3470 = vrcp.pop %v3150
        %v3471 = vrcp.pop %v3151
        %v3472 = vrcp.pop %v3152
        %v3473 = vrcp.pop %v3153
        %v3474 = vrcp.pop %v3154
        %v3475 = vrcp.pop %v3155
        %v3476 = vrcp.pop %v3156
        %v3477 = vrcp.pop %v3157
        %v3478 = vrcp.pop %v3158
        %v3479 = vrcp.pop %v3159
        %v3480 = vrcp.pop %v3160
        %v3481 = vrcp.pop %v3161
        %v3482 = vrcp.pop %v3162
        %v3483 = vrcp.pop %v3163
        %v3484 = vrcp.pop %v3164
        %v3485 = vrcp.pop %v3165
        %v3486 = vrcp.pop %v3166
        %v3487 = vrcp.pop %v3167
        %v3488 = vrcp.pop %v3168
        %v3489 = vrcp.pop %v3169
        %v3490 = vrcp.pop %v3170
        %v3491 = vrcp.pop %v3171
        %v3492 = vrcp.pop %v3172
        %v3493 = vrcp.pop %v3173
        %v3494 = vrcp.pop %v3174
        %v3495 = vrcp.pop %v3175
        %v3496 = vrcp.pop %v3176
        %v3497 = vrcp.pop %v3177
        %v3498 = vrcp.pop %v3178
        %v3499 = vrcp.pop %v3179
        %v3500 = vrcp.pop %v3180
        %v3501 = vrcp.pop %v3181
        %v3502 = vrcp.pop %v3182
        %v3503 = vrcp.pop %v3183
        %v3504 = vrcp.pop %v3184
        %v3505 = vrcp.pop %v3185
        %v3506 = vrcp.pop %v3186
        %v3507 = vrcp.pop %v3187
        %v3508 = vrcp.pop %v3188
        %v3509 = vrcp.pop %v3189
        %v3510 = vrcp.pop %v3190
        %v3511 = vrcp.pop %v3191
        %v3512 = vrcp.pop %v3192
        %v3513 = vrcp.pop %v3193
        %v3514 = vrcp.pop %v3194
        %v3515 = vrcp.pop %v3195
        %v3516 = vrcp.pop %v3196
        %v3517 = vrcp.pop %v3197
        %v3518 = vrcp.pop %v3198
        %v3519 = vrcp.pop %v3199
        %v3520 = vrcp.pop %v3200
        %v3521 = vrcp.pop %v3201
        %v3522 = vrcp.pop %v3202
        %v3523 = vrcp.pop %v3203
        %v3524 = vrcp.pop %v3204
        %v3525 = vrcp.pop %v3205
        %v3526 = vrcp.pop %v3206
        %v3527 = vrcp.pop %v3207
        %v3528 = vrcp.pop %v3208
        %v3529 = vrcp.pop %v3209
        %v3530 = vrcp.pop %v3210
        %v3531 = vrcp.pop %v3211
        %v3532 = vrcp.pop %v3212
        %v3533 = vrcp.pop %v3213
        %v3534 = vrcp.pop %v3214
        %v3535 = vrcp.pop %v3215
        %v3536 = vrcp.pop %v3216
        %v3537 = vrcp.pop %v3217
        %v3538 = vrcp.pop %v3218
        %v3539 = vrcp.pop %v3219
        %v3540 = vrcp.pop %v3220
        %v3541 = vrcp.pop %v3221
        %v3542 = vrcp.pop %v3222
        %v3543 = vrcp.pop %v3223
        %v3544 = vrcp.pop %v3224
        %v3545 = vrcp.pop %v3225
        %v3546 = vrcp.pop %v3226
        %v3547 = vrcp.pop %v3227
        %v3548 = vrcp.pop %v3228
        %v3549 = vrcp.pop %v3229
        %v3550 = vrcp.pop %v3230
        %v3551 = vrcp.pop %v3231
        %v3552 = vrcp.pop %v3232
        %v3553 = vrcp.pop %v3233
        %v3554 = vrcp.pop %v3234
        %v3555 = vrcp.pop %v3235
        %v3556 = vrcp.pop %v3236
        %v3557 = vrcp.pop %v3237
        %v3558 = vrcp.pop %v3238
        %v3559 = vrcp.pop %v3239
        %v3560 = vrcp.pop %v3240
        %v3561 = vrcp.pop %v3241
        %v3562 = vrcp.pop %v3242
        %v3563 = vrcp.pop %v3243
        %v3564 = vrcp.pop %v3244
        %v3565 = vrcp.pop %v3245
        %v3566 = vrcp.pop %v3246
        %v3567 = vrcp.pop %v3247
        %v3568 = vrcp.pop %v3248
        %v3569 = vrcp.pop %v3249
        %v3570 = vrcp.pop %v3250
        %v3571 = vrcp.pop %v3251
        %v3572 = vrcp.pop %v3252
        %v3573 = vrcp.pop %v3253
        %v3574 = vrcp.pop %v3254
        %v3575 = vrcp.pop %v3255
        %v3576 = vrcp.pop %v3256
        %v3577 = vrcp.pop %v3257
        %v3578 = vrcp.pop %v3258
        %v3579 = vrcp.pop %v3259
        %v3580 = vrcp.pop %v3260
        %v3581 = vrcp.pop %v3261
        %v3582 = vrcp.pop %v3262
        %v3583 = vrcp.pop %v3263
        %v3584 = vrcp.pop %v3264
        %v3585 = vrcp.pop %v3265
        %v3586 = vrcp.pop %v3266
        %v3587 = vrcp.pop %v3267
        %v3588 = vrcp.pop %v3268
        %v3589 = vrcp.pop %v3269
        %v3590 = vrcp.pop %v3270
        %v3591 = vrcp.pop %v3271
        %v3592 = vrcp.pop %v3272
        %v3593 = vrcp.pop %v3273
        %v3594 = vrcp.pop %v3274
        %v3595 = vrcp.pop %v3275
        %v3596 = vrcp.pop %v3276
        %v3597 = vrcp.pop %v3277
        %v3598 = vrcp.pop %v3278
        %v3599 = vrcp.pop %v3279
        %v3600 = vrcp.pop %v3280
        %v3601 = vrcp.pop %v3281
        %v3602 = vrcp.pop %v3282
        %v3603 = vrcp.pop %v3283
        %v3604 = vrcp.pop %v3284
        %v3605 = vrcp.pop %v3285
        %v3606 = vrcp.pop %v3286
        %v3607 = vrcp.pop %v3287
        %v3608 = vrcp.pop %v3288
        %v3609 = vrcp.pop %v3289
        %v3610 = vrcp.pop %v3290
        %v3611 = vrcp.pop %v3291
        %v3612 = vrcp.pop %v3292
        %v3613 = vrcp.pop %v3293
        %v3614 = vrcp.pop %v3294
        %v3615 = vrcp.pop %v3295
        %v3616 = vrcp.pop %v3296
        %v3617 = vrcp.pop %v3297
        %v3618 = vrcp.pop %v3298
        %v3619 = vrcp.pop %v3299
        %v3620 = vrcp.pop %v3300
        %v3621 = vrcp.pop %v3301
        %v3622 = vrcp.pop %v3302
        %v3623 = vrcp.pop %v3303
        %v3624 = vrcp.pop %v3304
        %v3625 = vrcp.pop %v3305
        %v3626 = vrcp.pop %v3306
        %v3627 = vrcp.pop %v3307
        %v3628 = vrcp.pop %v3308
        %v3629 = vrcp.pop %v3309
        %v3630 = vrcp.pop %v3310
        %v3631 = vrcp.pop %v3311
        %v3632 = vrcp.pop %v3312
        %v3633 = vrcp.pop %v3313
        %v3634 = vrcp.pop %v3314
        %v3635 = vrcp.pop %v3315
        %v3636 = vrcp.pop %v3316
        %v3637 = vrcp.pop %v3317
        %v3638 = vrcp.pop %v3318
        %v3639 = vrcp.pop %v3319
        %v3640 = vrcp.pop %v3320
        %v3641 = vrcp.pop %v3321
        %v3642 = vrcp.pop %v3322
        %v3643 = vrcp.pop %v3323
        %v3644 = vrcp.pop %v3324
        %v3645 = vrcp.pop %v3325
        %v3646 = vrcp.pop %v3326
        %v3647 = vrcp.pop %v3327
        %v3648 = vrcp.pop %v3328
        %v3649 = vrcp.pop %v3329
        %v3650 = vrcp.pop %v3330
        %v3651 = vrcp.pop %v3331
        %v3652 = vrcp.pop %v3332
        %v3653 = vrcp.pop %v3333
        %v3654 = vrcp.pop %v3334
        %v3655 = vrcp.pop %v3335
        %v3656 = vrcp.pop %v3336
        %v3657 = vrcp.pop %v3337
        %v3658 = vrcp.pop %v3338
        %v3659 = vrcp.pop %v3339
        %v3660 = vrcp.pop %v3340
        %v3661 = vrcp.pop %v3341
        %v3662 = vrcp.pop %v3342
        %v3663 = vrcp.pop %v3343
        %v3664 = vrcp.pop %v3344
        %v3665 = vrcp.pop %v3345
        %v3666 = vrcp.pop %v3346
        %v3667 = vrcp.pop %v3347
        %v3668 = vrcp.pop %v3348
        %v3669 = vrcp.pop %v3349
        %v3670 = vrcp.pop %v3350
        %v3671 = vrcp.pop %v3351
        %v3672 = vrcp.pop %v3352
        %v3673 = vrcp.pop %v3353
        %v3674 = vrcp.pop %v3354
        %v3675 = vrcp.pop %v3355
        %v3676 = vrcp.pop %v3356
        %v3677 = vrcp.pop %v3357
        %v3678 = vrcp.pop %v3358
        %v3679 = vrcp.pop %v3359
        %v3680 = vrcp.pop %v3360
        %v3681 = vrcp.pop %v3361
        %v3682 = vrcp.pop %v3362
        %v3683 = vrcp.pop %v3363
        %v3684 = vrcp.pop %v3364
        %v3685 = vrcp.pop %v3365
        %v3686 = vrcp.pop %v3366
        %v3687 = vrcp.pop %v3367
        %v3688 = vrcp.pop %v3368
        %v3689 = vrcp.pop %v3369
        %v3690 = vrcp.pop %v3370
        %v3691 = vrcp.pop %v3371
        %v3692 = vrcp.pop %v3372
        %v3693 = vrcp.pop %v3373
        %v3694 = vrcp.pop %v3374
        %v3695 = vrcp.pop %v3375
        %v3696 = vrcp.pop %v3376
        %v3697 = vrcp.pop %v3377
        %v3698 = vrcp.pop %v3378
        %v3699 = vrcp.pop %v3379
        %v3700 = vrcp.pop %v3380
        %v3701 = vrcp.pop %v3381
        %v3702 = vrcp.pop %v3382
        %v3703 = vrcp.pop %v3383
        %v3704 = vrcp.pop %v3384
        %v3705 = vmul.f32 %v1225, %v3385
        %v3706 = vmul.f32 %v1314, %v3386
        %v3707 = vmul.f32 %v1403, %v3387
        %v3708 = vmul.f32 %v1492, %v3388
        %v3709 = vmul.f32 %v1581, %v3389
        %v3710 = vmul.f32 %v1670, %v3390
        %v3711 = vmul.f32 %v1759, %v3391
        %v3712 = vmul.f32 %v1848, %v3392
        %v3713 = vmul.f32 %v1937, %v3393
        %v3714 = vmul.f32 %v2026, %v3394
        %v3715 = vmul.f32 %v1227, %v3395
        %v3716 = vmul.f32 %v1316, %v3396
        %v3717 = vmul.f32 %v1405, %v3397
        %v3718 = vmul.f32 %v1494, %v3398
        %v3719 = vmul.f32 %v1583, %v3399
        %v3720 = vmul.f32 %v1672, %v3400
        %v3721 = vmul.f32 %v1761, %v3401
        %v3722 = vmul.f32 %v1850, %v3402
        %v3723 = vmul.f32 %v1939, %v3403
        %v3724 = vmul.f32 %v2028, %v3404
        %v3725 = vmul.f32 %v1230, %v3405
        %v3726 = vmul.f32 %v1319, %v3406
        %v3727 = vmul.f32 %v1408, %v3407
        %v3728 = vmul.f32 %v1497, %v3408
        %v3729 = vmul.f32 %v1586, %v3409
        %v3730 = vmul.f32 %v1675, %v3410
        %v3731 = vmul.f32 %v1764, %v3411
        %v3732 = vmul.f32 %v1853, %v3412
        %v3733 = vmul.f32 %v1942, %v3413
        %v3734 = vmul.f32 %v2031, %v3414
        %v3735 = vmul.f32 %v1232, %v3415
        %v3736 = vmul.f32 %v1321, %v3416
        %v3737 = vmul.f32 %v1410, %v3417
        %v3738 = vmul.f32 %v1499, %v3418
        %v3739 = vmul.f32 %v1588, %v3419
        %v3740 = vmul.f32 %v1677, %v3420
        %v3741 = vmul.f32 %v1766, %v3421
        %v3742 = vmul.f32 %v1855, %v3422
        %v3743 = vmul.f32 %v1944, %v3423
        %v3744 = vmul.f32 %v2033, %v3424
        %v3745 = vmul.f32 %v1235, %v3425
        %v3746 = vmul.f32 %v1324, %v3426
        %v3747 = vmul.f32 %v1413, %v3427
        %v3748 = vmul.f32 %v1502, %v3428
        %v3749 = vmul.f32 %v1591, %v3429
        %v3750 = vmul.f32 %v1680, %v3430
        %v3751 = vmul.f32 %v1769, %v3431
        %v3752 = vmul.f32 %v1858, %v3432
        %v3753 = vmul.f32 %v1947, %v3433
        %v3754 = vmul.f32 %v2036, %v3434
        %v3755 = vmul.f32 %v1237, %v3435
        %v3756 = vmul.f32 %v1326, %v3436
        %v3757 = vmul.f32 %v1415, %v3437
        %v3758 = vmul.f32 %v1504, %v3438
        %v3759 = vmul.f32 %v1593, %v3439
        %v3760 = vmul.f32 %v1682, %v3440
        %v3761 = vmul.f32 %v1771, %v3441
        %v3762 = vmul.f32 %v1860, %v3442
        %v3763 = vmul.f32 %v1949, %v3443
        %v3764 = vmul.f32 %v2038, %v3444
        %v3765 = vmul.f32 %v1240, %v3445
        %v3766 = vmul.f32 %v1329, %v3446
        %v3767 = vmul.f32 %v1418, %v3447
        %v3768 = vmul.f32 %v1507, %v3448
        %v3769 = vmul.f32 %v1596, %v3449
        %v3770 = vmul.f32 %v1685, %v3450
        %v3771 = vmul.f32 %v1774, %v3451
        %v3772 = vmul.f32 %v1863, %v3452
        %v3773 = vmul.f32 %v1952, %v3453
        %v3774 = vmul.f32 %v2041, %v3454
        %v3775 = vmul.f32 %v1242, %v3455
        %v3776 = vmul.f32 %v1331, %v3456
        %v3777 = vmul.f32 %v1420, %v3457
        %v3778 = vmul.f32 %v1509, %v3458
        %v3779 = vmul.f32 %v1598, %v3459
        %v3780 = vmul.f32 %v1687, %v3460
        %v3781 = vmul.f32 %v1776, %v3461
        %v3782 = vmul.f32 %v1865, %v3462
        %v3783 = vmul.f32 %v1954, %v3463
        %v3784 = vmul.f32 %v2043, %v3464
        %v3785 = vmul.f32 %v1245, %v3465
        %v3786 = vmul.f32 %v1334, %v3466
        %v3787 = vmul.f32 %v1423, %v3467
        %v3788 = vmul.f32 %v1512, %v3468
        %v3789 = vmul.f32 %v1601, %v3469
        %v3790 = vmul.f32 %v1690, %v3470
        %v3791 = vmul.f32 %v1779, %v3471
        %v3792 = vmul.f32 %v1868, %v3472
        %v3793 = vmul.f32 %v1957, %v3473
        %v3794 = vmul.f32 %v2046, %v3474
        %v3795 = vmul.f32 %v1247, %v3475
        %v3796 = vmul.f32 %v1336, %v3476
        %v3797 = vmul.f32 %v1425, %v3477
        %v3798 = vmul.f32 %v1514, %v3478
        %v3799 = vmul.f32 %v1603, %v3479
        %v3800 = vmul.f32 %v1692, %v3480
        %v3801 = vmul.f32 %v1781, %v3481
        %v3802 = vmul.f32 %v1870, %v3482
        %v3803 = vmul.f32 %v1959, %v3483
        %v3804 = vmul.f32 %v2048, %v3484
        %v3805 = vmul.f32 %v1250, %v3485
        %v3806 = vmul.f32 %v1339, %v3486
        %v3807 = vmul.f32 %v1428, %v3487
        %v3808 = vmul.f32 %v1517, %v3488
        %v3809 = vmul.f32 %v1606, %v3489
        %v3810 = vmul.f32 %v1695, %v3490
        %v3811 = vmul.f32 %v1784, %v3491
        %v3812 = vmul.f32 %v1873, %v3492
        %v3813 = vmul.f32 %v1962, %v3493
        %v3814 = vmul.f32 %v2051, %v3494
        %v3815 = vmul.f32 %v1252, %v3495
        %v3816 = vmul.f32 %v1341, %v3496
        %v3817 = vmul.f32 %v1430, %v3497
        %v3818 = vmul.f32 %v1519, %v3498
        %v3819 = vmul.f32 %v1608, %v3499
        %v3820 = vmul.f32 %v1697, %v3500
        %v3821 = vmul.f32 %v1786, %v3501
        %v3822 = vmul.f32 %v1875, %v3502
        %v3823 = vmul.f32 %v1964, %v3503
        %v3824 = vmul.f32 %v2053, %v3504
        %v3825 = vmul.f32 %v1255, %v3505
        %v3826 = vmul.f32 %v1344, %v3506
        %v3827 = vmul.f32 %v1433, %v3507
        %v3828 = vmul.f32 %v1522, %v3508
        %v3829 = vmul.f32 %v1611, %v3509
        %v3830 = vmul.f32 %v1700, %v3510
        %v3831 = vmul.f32 %v1789, %v3511
        %v3832 = vmul.f32 %v1878, %v3512
        %v3833 = vmul.f32 %v1967, %v3513
        %v3834 = vmul.f32 %v2056, %v3514
        %v3835 = vmul.f32 %v1257, %v3515
        %v3836 = vmul.f32 %v1346, %v3516
        %v3837 = vmul.f32 %v1435, %v3517
        %v3838 = vmul.f32 %v1524, %v3518
        %v3839 = vmul.f32 %v1613, %v3519
        %v3840 = vmul.f32 %v1702, %v3520
        %v3841 = vmul.f32 %v1791, %v3521
        %v3842 = vmul.f32 %v1880, %v3522
        %v3843 = vmul.f32 %v1969, %v3523
        %v3844 = vmul.f32 %v2058, %v3524
        %v3845 = vmul.f32 %v1260, %v3525
        %v3846 = vmul.f32 %v1349, %v3526
        %v3847 = vmul.f32 %v1438, %v3527
        %v3848 = vmul.f32 %v1527, %v3528
        %v3849 = vmul.f32 %v1616, %v3529
        %v3850 = vmul.f32 %v1705, %v3530
        %v3851 = vmul.f32 %v1794, %v3531
        %v3852 = vmul.f32 %v1883, %v3532
        %v3853 = vmul.f32 %v1972, %v3533
        %v3854 = vmul.f32 %v2061, %v3534
        %v3855 = vmul.f32 %v1262, %v3535
        %v3856 = vmul.f32 %v1351, %v3536
        %v3857 = vmul.f32 %v1440, %v3537
        %v3858 = vmul.f32 %v1529, %v3538
        %v3859 = vmul.f32 %v1618, %v3539
        %v3860 = vmul.f32 %v1707, %v3540
        %v3861 = vmul.f32 %v1796, %v3541
        %v3862 = vmul.f32 %v1885, %v3542
        %v3863 = vmul.f32 %v1974, %v3543
        %v3864 = vmul.f32 %v2063, %v3544
        %v3865 = vmul.f32 %v1265, %v3545
        %v3866 = vmul.f32 %v1354, %v3546
        %v3867 = vmul.f32 %v1443, %v3547
        %v3868 = vmul.f32 %v1532, %v3548
        %v3869 = vmul.f32 %v1621, %v3549
        %v3870 = vmul.f32 %v1710, %v3550
        %v3871 = vmul.f32 %v1799, %v3551
        %v3872 = vmul.f32 %v1888, %v3552
        %v3873 = vmul.f32 %v1977, %v3553
        %v3874 = vmul.f32 %v2066, %v3554
        %v3875 = vmul.f32 %v1267, %v3555
        %v3876 = vmul.f32 %v1356, %v3556
        %v3877 = vmul.f32 %v1445, %v3557
        %v3878 = vmul.f32 %v1534, %v3558
        %v3879 = vmul.f32 %v1623, %v3559
        %v3880 = vmul.f32 %v1712, %v3560
        %v3881 = vmul.f32 %v1801, %v3561
        %v3882 = vmul.f32 %v1890, %v3562
        %v3883 = vmul.f32 %v1979, %v3563
        %v3884 = vmul.f32 %v2068, %v3564
        %v3885 = vmul.f32 %v1270, %v3565
        %v3886 = vmul.f32 %v1359, %v3566
        %v3887 = vmul.f32 %v1448, %v3567
        %v3888 = vmul.f32 %v1537, %v3568
        %v3889 = vmul.f32 %v1626, %v3569
        %v3890 = vmul.f32 %v1715, %v3570
        %v3891 = vmul.f32 %v1804, %v3571
        %v3892 = vmul.f32 %v1893, %v3572
        %v3893 = vmul.f32 %v1982, %v3573
        %v3894 = vmul.f32 %v2071, %v3574
        %v3895 = vmul.f32 %v1272, %v3575
        %v3896 = vmul.f32 %v1361, %v3576
        %v3897 = vmul.f32 %v1450, %v3577
        %v3898 = vmul.f32 %v1539, %v3578
        %v3899 = vmul.f32 %v1628, %v3579
        %v3900 = vmul.f32 %v1717, %v3580
        %v3901 = vmul.f32 %v1806, %v3581
        %v3902 = vmul.f32 %v1895, %v3582
        %v3903 = vmul.f32 %v1984, %v3583
        %v3904 = vmul.f32 %v2073, %v3584
        %v3905 = vmul.f32 %v1275, %v3585
        %v3906 = vmul.f32 %v1364, %v3586
        %v3907 = vmul.f32 %v1453, %v3587
        %v3908 = vmul.f32 %v1542, %v3588
        %v3909 = vmul.f32 %v1631, %v3589
        %v3910 = vmul.f32 %v1720, %v3590
        %v3911 = vmul.f32 %v1809, %v3591
        %v3912 = vmul.f32 %v1898, %v3592
        %v3913 = vmul.f32 %v1987, %v3593
        %v3914 = vmul.f32 %v2076, %v3594
        %v3915 = vmul.f32 %v1277, %v3595
        %v3916 = vmul.f32 %v1366, %v3596
        %v3917 = vmul.f32 %v1455, %v3597
        %v3918 = vmul.f32 %v1544, %v3598
        %v3919 = vmul.f32 %v1633, %v3599
        %v3920 = vmul.f32 %v1722, %v3600
        %v3921 = vmul.f32 %v1811, %v3601
        %v3922 = vmul.f32 %v1900, %v3602
        %v3923 = vmul.f32 %v1989, %v3603
        %v3924 = vmul.f32 %v2078, %v3604
        %v3925 = vmul.f32 %v1280, %v3605
        %v3926 = vmul.f32 %v1369, %v3606
        %v3927 = vmul.f32 %v1458, %v3607
        %v3928 = vmul.f32 %v1547, %v3608
        %v3929 = vmul.f32 %v1636, %v3609
        %v3930 = vmul.f32 %v1725, %v3610
        %v3931 = vmul.f32 %v1814, %v3611
        %v3932 = vmul.f32 %v1903, %v3612
        %v3933 = vmul.f32 %v1992, %v3613
        %v3934 = vmul.f32 %v2081, %v3614
        %v3935 = vmul.f32 %v1282, %v3615
        %v3936 = vmul.f32 %v1371, %v3616
        %v3937 = vmul.f32 %v1460, %v3617
        %v3938 = vmul.f32 %v1549, %v3618
        %v3939 = vmul.f32 %v1638, %v3619
        %v3940 = vmul.f32 %v1727, %v3620
        %v3941 = vmul.f32 %v1816, %v3621
        %v3942 = vmul.f32 %v1905, %v3622
        %v3943 = vmul.f32 %v1994, %v3623
        %v3944 = vmul.f32 %v2083, %v3624
        %v3945 = vmul.f32 %v1285, %v3625
        %v3946 = vmul.f32 %v1374, %v3626
        %v3947 = vmul.f32 %v1463, %v3627
        %v3948 = vmul.f32 %v1552, %v3628
        %v3949 = vmul.f32 %v1641, %v3629
        %v3950 = vmul.f32 %v1730, %v3630
        %v3951 = vmul.f32 %v1819, %v3631
        %v3952 = vmul.f32 %v1908, %v3632
        %v3953 = vmul.f32 %v1997, %v3633
        %v3954 = vmul.f32 %v2086, %v3634
        %v3955 = vmul.f32 %v1287, %v3635
        %v3956 = vmul.f32 %v1376, %v3636
        %v3957 = vmul.f32 %v1465, %v3637
        %v3958 = vmul.f32 %v1554, %v3638
        %v3959 = vmul.f32 %v1643, %v3639
        %v3960 = vmul.f32 %v1732, %v3640
        %v3961 = vmul.f32 %v1821, %v3641
        %v3962 = vmul.f32 %v1910, %v3642
        %v3963 = vmul.f32 %v1999, %v3643
        %v3964 = vmul.f32 %v2088, %v3644
        %v3965 = vmul.f32 %v1290, %v3645
        %v3966 = vmul.f32 %v1379, %v3646
        %v3967 = vmul.f32 %v1468, %v3647
        %v3968 = vmul.f32 %v1557, %v3648
        %v3969 = vmul.f32 %v1646, %v3649
        %v3970 = vmul.f32 %v1735, %v3650
        %v3971 = vmul.f32 %v1824, %v3651
        %v3972 = vmul.f32 %v1913, %v3652
        %v3973 = vmul.f32 %v2002, %v3653
        %v3974 = vmul.f32 %v2091, %v3654
        %v3975 = vmul.f32 %v1292, %v3655
        %v3976 = vmul.f32 %v1381, %v3656
        %v3977 = vmul.f32 %v1470, %v3657
        %v3978 = vmul.f32 %v1559, %v3658
        %v3979 = vmul.f32 %v1648, %v3659
        %v3980 = vmul.f32 %v1737, %v3660
        %v3981 = vmul.f32 %v1826, %v3661
        %v3982 = vmul.f32 %v1915, %v3662
        %v3983 = vmul.f32 %v2004, %v3663
        %v3984 = vmul.f32 %v2093, %v3664
        %v3985 = vmul.f32 %v1295, %v3665
        %v3986 = vmul.f32 %v1384, %v3666
        %v3987 = vmul.f32 %v1473, %v3667
        %v3988 = vmul.f32 %v1562, %v3668
        %v3989 = vmul.f32 %v1651, %v3669
        %v3990 = vmul.f32 %v1740, %v3670
        %v3991 = vmul.f32 %v1829, %v3671
        %v3992 = vmul.f32 %v1918, %v3672
        %v3993 = vmul.f32 %v2007, %v3673
        %v3994 = vmul.f32 %v2096, %v3674
        %v3995 = vmul.f32 %v1297, %v3675
        %v3996 = vmul.f32 %v1386, %v3676
        %v3997 = vmul.f32 %v1475, %v3677
        %v3998 = vmul.f32 %v1564, %v3678
        %v3999 = vmul.f32 %v1653, %v3679
        %v4000 = vmul.f32 %v1742, %v3680
        %v4001 = vmul.f32 %v1831, %v3681
        %v4002 = vmul.f32 %v1920, %v3682
        %v4003 = vmul.f32 %v2009, %v3683
        %v4004 = vmul.f32 %v2098, %v3684
        %v4005 = vmul.f32 %v1300, %v3685
        %v4006 = vmul.f32 %v1389, %v3686
        %v4007 = vmul.f32 %v1478, %v3687
        %v4008 = vmul.f32 %v1567, %v3688
        %v4009 = vmul.f32 %v1656, %v3689
        %v4010 = vmul.f32 %v1745, %v3690
        %v4011 = vmul.f32 %v1834, %v3691
        %v4012 = vmul.f32 %v1923, %v3692
        %v4013 = vmul.f32 %v2012, %v3693
        %v4014 = vmul.f32 %v2101, %v3694
        %v4015 = vmul.f32 %v1302, %v3695
        %v4016 = vmul.f32 %v1391, %v3696
        %v4017 = vmul.f32 %v1480, %v3697
        %v4018 = vmul.f32 %v1569, %v3698
        %v4019 = vmul.f32 %v1658, %v3699
        %v4020 = vmul.f32 %v1747, %v3700
        %v4021 = vmul.f32 %v1836, %v3701
        %v4022 = vmul.f32 %v1925, %v3702
        %v4023 = vmul.f32 %v2014, %v3703
        %v4024 = vmul.f32 %v2103, %v3704
        %v4025 = vlaneseq
        %v4026 = vand.u32 %v4025, 127
        %v4027 = vadd.s32 %v4026, 128
        %s4028 = smul.u32 %s34, 256
        %v4029 = vstv %s4028
        %v4030 = vadd.s32 %v4026, %v4029
        %v4031 = vadd.s32 %v4027, %v4029
        %vm4032 = vcmp.lt.s32.totalorder %v4030, 256
        %vm4033 = vcmp.lt.s32.totalorder %v4031, 256
        %v4034 = vsel %vm4032, 1, 0
        %v4035 = vsel %vm4033, 1, 0
        %v4036 = vcvt.s32.f32 %v4034
        %v4037 = vcvt.s32.f32 %v4035
        %v4038 = vld [vmem:[#allocation2] sm:$0xff]
        %v4039 = vld [vmem:[#allocation2 + $0x8] sm:$0x3]
        %4040 = vmatpush.msra.mxu0 %v3855
        %4041 = vmatpush.msra.mxu0 %v3845
        %4042 = vmatpush.msra.mxu0 %v3835
        %4043 = vmatpush.msra.mxu0 %v3825
        %4044 = vmatpush.msra.mxu0 %v3815
        %4045 = vmatpush.msra.mxu0 %v3805
        %4046 = vmatpush.msra.mxu0 %v3795
        %4047 = vmatpush.msra.mxu0 %v3785
        %4048 = vmatpush.msra.mxu0 %v3775
        %4049 = vmatpush.msra.mxu0 %v3765
        %4050 = vmatpush.msra.mxu0 %v3755
        %4051 = vmatpush.msra.mxu0 %v3745
        %4052 = vmatpush.msra.mxu0 %v3735
        %4053 = vmatpush.msra.mxu0 %v3725
        %4054 = vmatpush.msra.mxu0 %v3715
        %4055 = vmatpush.msra.mxu0 %v3705
        %4056 = vmatmul.f32.gmra.mxu0 %v4036
        %v4057 = vpop.f32.mrf.mxu0
        %v4058 = vadd.f32 0.0, %v4057
        %4059 = vdwg.mxu0
        %4060 = vmatpush.msra.mxu0 %v4015
        %4061 = vmatpush.msra.mxu0 %v4005
        %4062 = vmatpush.msra.mxu0 %v3995
        %4063 = vmatpush.msra.mxu0 %v3985
        %4064 = vmatpush.msra.mxu0 %v3975
        %4065 = vmatpush.msra.mxu0 %v3965
        %4066 = vmatpush.msra.mxu0 %v3955
        %4067 = vmatpush.msra.mxu0 %v3945
        %4068 = vmatpush.msra.mxu0 %v3935
        %4069 = vmatpush.msra.mxu0 %v3925
        %4070 = vmatpush.msra.mxu0 %v3915
        %4071 = vmatpush.msra.mxu0 %v3905
        %4072 = vmatpush.msra.mxu0 %v3895
        %4073 = vmatpush.msra.mxu0 %v3885
        %4074 = vmatpush.msra.mxu0 %v3875
        %4075 = vmatpush.msra.mxu0 %v3865
        %4076 = vmatmul.f32.gmra.mxu0 %v4037
        %v4077 = vpop.f32.mrf.mxu0
        %v4078 = vadd.f32 %v4058, %v4077
        %4079 = vdwg.mxu0
        %4080 = vmatpush.msra.mxu0 %v3856
        %4081 = vmatpush.msra.mxu0 %v3846
        %4082 = vmatpush.msra.mxu0 %v3836
        %4083 = vmatpush.msra.mxu0 %v3826
        %4084 = vmatpush.msra.mxu0 %v3816
        %4085 = vmatpush.msra.mxu0 %v3806
        %4086 = vmatpush.msra.mxu0 %v3796
        %4087 = vmatpush.msra.mxu0 %v3786
        %4088 = vmatpush.msra.mxu0 %v3776
        %4089 = vmatpush.msra.mxu0 %v3766
        %4090 = vmatpush.msra.mxu0 %v3756
        %4091 = vmatpush.msra.mxu0 %v3746
        %4092 = vmatpush.msra.mxu0 %v3736
        %4093 = vmatpush.msra.mxu0 %v3726
        %4094 = vmatpush.msra.mxu0 %v3716
        %4095 = vmatpush.msra.mxu0 %v3706
        %4096 = vmatmul.f32.gmra.mxu0 %v4036
        %v4097 = vpop.f32.mrf.mxu0
        %v4098 = vadd.f32 0.0, %v4097
        %4099 = vdwg.mxu0
        %4100 = vmatpush.msra.mxu0 %v4016
        %4101 = vmatpush.msra.mxu0 %v4006
        %4102 = vmatpush.msra.mxu0 %v3996
        %4103 = vmatpush.msra.mxu0 %v3986
        %4104 = vmatpush.msra.mxu0 %v3976
        %4105 = vmatpush.msra.mxu0 %v3966
        %4106 = vmatpush.msra.mxu0 %v3956
        %4107 = vmatpush.msra.mxu0 %v3946
        %4108 = vmatpush.msra.mxu0 %v3936
        %4109 = vmatpush.msra.mxu0 %v3926
        %4110 = vmatpush.msra.mxu0 %v3916
        %4111 = vmatpush.msra.mxu0 %v3906
        %4112 = vmatpush.msra.mxu0 %v3896
        %4113 = vmatpush.msra.mxu0 %v3886
        %4114 = vmatpush.msra.mxu0 %v3876
        %4115 = vmatpush.msra.mxu0 %v3866
        %4116 = vmatmul.f32.gmra.mxu0 %v4037
        %v4117 = vpop.f32.mrf.mxu0
        %v4118 = vadd.f32 %v4098, %v4117
        %4119 = vdwg.mxu0
        %4120 = vmatpush.msra.mxu0 %v3857
        %4121 = vmatpush.msra.mxu0 %v3847
        %4122 = vmatpush.msra.mxu0 %v3837
        %4123 = vmatpush.msra.mxu0 %v3827
        %4124 = vmatpush.msra.mxu0 %v3817
        %4125 = vmatpush.msra.mxu0 %v3807
        %4126 = vmatpush.msra.mxu0 %v3797
        %4127 = vmatpush.msra.mxu0 %v3787
        %4128 = vmatpush.msra.mxu0 %v3777
        %4129 = vmatpush.msra.mxu0 %v3767
        %4130 = vmatpush.msra.mxu0 %v3757
        %4131 = vmatpush.msra.mxu0 %v3747
        %4132 = vmatpush.msra.mxu0 %v3737
        %4133 = vmatpush.msra.mxu0 %v3727
        %4134 = vmatpush.msra.mxu0 %v3717
        %4135 = vmatpush.msra.mxu0 %v3707
        %4136 = vmatmul.f32.gmra.mxu0 %v4036
        %v4137 = vpop.f32.mrf.mxu0
        %v4138 = vadd.f32 0.0, %v4137
        %4139 = vdwg.mxu0
        %4140 = vmatpush.msra.mxu0 %v4017
        %4141 = vmatpush.msra.mxu0 %v4007
        %4142 = vmatpush.msra.mxu0 %v3997
        %4143 = vmatpush.msra.mxu0 %v3987
        %4144 = vmatpush.msra.mxu0 %v3977
        %4145 = vmatpush.msra.mxu0 %v3967
        %4146 = vmatpush.msra.mxu0 %v3957
        %4147 = vmatpush.msra.mxu0 %v3947
        %4148 = vmatpush.msra.mxu0 %v3937
        %4149 = vmatpush.msra.mxu0 %v3927
        %4150 = vmatpush.msra.mxu0 %v3917
        %4151 = vmatpush.msra.mxu0 %v3907
        %4152 = vmatpush.msra.mxu0 %v3897
        %4153 = vmatpush.msra.mxu0 %v3887
        %4154 = vmatpush.msra.mxu0 %v3877
        %4155 = vmatpush.msra.mxu0 %v3867
        %4156 = vmatmul.f32.gmra.mxu0 %v4037
        %v4157 = vpop.f32.mrf.mxu0
        %v4158 = vadd.f32 %v4138, %v4157
        %4159 = vdwg.mxu0
        %4160 = vmatpush.msra.mxu0 %v3858
        %4161 = vmatpush.msra.mxu0 %v3848
        %4162 = vmatpush.msra.mxu0 %v3838
        %4163 = vmatpush.msra.mxu0 %v3828
        %4164 = vmatpush.msra.mxu0 %v3818
        %4165 = vmatpush.msra.mxu0 %v3808
        %4166 = vmatpush.msra.mxu0 %v3798
        %4167 = vmatpush.msra.mxu0 %v3788
        %4168 = vmatpush.msra.mxu0 %v3778
        %4169 = vmatpush.msra.mxu0 %v3768
        %4170 = vmatpush.msra.mxu0 %v3758
        %4171 = vmatpush.msra.mxu0 %v3748
        %4172 = vmatpush.msra.mxu0 %v3738
        %4173 = vmatpush.msra.mxu0 %v3728
        %4174 = vmatpush.msra.mxu0 %v3718
        %4175 = vmatpush.msra.mxu0 %v3708
        %4176 = vmatmul.f32.gmra.mxu0 %v4036
        %v4177 = vpop.f32.mrf.mxu0
        %v4178 = vadd.f32 0.0, %v4177
        %4179 = vdwg.mxu0
        %4180 = vmatpush.msra.mxu0 %v4018
        %4181 = vmatpush.msra.mxu0 %v4008
        %4182 = vmatpush.msra.mxu0 %v3998
        %4183 = vmatpush.msra.mxu0 %v3988
        %4184 = vmatpush.msra.mxu0 %v3978
        %4185 = vmatpush.msra.mxu0 %v3968
        %4186 = vmatpush.msra.mxu0 %v3958
        %4187 = vmatpush.msra.mxu0 %v3948
        %4188 = vmatpush.msra.mxu0 %v3938
        %4189 = vmatpush.msra.mxu0 %v3928
        %4190 = vmatpush.msra.mxu0 %v3918
        %4191 = vmatpush.msra.mxu0 %v3908
        %4192 = vmatpush.msra.mxu0 %v3898
        %4193 = vmatpush.msra.mxu0 %v3888
        %4194 = vmatpush.msra.mxu0 %v3878
        %4195 = vmatpush.msra.mxu0 %v3868
        %4196 = vmatmul.f32.gmra.mxu0 %v4037
        %v4197 = vpop.f32.mrf.mxu0
        %v4198 = vadd.f32 %v4178, %v4197
        %4199 = vdwg.mxu0
        %4200 = vmatpush.msra.mxu0 %v3859
        %4201 = vmatpush.msra.mxu0 %v3849
        %4202 = vmatpush.msra.mxu0 %v3839
        %4203 = vmatpush.msra.mxu0 %v3829
        %4204 = vmatpush.msra.mxu0 %v3819
        %4205 = vmatpush.msra.mxu0 %v3809
        %4206 = vmatpush.msra.mxu0 %v3799
        %4207 = vmatpush.msra.mxu0 %v3789
        %4208 = vmatpush.msra.mxu0 %v3779
        %4209 = vmatpush.msra.mxu0 %v3769
        %4210 = vmatpush.msra.mxu0 %v3759
        %4211 = vmatpush.msra.mxu0 %v3749
        %4212 = vmatpush.msra.mxu0 %v3739
        %4213 = vmatpush.msra.mxu0 %v3729
        %4214 = vmatpush.msra.mxu0 %v3719
        %4215 = vmatpush.msra.mxu0 %v3709
        %4216 = vmatmul.f32.gmra.mxu0 %v4036
        %v4217 = vpop.f32.mrf.mxu0
        %v4218 = vadd.f32 0.0, %v4217
        %4219 = vdwg.mxu0
        %4220 = vmatpush.msra.mxu0 %v4019
        %4221 = vmatpush.msra.mxu0 %v4009
        %4222 = vmatpush.msra.mxu0 %v3999
        %4223 = vmatpush.msra.mxu0 %v3989
        %4224 = vmatpush.msra.mxu0 %v3979
        %4225 = vmatpush.msra.mxu0 %v3969
        %4226 = vmatpush.msra.mxu0 %v3959
        %4227 = vmatpush.msra.mxu0 %v3949
        %4228 = vmatpush.msra.mxu0 %v3939
        %4229 = vmatpush.msra.mxu0 %v3929
        %4230 = vmatpush.msra.mxu0 %v3919
        %4231 = vmatpush.msra.mxu0 %v3909
        %4232 = vmatpush.msra.mxu0 %v3899
        %4233 = vmatpush.msra.mxu0 %v3889
        %4234 = vmatpush.msra.mxu0 %v3879
        %4235 = vmatpush.msra.mxu0 %v3869
        %4236 = vmatmul.f32.gmra.mxu0 %v4037
        %v4237 = vpop.f32.mrf.mxu0
        %v4238 = vadd.f32 %v4218, %v4237
        %4239 = vdwg.mxu0
        %4240 = vmatpush.msra.mxu0 %v3860
        %4241 = vmatpush.msra.mxu0 %v3850
        %4242 = vmatpush.msra.mxu0 %v3840
        %4243 = vmatpush.msra.mxu0 %v3830
        %4244 = vmatpush.msra.mxu0 %v3820
        %4245 = vmatpush.msra.mxu0 %v3810
        %4246 = vmatpush.msra.mxu0 %v3800
        %4247 = vmatpush.msra.mxu0 %v3790
        %4248 = vmatpush.msra.mxu0 %v3780
        %4249 = vmatpush.msra.mxu0 %v3770
        %4250 = vmatpush.msra.mxu0 %v3760
        %4251 = vmatpush.msra.mxu0 %v3750
        %4252 = vmatpush.msra.mxu0 %v3740
        %4253 = vmatpush.msra.mxu0 %v3730
        %4254 = vmatpush.msra.mxu0 %v3720
        %4255 = vmatpush.msra.mxu0 %v3710
        %4256 = vmatmul.f32.gmra.mxu0 %v4036
        %v4257 = vpop.f32.mrf.mxu0
        %v4258 = vadd.f32 0.0, %v4257
        %4259 = vdwg.mxu0
        %4260 = vmatpush.msra.mxu0 %v4020
        %4261 = vmatpush.msra.mxu0 %v4010
        %4262 = vmatpush.msra.mxu0 %v4000
        %4263 = vmatpush.msra.mxu0 %v3990
        %4264 = vmatpush.msra.mxu0 %v3980
        %4265 = vmatpush.msra.mxu0 %v3970
        %4266 = vmatpush.msra.mxu0 %v3960
        %4267 = vmatpush.msra.mxu0 %v3950
        %4268 = vmatpush.msra.mxu0 %v3940
        %4269 = vmatpush.msra.mxu0 %v3930
        %4270 = vmatpush.msra.mxu0 %v3920
        %4271 = vmatpush.msra.mxu0 %v3910
        %4272 = vmatpush.msra.mxu0 %v3900
        %4273 = vmatpush.msra.mxu0 %v3890
        %4274 = vmatpush.msra.mxu0 %v3880
        %4275 = vmatpush.msra.mxu0 %v3870
        %4276 = vmatmul.f32.gmra.mxu0 %v4037
        %v4277 = vpop.f32.mrf.mxu0
        %v4278 = vadd.f32 %v4258, %v4277
        %4279 = vdwg.mxu0
        %4280 = vmatpush.msra.mxu0 %v3861
        %4281 = vmatpush.msra.mxu0 %v3851
        %4282 = vmatpush.msra.mxu0 %v3841
        %4283 = vmatpush.msra.mxu0 %v3831
        %4284 = vmatpush.msra.mxu0 %v3821
        %4285 = vmatpush.msra.mxu0 %v3811
        %4286 = vmatpush.msra.mxu0 %v3801
        %4287 = vmatpush.msra.mxu0 %v3791
        %4288 = vmatpush.msra.mxu0 %v3781
        %4289 = vmatpush.msra.mxu0 %v3771
        %4290 = vmatpush.msra.mxu0 %v3761
        %4291 = vmatpush.msra.mxu0 %v3751
        %4292 = vmatpush.msra.mxu0 %v3741
        %4293 = vmatpush.msra.mxu0 %v3731
        %4294 = vmatpush.msra.mxu0 %v3721
        %4295 = vmatpush.msra.mxu0 %v3711
        %4296 = vmatmul.f32.gmra.mxu0 %v4036
        %v4297 = vpop.f32.mrf.mxu0
        %v4298 = vadd.f32 0.0, %v4297
        %4299 = vdwg.mxu0
        %4300 = vmatpush.msra.mxu0 %v4021
        %4301 = vmatpush.msra.mxu0 %v4011
        %4302 = vmatpush.msra.mxu0 %v4001
        %4303 = vmatpush.msra.mxu0 %v3991
        %4304 = vmatpush.msra.mxu0 %v3981
        %4305 = vmatpush.msra.mxu0 %v3971
        %4306 = vmatpush.msra.mxu0 %v3961
        %4307 = vmatpush.msra.mxu0 %v3951
        %4308 = vmatpush.msra.mxu0 %v3941
        %4309 = vmatpush.msra.mxu0 %v3931
        %4310 = vmatpush.msra.mxu0 %v3921
        %4311 = vmatpush.msra.mxu0 %v3911
        %4312 = vmatpush.msra.mxu0 %v3901
        %4313 = vmatpush.msra.mxu0 %v3891
        %4314 = vmatpush.msra.mxu0 %v3881
        %4315 = vmatpush.msra.mxu0 %v3871
        %4316 = vmatmul.f32.gmra.mxu0 %v4037
        %v4317 = vpop.f32.mrf.mxu0
        %v4318 = vadd.f32 %v4298, %v4317
        %4319 = vdwg.mxu0
        %4320 = vmatpush.msra.mxu0 %v3862
        %4321 = vmatpush.msra.mxu0 %v3852
        %4322 = vmatpush.msra.mxu0 %v3842
        %4323 = vmatpush.msra.mxu0 %v3832
        %4324 = vmatpush.msra.mxu0 %v3822
        %4325 = vmatpush.msra.mxu0 %v3812
        %4326 = vmatpush.msra.mxu0 %v3802
        %4327 = vmatpush.msra.mxu0 %v3792
        %4328 = vmatpush.msra.mxu0 %v3782
        %4329 = vmatpush.msra.mxu0 %v3772
        %4330 = vmatpush.msra.mxu0 %v3762
        %4331 = vmatpush.msra.mxu0 %v3752
        %4332 = vmatpush.msra.mxu0 %v3742
        %4333 = vmatpush.msra.mxu0 %v3732
        %4334 = vmatpush.msra.mxu0 %v3722
        %4335 = vmatpush.msra.mxu0 %v3712
        %4336 = vmatmul.f32.gmra.mxu0 %v4036
        %v4337 = vpop.f32.mrf.mxu0
        %v4338 = vadd.f32 0.0, %v4337
        %4339 = vdwg.mxu0
        %4340 = vmatpush.msra.mxu0 %v4022
        %4341 = vmatpush.msra.mxu0 %v4012
        %4342 = vmatpush.msra.mxu0 %v4002
        %4343 = vmatpush.msra.mxu0 %v3992
        %4344 = vmatpush.msra.mxu0 %v3982
        %4345 = vmatpush.msra.mxu0 %v3972
        %4346 = vmatpush.msra.mxu0 %v3962
        %4347 = vmatpush.msra.mxu0 %v3952
        %4348 = vmatpush.msra.mxu0 %v3942
        %4349 = vmatpush.msra.mxu0 %v3932
        %4350 = vmatpush.msra.mxu0 %v3922
        %4351 = vmatpush.msra.mxu0 %v3912
        %4352 = vmatpush.msra.mxu0 %v3902
        %4353 = vmatpush.msra.mxu0 %v3892
        %4354 = vmatpush.msra.mxu0 %v3882
        %4355 = vmatpush.msra.mxu0 %v3872
        %4356 = vmatmul.f32.gmra.mxu0 %v4037
        %v4357 = vpop.f32.mrf.mxu0
        %v4358 = vadd.f32 %v4338, %v4357
        %4359 = vdwg.mxu0
        %4360 = vmatpush.msra.mxu0 %v3863
        %4361 = vmatpush.msra.mxu0 %v3853
        %4362 = vmatpush.msra.mxu0 %v3843
        %4363 = vmatpush.msra.mxu0 %v3833
        %4364 = vmatpush.msra.mxu0 %v3823
        %4365 = vmatpush.msra.mxu0 %v3813
        %4366 = vmatpush.msra.mxu0 %v3803
        %4367 = vmatpush.msra.mxu0 %v3793
        %4368 = vmatpush.msra.mxu0 %v3783
        %4369 = vmatpush.msra.mxu0 %v3773
        %4370 = vmatpush.msra.mxu0 %v3763
        %4371 = vmatpush.msra.mxu0 %v3753
        %4372 = vmatpush.msra.mxu0 %v3743
        %4373 = vmatpush.msra.mxu0 %v3733
        %4374 = vmatpush.msra.mxu0 %v3723
        %4375 = vmatpush.msra.mxu0 %v3713
        %4376 = vmatmul.f32.gmra.mxu0 %v4036
        %v4377 = vpop.f32.mrf.mxu0
        %v4378 = vadd.f32 0.0, %v4377
        %4379 = vdwg.mxu0
        %4380 = vmatpush.msra.mxu0 %v4023
        %4381 = vmatpush.msra.mxu0 %v4013
        %4382 = vmatpush.msra.mxu0 %v4003
        %4383 = vmatpush.msra.mxu0 %v3993
        %4384 = vmatpush.msra.mxu0 %v3983
        %4385 = vmatpush.msra.mxu0 %v3973
        %4386 = vmatpush.msra.mxu0 %v3963
        %4387 = vmatpush.msra.mxu0 %v3953
        %4388 = vmatpush.msra.mxu0 %v3943
        %4389 = vmatpush.msra.mxu0 %v3933
        %4390 = vmatpush.msra.mxu0 %v3923
        %4391 = vmatpush.msra.mxu0 %v3913
        %4392 = vmatpush.msra.mxu0 %v3903
        %4393 = vmatpush.msra.mxu0 %v3893
        %4394 = vmatpush.msra.mxu0 %v3883
        %4395 = vmatpush.msra.mxu0 %v3873
        %4396 = vmatmul.f32.gmra.mxu0 %v4037
        %v4397 = vpop.f32.mrf.mxu0
        %v4398 = vadd.f32 %v4378, %v4397
        %4399 = vdwg.mxu0
        %4400 = vmatpush.msra.mxu0 %v3864
        %4401 = vmatpush.msra.mxu0 %v3854
        %4402 = vmatpush.msra.mxu0 %v3844
        %4403 = vmatpush.msra.mxu0 %v3834
        %4404 = vmatpush.msra.mxu0 %v3824
        %4405 = vmatpush.msra.mxu0 %v3814
        %4406 = vmatpush.msra.mxu0 %v3804
        %4407 = vmatpush.msra.mxu0 %v3794
        %4408 = vmatpush.msra.mxu0 %v3784
        %4409 = vmatpush.msra.mxu0 %v3774
        %4410 = vmatpush.msra.mxu0 %v3764
        %4411 = vmatpush.msra.mxu0 %v3754
        %4412 = vmatpush.msra.mxu0 %v3744
        %4413 = vmatpush.msra.mxu0 %v3734
        %4414 = vmatpush.msra.mxu0 %v3724
        %4415 = vmatpush.msra.mxu0 %v3714
        %4416 = vmatmul.f32.gmra.mxu0 %v4036
        %v4417 = vpop.f32.mrf.mxu0
        %v4418 = vadd.f32 0.0, %v4417
        %4419 = vdwg.mxu0
        %4420 = vmatpush.msra.mxu0 %v4024
        %4421 = vmatpush.msra.mxu0 %v4014
        %4422 = vmatpush.msra.mxu0 %v4004
        %4423 = vmatpush.msra.mxu0 %v3994
        %4424 = vmatpush.msra.mxu0 %v3984
        %4425 = vmatpush.msra.mxu0 %v3974
        %4426 = vmatpush.msra.mxu0 %v3964
        %4427 = vmatpush.msra.mxu0 %v3954
        %4428 = vmatpush.msra.mxu0 %v3944
        %4429 = vmatpush.msra.mxu0 %v3934
        %4430 = vmatpush.msra.mxu0 %v3924
        %4431 = vmatpush.msra.mxu0 %v3914
        %4432 = vmatpush.msra.mxu0 %v3904
        %4433 = vmatpush.msra.mxu0 %v3894
        %4434 = vmatpush.msra.mxu0 %v3884
        %4435 = vmatpush.msra.mxu0 %v3874
        %4436 = vmatmul.f32.gmra.mxu0 %v4037
        %v4437 = vpop.f32.mrf.mxu0
        %v4438 = vadd.f32 %v4418, %v4437
        %4439 = vdwg.mxu0
        %v4450 = vrot.slane %v4118, 7
        %v4451 = vrot.slane %v4158, 6
        %v4452 = vrot.slane %v4198, 5
        %v4453 = vrot.slane %v4238, 4
        %v4454 = vrot.slane %v4278, 3
        %v4455 = vrot.slane %v4318, 2
        %v4456 = vrot.slane %v4358, 1
        %v4457 = vrot.slane %v4438, 7
        %vm4458 = vcmask 1040384
        %v4459 = vsel %vm4458, %v4078, %v4450
        %vm4460 = vcmask 1042434
        %v4461 = vsel %vm4460, %v4451, %v4452
        %vm4462 = vcmask 1041408
        %v4463 = vsel %vm4462, %v4459, %v4461
        %vm4464 = vcmask 1044484
        %v4465 = vsel %vm4464, %v4453, %v4454
        %vm4466 = vcmask 1046534
        %v4467 = vsel %vm4466, %v4455, %v4456
        %vm4468 = vcmask 1045508
        %v4469 = vsel %vm4468, %v4465, %v4467
        %vm4470 = vcmask 1043456
        %v4471 = vsel %vm4470, %v4463, %v4469
        %v4472 = vsel %vm4458, %v4398, %v4457
        %v4475 = vadd.f32 %v4038, %v4471
        %v4476 = vadd.f32 %v4039, %v4472
        %4477 = vst [vmem:[#allocation2] sm:$0xff] %v4475
        %v4478 = vlaneseq
        %vm4479 = vcmp.ge.s32.totalorder %v4478, 0
        %vm4480 = vcmp.lt.s32.totalorder %v4478, 256
        %vm4481 = vmand %vm4479, %vm4480
        %4482 = vst.msk [vmem:[#allocation2 + $0x8] sm:$0x3] %vm4481, %v4476
        // Predicated region
        $region85: #{skin_cancer_forward.1} parent=79 // pred_check
          %p4483 = pneg %p535
        $region86: #{skin_cancer_forward.1} parent=79 // pred_check_branch
          %4485 = sbr.rel (%p4483) target = $region88
        $region87: #{skin_cancer_forward.1} parent=79 // pred_region
          %v4486 = vld [vmem:[#allocation2] sm:$0xff]
          %v4487 = vld [vmem:[#allocation2 + $0x8] sm:$0x3]
          %v4488 = vmul.f32 %v4486, 0.00390625
          %v4489 = vmul.f32 %v4487, 0.00390625
          %v4490 = vld [vmem:[%s533] sm:$0x1]
          %v4491 = vld [vmem:[%s6] sm:$0x3]
          %v4492 = vld [vmem:[%s7] sm:$0x1]
          %vm4493 = vcmask 15360
          %v4495 = vsel %vm4493, %v4490, 0
          %v4498 = vsel %vm4462, %v4491, 0
          %4500 = vmatpush.msra.mxu0 0.0
          %4501 = vmatpush.msra.mxu0 0.0
          %4502 = vmatpush.msra.mxu0 0.0
          %4503 = vmatpush.msra.mxu0 0.0
          %4504 = vmatpush.msra.mxu0 0.0
          %4505 = vmatpush.msra.mxu0 0.0
          %4506 = vmatpush.msra.mxu0 0.0
          %4507 = vmatpush.msra.mxu0 0.0
          %4508 = vmatpush.msra.mxu0 0.0
          %4509 = vmatpush.msra.mxu0 0.0
          %4510 = vmatpush.msra.mxu0 0.0
          %4511 = vmatpush.msra.mxu0 0.0
          %4512 = vmatpush.msra.mxu0 0.0
          %4513 = vmatpush.msra.mxu0 0.0
          %4514 = vmatpush.msra.mxu0 0.0
          %4515 = vmatpush.msra.mxu0 %v4498
          %4516 = vmatmul.f32.gmra.mxu0 %v4495
          %v4517 = vpop.f32.mrf.mxu0
          %v4518 = vadd.f32 %v4492, %v4517
          %4519 = vdwg.mxu0
          %v4520 = vmax.f32 %v4518, 0.0
          %v4521 = vld [vmem:[%s8] sm:$0xff]
          %v4522 = vld [vmem:[%s8 + $0x8] sm:$0xff]
          %v4523 = vld [vmem:[%s9] sm:$0x1]
          %vm4524 = vcmask 130048
          %v4526 = vsel %vm4524, %v4520, 0
          %4528 = vmatpush.msra.mxu0 0.0
          %4529 = vmatpush.msra.mxu0 0.0
          %4530 = vmatpush.msra.mxu0 0.0
          %4531 = vmatpush.msra.mxu0 0.0
          %4532 = vmatpush.msra.mxu0 0.0
          %4533 = vmatpush.msra.mxu0 0.0
          %4534 = vmatpush.msra.mxu0 0.0
          %4535 = vmatpush.msra.mxu0 0.0
          %4536 = vmatpush.msra.mxu0 0.0
          %4537 = vmatpush.msra.mxu0 0.0
          %4538 = vmatpush.msra.mxu0 0.0
          %4539 = vmatpush.msra.mxu0 0.0
          %4540 = vmatpush.msra.mxu0 0.0
          %4541 = vmatpush.msra.mxu0 0.0
          %4542 = vmatpush.msra.mxu0 %v4522
          %4543 = vmatpush.msra.mxu0 %v4521
          %4544 = vmatmul.f32.gmra.mxu0 %v4526
          %v4545 = vpop.f32.mrf.mxu0
          %v4546 = vadd.f32 %v4523, %v4545
          %4547 = vdwg.mxu0
          %v4548 = vmax.f32 %v4546, 0.0
          %v4549 = vld [vmem:[%s10] sm:$0xff]
          %v4550 = vld [vmem:[%s10 + $0x8] sm:$0xff]
          %v4551 = vld [vmem:[%s10 + $0x10] sm:$0xff]
          %v4552 = vld [vmem:[%s10 + $0x18] sm:$0xff]
          %v4553 = vld [vmem:[%s10 + $0x20] sm:$0xff]
          %v4554 = vld [vmem:[%s10 + $0x28] sm:$0xff]
          %v4555 = vld [vmem:[%s10 + $0x30] sm:$0xff]
          %v4556 = vld [vmem:[%s10 + $0x38] sm:$0xff]
          %v4557 = vld [vmem:[%s10 + $0x40] sm:$0xff]
          %v4558 = vld [vmem:[%s10 + $0x48] sm:$0xff]
          %v4559 = vld [vmem:[%s10 + $0x50] sm:$0xff]
          %v4560 = vld [vmem:[%s10 + $0x58] sm:$0xff]
          %v4561 = vld [vmem:[%s10 + $0x60] sm:$0xff]
          %v4562 = vld [vmem:[%s10 + $0x68] sm:$0xff]
          %v4563 = vld [vmem:[%s10 + $0x70] sm:$0xff]
          %v4564 = vld [vmem:[%s10 + $0x78] sm:$0xff]
          %v4565 = vld [vmem:[%s10 + $0x80] sm:$0xff]
          %v4566 = vld [vmem:[%s10 + $0x88] sm:$0xff]
          %v4567 = vld [vmem:[%s10 + $0x90] sm:$0xff]
          %v4568 = vld [vmem:[%s10 + $0x98] sm:$0xff]
          %v4569 = vld [vmem:[%s10 + $0xa0] sm:$0xff]
          %v4570 = vld [vmem:[%s10 + $0xa8] sm:$0xff]
          %v4571 = vld [vmem:[%s10 + $0xb0] sm:$0xff]
          %v4572 = vld [vmem:[%s10 + $0xb8] sm:$0xff]
          %v4573 = vld [vmem:[%s10 + $0xc0] sm:$0xff]
          %v4574 = vld [vmem:[%s10 + $0xc8] sm:$0xff]
          %v4575 = vld [vmem:[%s10 + $0xd0] sm:$0xff]
          %v4576 = vld [vmem:[%s10 + $0xd8] sm:$0xff]
          %v4577 = vld [vmem:[%s10 + $0xe0] sm:$0xff]
          %v4578 = vld [vmem:[%s10 + $0xe8] sm:$0xff]
          %v4579 = vld [vmem:[%s10 + $0xf0] sm:$0xff]
          %v4580 = vld [vmem:[%s10 + $0xf8] sm:$0xff]
          %v4581 = vld [vmem:[%s10 + $0x100] sm:$0xff]
          %v4582 = vld [vmem:[%s10 + $0x108] sm:$0xff]
          %v4583 = vld [vmem:[%s10 + $0x110] sm:$0xff]
          %v4584 = vld [vmem:[%s10 + $0x118] sm:$0xff]
          %v4585 = vld [vmem:[%s10 + $0x120] sm:$0xff]
          %v4586 = vld [vmem:[%s10 + $0x128] sm:$0xff]
          %v4587 = vld [vmem:[%s10 + $0x130] sm:$0xff]
          %v4588 = vld [vmem:[%s10 + $0x138] sm:$0xff]
          %v4589 = vld [vmem:[%s10 + $0x140] sm:$0xff]
          %v4590 = vld [vmem:[%s10 + $0x148] sm:$0xff]
          %v4591 = vld [vmem:[%s10 + $0x150] sm:$0xff]
          %v4592 = vld [vmem:[%s10 + $0x158] sm:$0xff]
          %v4593 = vld [vmem:[%s10 + $0x160] sm:$0xff]
          %v4594 = vld [vmem:[%s10 + $0x168] sm:$0xff]
          %v4595 = vld [vmem:[%s10 + $0x170] sm:$0xff]
          %v4596 = vld [vmem:[%s10 + $0x178] sm:$0xff]
          %v4597 = vld [vmem:[%s10 + $0x180] sm:$0xff]
          %v4598 = vld [vmem:[%s10 + $0x188] sm:$0xff]
          %v4599 = vld [vmem:[%s10 + $0x190] sm:$0xff]
          %v4600 = vld [vmem:[%s10 + $0x198] sm:$0xff]
          %v4601 = vld [vmem:[%s10 + $0x1a0] sm:$0xff]
          %v4602 = vld [vmem:[%s10 + $0x1a8] sm:$0xff]
          %v4603 = vld [vmem:[%s10 + $0x1b0] sm:$0xff]
          %v4604 = vld [vmem:[%s10 + $0x1b8] sm:$0xff]
          %v4605 = vld [vmem:[%s10 + $0x1c0] sm:$0xff]
          %v4606 = vld [vmem:[%s10 + $0x1c8] sm:$0xff]
          %v4607 = vld [vmem:[%s10 + $0x1d0] sm:$0xff]
          %v4608 = vld [vmem:[%s10 + $0x1d8] sm:$0xff]
          %v4609 = vld [vmem:[%s10 + $0x1e0] sm:$0xff]
          %v4610 = vld [vmem:[%s10 + $0x1e8] sm:$0xff]
          %v4611 = vld [vmem:[%s10 + $0x1f0] sm:$0xff]
          %v4612 = vld [vmem:[%s10 + $0x1f8] sm:$0xff]
          %v4613 = vld [vmem:[%s10 + $0x200] sm:$0xff]
          %v4614 = vld [vmem:[%s10 + $0x208] sm:$0xff]
          %v4615 = vld [vmem:[%s10 + $0x210] sm:$0xff]
          %v4616 = vld [vmem:[%s10 + $0x218] sm:$0xff]
          %v4617 = vld [vmem:[%s10 + $0x220] sm:$0xff]
          %v4618 = vld [vmem:[%s10 + $0x228] sm:$0xff]
          %v4619 = vld [vmem:[%s10 + $0x230] sm:$0xff]
          %v4620 = vld [vmem:[%s10 + $0x238] sm:$0xff]
          %v4621 = vld [vmem:[%s10 + $0x240] sm:$0xff]
          %v4622 = vld [vmem:[%s10 + $0x248] sm:$0xff]
          %v4623 = vld [vmem:[%s10 + $0x250] sm:$0xff]
          %v4624 = vld [vmem:[%s10 + $0x258] sm:$0xff]
          %v4625 = vld [vmem:[%s10 + $0x260] sm:$0xff]
          %v4626 = vld [vmem:[%s10 + $0x268] sm:$0xff]
          %v4627 = vld [vmem:[%s10 + $0x270] sm:$0xff]
          %v4628 = vld [vmem:[%s10 + $0x278] sm:$0xff]
          %v4629 = vld [vmem:[%s10 + $0x280] sm:$0xff]
          %v4630 = vld [vmem:[%s10 + $0x288] sm:$0xff]
          %v4631 = vld [vmem:[%s10 + $0x290] sm:$0xff]
          %v4632 = vld [vmem:[%s10 + $0x298] sm:$0xff]
          %v4633 = vld [vmem:[%s10 + $0x2a0] sm:$0xff]
          %v4634 = vld [vmem:[%s10 + $0x2a8] sm:$0xff]
          %v4635 = vld [vmem:[%s10 + $0x2b0] sm:$0xff]
          %v4636 = vld [vmem:[%s10 + $0x2b8] sm:$0xff]
          %v4637 = vld [vmem:[%s10 + $0x2c0] sm:$0xff]
          %v4638 = vld [vmem:[%s10 + $0x2c8] sm:$0xff]
          %v4639 = vld [vmem:[%s10 + $0x2d0] sm:$0xff]
          %v4640 = vld [vmem:[%s10 + $0x2d8] sm:$0xff]
          %v4641 = vld [vmem:[%s10 + $0x2e0] sm:$0xff]
          %v4642 = vld [vmem:[%s10 + $0x2e8] sm:$0xff]
          %v4643 = vld [vmem:[%s10 + $0x2f0] sm:$0xff]
          %v4644 = vld [vmem:[%s10 + $0x2f8] sm:$0xff]
          %v4645 = vld [vmem:[%s10 + $0x300] sm:$0xff]
          %v4646 = vld [vmem:[%s10 + $0x308] sm:$0xff]
          %v4647 = vld [vmem:[%s10 + $0x310] sm:$0xff]
          %v4648 = vld [vmem:[%s10 + $0x318] sm:$0xff]
          %v4649 = vld [vmem:[%s10 + $0x320] sm:$0xff]
          %v4650 = vld [vmem:[%s10 + $0x328] sm:$0xff]
          %v4651 = vld [vmem:[%s10 + $0x330] sm:$0xff]
          %v4652 = vld [vmem:[%s10 + $0x338] sm:$0xff]
          %v4653 = vld [vmem:[%s10 + $0x340] sm:$0xff]
          %v4654 = vld [vmem:[%s10 + $0x348] sm:$0xff]
          %v4655 = vld [vmem:[%s10 + $0x350] sm:$0xff]
          %v4656 = vld [vmem:[%s10 + $0x358] sm:$0xff]
          %v4657 = vld [vmem:[%s10 + $0x360] sm:$0xff]
          %v4658 = vld [vmem:[%s10 + $0x368] sm:$0xff]
          %v4659 = vld [vmem:[%s10 + $0x370] sm:$0xff]
          %v4660 = vld [vmem:[%s10 + $0x378] sm:$0xff]
          %v4661 = vld [vmem:[%s10 + $0x380] sm:$0xff]
          %v4662 = vld [vmem:[%s10 + $0x388] sm:$0xff]
          %v4663 = vld [vmem:[%s10 + $0x390] sm:$0xff]
          %v4664 = vld [vmem:[%s10 + $0x398] sm:$0xff]
          %v4665 = vld [vmem:[%s10 + $0x3a0] sm:$0xff]
          %v4666 = vld [vmem:[%s10 + $0x3a8] sm:$0xff]
          %v4667 = vld [vmem:[%s10 + $0x3b0] sm:$0xff]
          %v4668 = vld [vmem:[%s10 + $0x3b8] sm:$0xff]
          %v4669 = vld [vmem:[%s10 + $0x3c0] sm:$0xff]
          %v4670 = vld [vmem:[%s10 + $0x3c8] sm:$0xff]
          %v4671 = vld [vmem:[%s10 + $0x3d0] sm:$0xff]
          %v4672 = vld [vmem:[%s10 + $0x3d8] sm:$0xff]
          %v4673 = vld [vmem:[%s10 + $0x3e0] sm:$0xff]
          %v4674 = vld [vmem:[%s10 + $0x3e8] sm:$0xff]
          %v4675 = vld [vmem:[%s10 + $0x3f0] sm:$0xff]
          %v4676 = vld [vmem:[%s10 + $0x3f8] sm:$0xff]
          %v4677 = vld [vmem:[%s10 + $0x400] sm:$0xff]
          %v4678 = vld [vmem:[%s10 + $0x408] sm:$0xff]
          %v4679 = vld [vmem:[%s10 + $0x410] sm:$0xff]
          %v4680 = vld [vmem:[%s10 + $0x418] sm:$0xff]
          %v4681 = vld [vmem:[%s10 + $0x420] sm:$0xff]
          %v4682 = vld [vmem:[%s10 + $0x428] sm:$0xff]
          %v4683 = vld [vmem:[%s10 + $0x430] sm:$0xff]
          %v4684 = vld [vmem:[%s10 + $0x438] sm:$0xff]
          %v4685 = vld [vmem:[%s10 + $0x440] sm:$0xff]
          %v4686 = vld [vmem:[%s10 + $0x448] sm:$0xff]
          %v4687 = vld [vmem:[%s10 + $0x450] sm:$0xff]
          %v4688 = vld [vmem:[%s10 + $0x458] sm:$0xff]
          %v4689 = vld [vmem:[%s10 + $0x460] sm:$0xff]
          %v4690 = vld [vmem:[%s10 + $0x468] sm:$0xff]
          %v4691 = vld [vmem:[%s10 + $0x470] sm:$0xff]
          %v4692 = vld [vmem:[%s10 + $0x478] sm:$0xff]
          %v4693 = vld [vmem:[%s10 + $0x480] sm:$0xff]
          %v4694 = vld [vmem:[%s10 + $0x488] sm:$0xff]
          %v4695 = vld [vmem:[%s10 + $0x490] sm:$0xff]
          %v4696 = vld [vmem:[%s10 + $0x498] sm:$0xff]
          %v4697 = vld [vmem:[%s10 + $0x4a0] sm:$0xff]
          %v4698 = vld [vmem:[%s10 + $0x4a8] sm:$0xff]
          %v4699 = vld [vmem:[%s10 + $0x4b0] sm:$0xff]
          %v4700 = vld [vmem:[%s10 + $0x4b8] sm:$0xff]
          %v4701 = vld [vmem:[%s10 + $0x4c0] sm:$0xff]
          %v4702 = vld [vmem:[%s10 + $0x4c8] sm:$0xff]
          %v4703 = vld [vmem:[%s10 + $0x4d0] sm:$0xff]
          %v4704 = vld [vmem:[%s10 + $0x4d8] sm:$0xff]
          %v4705 = vld [vmem:[%s10 + $0x4e0] sm:$0xff]
          %v4706 = vld [vmem:[%s10 + $0x4e8] sm:$0xff]
          %v4707 = vld [vmem:[%s10 + $0x4f0] sm:$0xff]
          %v4708 = vld [vmem:[%s10 + $0x4f8] sm:$0xff]
          %v4709 = vunpack.c.l.bf16 %v4549
          %v4710 = vunpack.c.h.bf16 %v4549
          %v4711 = vunpack.c.l.bf16 %v4550
          %v4712 = vunpack.c.h.bf16 %v4550
          %v4713 = vunpack.c.l.bf16 %v4551
          %v4714 = vunpack.c.h.bf16 %v4551
          %v4715 = vunpack.c.l.bf16 %v4552
          %v4716 = vunpack.c.h.bf16 %v4552
          %v4717 = vunpack.c.l.bf16 %v4553
          %v4718 = vunpack.c.h.bf16 %v4553
          %v4719 = vunpack.c.l.bf16 %v4554
          %v4720 = vunpack.c.h.bf16 %v4554
          %v4721 = vunpack.c.l.bf16 %v4555
          %v4722 = vunpack.c.h.bf16 %v4555
          %v4723 = vunpack.c.l.bf16 %v4556
          %v4724 = vunpack.c.h.bf16 %v4556
          %v4725 = vunpack.c.l.bf16 %v4557
          %v4726 = vunpack.c.h.bf16 %v4557
          %v4727 = vunpack.c.l.bf16 %v4558
          %v4728 = vunpack.c.h.bf16 %v4558
          %v4729 = vunpack.c.l.bf16 %v4559
          %v4730 = vunpack.c.h.bf16 %v4559
          %v4731 = vunpack.c.l.bf16 %v4560
          %v4732 = vunpack.c.h.bf16 %v4560
          %v4733 = vunpack.c.l.bf16 %v4561
          %v4734 = vunpack.c.h.bf16 %v4561
          %v4735 = vunpack.c.l.bf16 %v4562
          %v4736 = vunpack.c.h.bf16 %v4562
          %v4737 = vunpack.c.l.bf16 %v4563
          %v4738 = vunpack.c.h.bf16 %v4563
          %v4739 = vunpack.c.l.bf16 %v4564
          %v4740 = vunpack.c.h.bf16 %v4564
          %v4741 = vunpack.c.l.bf16 %v4565
          %v4742 = vunpack.c.h.bf16 %v4565
          %v4743 = vunpack.c.l.bf16 %v4566
          %v4744 = vunpack.c.h.bf16 %v4566
          %v4745 = vunpack.c.l.bf16 %v4567
          %v4746 = vunpack.c.h.bf16 %v4567
          %v4747 = vunpack.c.l.bf16 %v4568
          %v4748 = vunpack.c.h.bf16 %v4568
          %v4749 = vunpack.c.l.bf16 %v4569
          %v4750 = vunpack.c.h.bf16 %v4569
          %v4751 = vunpack.c.l.bf16 %v4570
          %v4752 = vunpack.c.h.bf16 %v4570
          %v4753 = vunpack.c.l.bf16 %v4571
          %v4754 = vunpack.c.h.bf16 %v4571
          %v4755 = vunpack.c.l.bf16 %v4572
          %v4756 = vunpack.c.h.bf16 %v4572
          %v4757 = vunpack.c.l.bf16 %v4573
          %v4758 = vunpack.c.h.bf16 %v4573
          %v4759 = vunpack.c.l.bf16 %v4574
          %v4760 = vunpack.c.h.bf16 %v4574
          %v4761 = vunpack.c.l.bf16 %v4575
          %v4762 = vunpack.c.h.bf16 %v4575
          %v4763 = vunpack.c.l.bf16 %v4576
          %v4764 = vunpack.c.h.bf16 %v4576
          %v4765 = vunpack.c.l.bf16 %v4577
          %v4766 = vunpack.c.h.bf16 %v4577
          %v4767 = vunpack.c.l.bf16 %v4578
          %v4768 = vunpack.c.h.bf16 %v4578
          %v4769 = vunpack.c.l.bf16 %v4579
          %v4770 = vunpack.c.h.bf16 %v4579
          %v4771 = vunpack.c.l.bf16 %v4580
          %v4772 = vunpack.c.h.bf16 %v4580
          %v4773 = vunpack.c.l.bf16 %v4581
          %v4774 = vunpack.c.h.bf16 %v4581
          %v4775 = vunpack.c.l.bf16 %v4582
          %v4776 = vunpack.c.h.bf16 %v4582
          %v4777 = vunpack.c.l.bf16 %v4583
          %v4778 = vunpack.c.h.bf16 %v4583
          %v4779 = vunpack.c.l.bf16 %v4584
          %v4780 = vunpack.c.h.bf16 %v4584
          %v4781 = vunpack.c.l.bf16 %v4585
          %v4782 = vunpack.c.h.bf16 %v4585
          %v4783 = vunpack.c.l.bf16 %v4586
          %v4784 = vunpack.c.h.bf16 %v4586
          %v4785 = vunpack.c.l.bf16 %v4587
          %v4786 = vunpack.c.h.bf16 %v4587
          %v4787 = vunpack.c.l.bf16 %v4588
          %v4788 = vunpack.c.h.bf16 %v4588
          %v4789 = vunpack.c.l.bf16 %v4589
          %v4790 = vunpack.c.h.bf16 %v4589
          %v4791 = vunpack.c.l.bf16 %v4590
          %v4792 = vunpack.c.h.bf16 %v4590
          %v4793 = vunpack.c.l.bf16 %v4591
          %v4794 = vunpack.c.h.bf16 %v4591
          %v4795 = vunpack.c.l.bf16 %v4592
          %v4796 = vunpack.c.h.bf16 %v4592
          %v4797 = vunpack.c.l.bf16 %v4593
          %v4798 = vunpack.c.h.bf16 %v4593
          %v4799 = vunpack.c.l.bf16 %v4594
          %v4800 = vunpack.c.h.bf16 %v4594
          %v4801 = vunpack.c.l.bf16 %v4595
          %v4802 = vunpack.c.h.bf16 %v4595
          %v4803 = vunpack.c.l.bf16 %v4596
          %v4804 = vunpack.c.h.bf16 %v4596
          %v4805 = vunpack.c.l.bf16 %v4597
          %v4806 = vunpack.c.h.bf16 %v4597
          %v4807 = vunpack.c.l.bf16 %v4598
          %v4808 = vunpack.c.h.bf16 %v4598
          %v4809 = vunpack.c.l.bf16 %v4599
          %v4810 = vunpack.c.h.bf16 %v4599
          %v4811 = vunpack.c.l.bf16 %v4600
          %v4812 = vunpack.c.h.bf16 %v4600
          %v4813 = vunpack.c.l.bf16 %v4601
          %v4814 = vunpack.c.h.bf16 %v4601
          %v4815 = vunpack.c.l.bf16 %v4602
          %v4816 = vunpack.c.h.bf16 %v4602
          %v4817 = vunpack.c.l.bf16 %v4603
          %v4818 = vunpack.c.h.bf16 %v4603
          %v4819 = vunpack.c.l.bf16 %v4604
          %v4820 = vunpack.c.h.bf16 %v4604
          %v4821 = vunpack.c.l.bf16 %v4605
          %v4822 = vunpack.c.h.bf16 %v4605
          %v4823 = vunpack.c.l.bf16 %v4606
          %v4824 = vunpack.c.h.bf16 %v4606
          %v4825 = vunpack.c.l.bf16 %v4607
          %v4826 = vunpack.c.h.bf16 %v4607
          %v4827 = vunpack.c.l.bf16 %v4608
          %v4828 = vunpack.c.h.bf16 %v4608
          %v4829 = vunpack.c.l.bf16 %v4609
          %v4830 = vunpack.c.h.bf16 %v4609
          %v4831 = vunpack.c.l.bf16 %v4610
          %v4832 = vunpack.c.h.bf16 %v4610
          %v4833 = vunpack.c.l.bf16 %v4611
          %v4834 = vunpack.c.h.bf16 %v4611
          %v4835 = vunpack.c.l.bf16 %v4612
          %v4836 = vunpack.c.h.bf16 %v4612
          %v4837 = vunpack.c.l.bf16 %v4613
          %v4838 = vunpack.c.h.bf16 %v4613
          %v4839 = vunpack.c.l.bf16 %v4614
          %v4840 = vunpack.c.h.bf16 %v4614
          %v4841 = vunpack.c.l.bf16 %v4615
          %v4842 = vunpack.c.h.bf16 %v4615
          %v4843 = vunpack.c.l.bf16 %v4616
          %v4844 = vunpack.c.h.bf16 %v4616
          %v4845 = vunpack.c.l.bf16 %v4617
          %v4846 = vunpack.c.h.bf16 %v4617
          %v4847 = vunpack.c.l.bf16 %v4618
          %v4848 = vunpack.c.h.bf16 %v4618
          %v4849 = vunpack.c.l.bf16 %v4619
          %v4850 = vunpack.c.h.bf16 %v4619
          %v4851 = vunpack.c.l.bf16 %v4620
          %v4852 = vunpack.c.h.bf16 %v4620
          %v4853 = vunpack.c.l.bf16 %v4621
          %v4854 = vunpack.c.h.bf16 %v4621
          %v4855 = vunpack.c.l.bf16 %v4622
          %v4856 = vunpack.c.h.bf16 %v4622
          %v4857 = vunpack.c.l.bf16 %v4623
          %v4858 = vunpack.c.h.bf16 %v4623
          %v4859 = vunpack.c.l.bf16 %v4624
          %v4860 = vunpack.c.h.bf16 %v4624
          %v4861 = vunpack.c.l.bf16 %v4625
          %v4862 = vunpack.c.h.bf16 %v4625
          %v4863 = vunpack.c.l.bf16 %v4626
          %v4864 = vunpack.c.h.bf16 %v4626
          %v4865 = vunpack.c.l.bf16 %v4627
          %v4866 = vunpack.c.h.bf16 %v4627
          %v4867 = vunpack.c.l.bf16 %v4628
          %v4868 = vunpack.c.h.bf16 %v4628
          %v4869 = vunpack.c.l.bf16 %v4629
          %v4870 = vunpack.c.h.bf16 %v4629
          %v4871 = vunpack.c.l.bf16 %v4630
          %v4872 = vunpack.c.h.bf16 %v4630
          %v4873 = vunpack.c.l.bf16 %v4631
          %v4874 = vunpack.c.h.bf16 %v4631
          %v4875 = vunpack.c.l.bf16 %v4632
          %v4876 = vunpack.c.h.bf16 %v4632
          %v4877 = vunpack.c.l.bf16 %v4633
          %v4878 = vunpack.c.h.bf16 %v4633
          %v4879 = vunpack.c.l.bf16 %v4634
          %v4880 = vunpack.c.h.bf16 %v4634
          %v4881 = vunpack.c.l.bf16 %v4635
          %v4882 = vunpack.c.h.bf16 %v4635
          %v4883 = vunpack.c.l.bf16 %v4636
          %v4884 = vunpack.c.h.bf16 %v4636
          %v4885 = vunpack.c.l.bf16 %v4637
          %v4886 = vunpack.c.h.bf16 %v4637
          %v4887 = vunpack.c.l.bf16 %v4638
          %v4888 = vunpack.c.h.bf16 %v4638
          %v4889 = vunpack.c.l.bf16 %v4639
          %v4890 = vunpack.c.h.bf16 %v4639
          %v4891 = vunpack.c.l.bf16 %v4640
          %v4892 = vunpack.c.h.bf16 %v4640
          %v4893 = vunpack.c.l.bf16 %v4641
          %v4894 = vunpack.c.h.bf16 %v4641
          %v4895 = vunpack.c.l.bf16 %v4642
          %v4896 = vunpack.c.h.bf16 %v4642
          %v4897 = vunpack.c.l.bf16 %v4643
          %v4898 = vunpack.c.h.bf16 %v4643
          %v4899 = vunpack.c.l.bf16 %v4644
          %v4900 = vunpack.c.h.bf16 %v4644
          %v4901 = vunpack.c.l.bf16 %v4645
          %v4902 = vunpack.c.h.bf16 %v4645
          %v4903 = vunpack.c.l.bf16 %v4646
          %v4904 = vunpack.c.h.bf16 %v4646
          %v4905 = vunpack.c.l.bf16 %v4647
          %v4906 = vunpack.c.h.bf16 %v4647
          %v4907 = vunpack.c.l.bf16 %v4648
          %v4908 = vunpack.c.h.bf16 %v4648
          %v4909 = vunpack.c.l.bf16 %v4649
          %v4910 = vunpack.c.h.bf16 %v4649
          %v4911 = vunpack.c.l.bf16 %v4650
          %v4912 = vunpack.c.h.bf16 %v4650
          %v4913 = vunpack.c.l.bf16 %v4651
          %v4914 = vunpack.c.h.bf16 %v4651
          %v4915 = vunpack.c.l.bf16 %v4652
          %v4916 = vunpack.c.h.bf16 %v4652
          %v4917 = vunpack.c.l.bf16 %v4653
          %v4918 = vunpack.c.h.bf16 %v4653
          %v4919 = vunpack.c.l.bf16 %v4654
          %v4920 = vunpack.c.h.bf16 %v4654
          %v4921 = vunpack.c.l.bf16 %v4655
          %v4922 = vunpack.c.h.bf16 %v4655
          %v4923 = vunpack.c.l.bf16 %v4656
          %v4924 = vunpack.c.h.bf16 %v4656
          %v4925 = vunpack.c.l.bf16 %v4657
          %v4926 = vunpack.c.h.bf16 %v4657
          %v4927 = vunpack.c.l.bf16 %v4658
          %v4928 = vunpack.c.h.bf16 %v4658
          %v4929 = vunpack.c.l.bf16 %v4659
          %v4930 = vunpack.c.h.bf16 %v4659
          %v4931 = vunpack.c.l.bf16 %v4660
          %v4932 = vunpack.c.h.bf16 %v4660
          %v4933 = vunpack.c.l.bf16 %v4661
          %v4934 = vunpack.c.h.bf16 %v4661
          %v4935 = vunpack.c.l.bf16 %v4662
          %v4936 = vunpack.c.h.bf16 %v4662
          %v4937 = vunpack.c.l.bf16 %v4663
          %v4938 = vunpack.c.h.bf16 %v4663
          %v4939 = vunpack.c.l.bf16 %v4664
          %v4940 = vunpack.c.h.bf16 %v4664
          %v4941 = vunpack.c.l.bf16 %v4665
          %v4942 = vunpack.c.h.bf16 %v4665
          %v4943 = vunpack.c.l.bf16 %v4666
          %v4944 = vunpack.c.h.bf16 %v4666
          %v4945 = vunpack.c.l.bf16 %v4667
          %v4946 = vunpack.c.h.bf16 %v4667
          %v4947 = vunpack.c.l.bf16 %v4668
          %v4948 = vunpack.c.h.bf16 %v4668
          %v4949 = vunpack.c.l.bf16 %v4669
          %v4950 = vunpack.c.h.bf16 %v4669
          %v4951 = vunpack.c.l.bf16 %v4670
          %v4952 = vunpack.c.h.bf16 %v4670
          %v4953 = vunpack.c.l.bf16 %v4671
          %v4954 = vunpack.c.h.bf16 %v4671
          %v4955 = vunpack.c.l.bf16 %v4672
          %v4956 = vunpack.c.h.bf16 %v4672
          %v4957 = vunpack.c.l.bf16 %v4673
          %v4958 = vunpack.c.h.bf16 %v4673
          %v4959 = vunpack.c.l.bf16 %v4674
          %v4960 = vunpack.c.h.bf16 %v4674
          %v4961 = vunpack.c.l.bf16 %v4675
          %v4962 = vunpack.c.h.bf16 %v4675
          %v4963 = vunpack.c.l.bf16 %v4676
          %v4964 = vunpack.c.h.bf16 %v4676
          %v4965 = vunpack.c.l.bf16 %v4677
          %v4966 = vunpack.c.h.bf16 %v4677
          %v4967 = vunpack.c.l.bf16 %v4678
          %v4968 = vunpack.c.h.bf16 %v4678
          %v4969 = vunpack.c.l.bf16 %v4679
          %v4970 = vunpack.c.h.bf16 %v4679
          %v4971 = vunpack.c.l.bf16 %v4680
          %v4972 = vunpack.c.h.bf16 %v4680
          %v4973 = vunpack.c.l.bf16 %v4681
          %v4974 = vunpack.c.h.bf16 %v4681
          %v4975 = vunpack.c.l.bf16 %v4682
          %v4976 = vunpack.c.h.bf16 %v4682
          %v4977 = vunpack.c.l.bf16 %v4683
          %v4978 = vunpack.c.h.bf16 %v4683
          %v4979 = vunpack.c.l.bf16 %v4684
          %v4980 = vunpack.c.h.bf16 %v4684
          %v4981 = vunpack.c.l.bf16 %v4685
          %v4982 = vunpack.c.h.bf16 %v4685
          %v4983 = vunpack.c.l.bf16 %v4686
          %v4984 = vunpack.c.h.bf16 %v4686
          %v4985 = vunpack.c.l.bf16 %v4687
          %v4986 = vunpack.c.h.bf16 %v4687
          %v4987 = vunpack.c.l.bf16 %v4688
          %v4988 = vunpack.c.h.bf16 %v4688
          %v4989 = vunpack.c.l.bf16 %v4689
          %v4990 = vunpack.c.h.bf16 %v4689
          %v4991 = vunpack.c.l.bf16 %v4690
          %v4992 = vunpack.c.h.bf16 %v4690
          %v4993 = vunpack.c.l.bf16 %v4691
          %v4994 = vunpack.c.h.bf16 %v4691
          %v4995 = vunpack.c.l.bf16 %v4692
          %v4996 = vunpack.c.h.bf16 %v4692
          %v4997 = vunpack.c.l.bf16 %v4693
          %v4998 = vunpack.c.h.bf16 %v4693
          %v4999 = vunpack.c.l.bf16 %v4694
          %v5000 = vunpack.c.h.bf16 %v4694
          %v5001 = vunpack.c.l.bf16 %v4695
          %v5002 = vunpack.c.h.bf16 %v4695
          %v5003 = vunpack.c.l.bf16 %v4696
          %v5004 = vunpack.c.h.bf16 %v4696
          %v5005 = vunpack.c.l.bf16 %v4697
          %v5006 = vunpack.c.h.bf16 %v4697
          %v5007 = vunpack.c.l.bf16 %v4698
          %v5008 = vunpack.c.h.bf16 %v4698
          %v5009 = vunpack.c.l.bf16 %v4699
          %v5010 = vunpack.c.h.bf16 %v4699
          %v5011 = vunpack.c.l.bf16 %v4700
          %v5012 = vunpack.c.h.bf16 %v4700
          %v5013 = vunpack.c.l.bf16 %v4701
          %v5014 = vunpack.c.h.bf16 %v4701
          %v5015 = vunpack.c.l.bf16 %v4702
          %v5016 = vunpack.c.h.bf16 %v4702
          %v5017 = vunpack.c.l.bf16 %v4703
          %v5018 = vunpack.c.h.bf16 %v4703
          %v5019 = vunpack.c.l.bf16 %v4704
          %v5020 = vunpack.c.h.bf16 %v4704
          %v5021 = vunpack.c.l.bf16 %v4705
          %v5022 = vunpack.c.h.bf16 %v4705
          %v5023 = vunpack.c.l.bf16 %v4706
          %v5024 = vunpack.c.h.bf16 %v4706
          %v5025 = vunpack.c.l.bf16 %v4707
          %v5026 = vunpack.c.h.bf16 %v4707
          %v5027 = vunpack.c.l.bf16 %v4708
          %v5028 = vunpack.c.h.bf16 %v4708
          %v5029 = vld [vmem:[%s11] sm:$0xff]
          %v5030 = vld [vmem:[%s11 + $0x8] sm:$0xff]
          %vm5031 = vcmask 64512
          %v5033 = vsel %vm5031, %v4548, 0
          %5035 = vmatpush.msra.mxu0 0.0
          %5036 = vmatpush.msra.mxu0 0.0
          %5037 = vmatpush.msra.mxu0 0.0
          %5038 = vmatpush.msra.mxu0 0.0
          %5039 = vmatpush.msra.mxu0 0.0
          %5040 = vmatpush.msra.mxu0 0.0
          %5041 = vmatpush.msra.mxu0 0.0
          %5042 = vmatpush.msra.mxu0 0.0
          %5043 = vmatpush.msra.mxu0 0.0
          %5044 = vmatpush.msra.mxu0 0.0
          %5045 = vmatpush.msra.mxu0 0.0
          %5046 = vmatpush.msra.mxu0 0.0
          %5047 = vmatpush.msra.mxu0 0.0
          %5048 = vmatpush.msra.mxu0 0.0
          %5049 = vmatpush.msra.mxu0 0.0
          %5050 = vmatpush.msra.mxu0 %v5029
          %5051 = vmatmul.f32.gmra.mxu0 %v5033
          %v5052 = vpop.f32.mrf.mxu0
          %v5053 = vadd.f32 0.0, %v5052
          %5054 = vdwg.mxu0
          %5055 = vmatpush.msra.mxu0 0.0
          %5056 = vmatpush.msra.mxu0 0.0
          %5057 = vmatpush.msra.mxu0 0.0
          %5058 = vmatpush.msra.mxu0 0.0
          %5059 = vmatpush.msra.mxu0 0.0
          %5060 = vmatpush.msra.mxu0 0.0
          %5061 = vmatpush.msra.mxu0 0.0
          %5062 = vmatpush.msra.mxu0 0.0
          %5063 = vmatpush.msra.mxu0 0.0
          %5064 = vmatpush.msra.mxu0 0.0
          %5065 = vmatpush.msra.mxu0 0.0
          %5066 = vmatpush.msra.mxu0 0.0
          %5067 = vmatpush.msra.mxu0 0.0
          %5068 = vmatpush.msra.mxu0 0.0
          %5069 = vmatpush.msra.mxu0 0.0
          %5070 = vmatpush.msra.mxu0 %v5030
          %5071 = vmatmul.f32.gmra.mxu0 %v5033
          %v5072 = vpop.f32.mrf.mxu0
          %v5073 = vadd.f32 0.0, %v5072
          %5074 = vdwg.mxu0
          %v5077 = vperm.slane %v4488, 0
          %v5078 = vperm.slane %v4488, 1
          %v5079 = vperm.slane %v4488, 2
          %v5080 = vperm.slane %v4488, 3
          %v5081 = vperm.slane %v4488, 4
          %v5082 = vperm.slane %v4488, 5
          %v5083 = vperm.slane %v4488, 6
          %v5084 = vperm.slane %v4488, 7
          %v5085 = vperm.slane %v4489, 0
          %v5086 = vperm.slane %v4489, 1
          %5097 = vmatpush.msra.mxu0 %v4739
          %5098 = vmatpush.msra.mxu0 %v4737
          %5099 = vmatpush.msra.mxu0 %v4735
          %5100 = vmatpush.msra.mxu0 %v4733
          %5101 = vmatpush.msra.mxu0 %v4731
          %5102 = vmatpush.msra.mxu0 %v4729
          %5103 = vmatpush.msra.mxu0 %v4727
          %5104 = vmatpush.msra.mxu0 %v4725
          %5105 = vmatpush.msra.mxu0 %v4723
          %5106 = vmatpush.msra.mxu0 %v4721
          %5107 = vmatpush.msra.mxu0 %v4719
          %5108 = vmatpush.msra.mxu0 %v4717
          %5109 = vmatpush.msra.mxu0 %v4715
          %5110 = vmatpush.msra.mxu0 %v4713
          %5111 = vmatpush.msra.mxu0 %v4711
          %5112 = vmatpush.msra.mxu0 %v4709
          %5113 = vmatmul.f32.gmra.mxu0 %v5077
          %v5114 = vpop.f32.mrf.mxu0
          %v5115 = vadd.f32 %v5053, %v5114
          %5116 = vdwg.mxu0
          %5117 = vmatpush.msra.mxu0 %v4771
          %5118 = vmatpush.msra.mxu0 %v4769
          %5119 = vmatpush.msra.mxu0 %v4767
          %5120 = vmatpush.msra.mxu0 %v4765
          %5121 = vmatpush.msra.mxu0 %v4763
          %5122 = vmatpush.msra.mxu0 %v4761
          %5123 = vmatpush.msra.mxu0 %v4759
          %5124 = vmatpush.msra.mxu0 %v4757
          %5125 = vmatpush.msra.mxu0 %v4755
          %5126 = vmatpush.msra.mxu0 %v4753
          %5127 = vmatpush.msra.mxu0 %v4751
          %5128 = vmatpush.msra.mxu0 %v4749
          %5129 = vmatpush.msra.mxu0 %v4747
          %5130 = vmatpush.msra.mxu0 %v4745
          %5131 = vmatpush.msra.mxu0 %v4743
          %5132 = vmatpush.msra.mxu0 %v4741
          %5133 = vmatmul.f32.gmra.mxu0 %v5078
          %v5134 = vpop.f32.mrf.mxu0
          %v5135 = vadd.f32 %v5115, %v5134
          %5136 = vdwg.mxu0
          %5137 = vmatpush.msra.mxu0 %v4803
          %5138 = vmatpush.msra.mxu0 %v4801
          %5139 = vmatpush.msra.mxu0 %v4799
          %5140 = vmatpush.msra.mxu0 %v4797
          %5141 = vmatpush.msra.mxu0 %v4795
          %5142 = vmatpush.msra.mxu0 %v4793
          %5143 = vmatpush.msra.mxu0 %v4791
          %5144 = vmatpush.msra.mxu0 %v4789
          %5145 = vmatpush.msra.mxu0 %v4787
          %5146 = vmatpush.msra.mxu0 %v4785
          %5147 = vmatpush.msra.mxu0 %v4783
          %5148 = vmatpush.msra.mxu0 %v4781
          %5149 = vmatpush.msra.mxu0 %v4779
          %5150 = vmatpush.msra.mxu0 %v4777
          %5151 = vmatpush.msra.mxu0 %v4775
          %5152 = vmatpush.msra.mxu0 %v4773
          %5153 = vmatmul.f32.gmra.mxu0 %v5079
          %v5154 = vpop.f32.mrf.mxu0
          %v5155 = vadd.f32 %v5135, %v5154
          %5156 = vdwg.mxu0
          %5157 = vmatpush.msra.mxu0 %v4835
          %5158 = vmatpush.msra.mxu0 %v4833
          %5159 = vmatpush.msra.mxu0 %v4831
          %5160 = vmatpush.msra.mxu0 %v4829
          %5161 = vmatpush.msra.mxu0 %v4827
          %5162 = vmatpush.msra.mxu0 %v4825
          %5163 = vmatpush.msra.mxu0 %v4823
          %5164 = vmatpush.msra.mxu0 %v4821
          %5165 = vmatpush.msra.mxu0 %v4819
          %5166 = vmatpush.msra.mxu0 %v4817
          %5167 = vmatpush.msra.mxu0 %v4815
          %5168 = vmatpush.msra.mxu0 %v4813
          %5169 = vmatpush.msra.mxu0 %v4811
          %5170 = vmatpush.msra.mxu0 %v4809
          %5171 = vmatpush.msra.mxu0 %v4807
          %5172 = vmatpush.msra.mxu0 %v4805
          %5173 = vmatmul.f32.gmra.mxu0 %v5080
          %v5174 = vpop.f32.mrf.mxu0
          %v5175 = vadd.f32 %v5155, %v5174
          %5176 = vdwg.mxu0
          %5177 = vmatpush.msra.mxu0 %v4867
          %5178 = vmatpush.msra.mxu0 %v4865
          %5179 = vmatpush.msra.mxu0 %v4863
          %5180 = vmatpush.msra.mxu0 %v4861
          %5181 = vmatpush.msra.mxu0 %v4859
          %5182 = vmatpush.msra.mxu0 %v4857
          %5183 = vmatpush.msra.mxu0 %v4855
          %5184 = vmatpush.msra.mxu0 %v4853
          %5185 = vmatpush.msra.mxu0 %v4851
          %5186 = vmatpush.msra.mxu0 %v4849
          %5187 = vmatpush.msra.mxu0 %v4847
          %5188 = vmatpush.msra.mxu0 %v4845
          %5189 = vmatpush.msra.mxu0 %v4843
          %5190 = vmatpush.msra.mxu0 %v4841
          %5191 = vmatpush.msra.mxu0 %v4839
          %5192 = vmatpush.msra.mxu0 %v4837
          %5193 = vmatmul.f32.gmra.mxu0 %v5081
          %v5194 = vpop.f32.mrf.mxu0
          %v5195 = vadd.f32 %v5175, %v5194
          %5196 = vdwg.mxu0
          %5197 = vmatpush.msra.mxu0 %v4899
          %5198 = vmatpush.msra.mxu0 %v4897
          %5199 = vmatpush.msra.mxu0 %v4895
          %5200 = vmatpush.msra.mxu0 %v4893
          %5201 = vmatpush.msra.mxu0 %v4891
          %5202 = vmatpush.msra.mxu0 %v4889
          %5203 = vmatpush.msra.mxu0 %v4887
          %5204 = vmatpush.msra.mxu0 %v4885
          %5205 = vmatpush.msra.mxu0 %v4883
          %5206 = vmatpush.msra.mxu0 %v4881
          %5207 = vmatpush.msra.mxu0 %v4879
          %5208 = vmatpush.msra.mxu0 %v4877
          %5209 = vmatpush.msra.mxu0 %v4875
          %5210 = vmatpush.msra.mxu0 %v4873
          %5211 = vmatpush.msra.mxu0 %v4871
          %5212 = vmatpush.msra.mxu0 %v4869
          %5213 = vmatmul.f32.gmra.mxu0 %v5082
          %v5214 = vpop.f32.mrf.mxu0
          %v5215 = vadd.f32 %v5195, %v5214
          %5216 = vdwg.mxu0
          %5217 = vmatpush.msra.mxu0 %v4931
          %5218 = vmatpush.msra.mxu0 %v4929
          %5219 = vmatpush.msra.mxu0 %v4927
          %5220 = vmatpush.msra.mxu0 %v4925
          %5221 = vmatpush.msra.mxu0 %v4923
          %5222 = vmatpush.msra.mxu0 %v4921
          %5223 = vmatpush.msra.mxu0 %v4919
          %5224 = vmatpush.msra.mxu0 %v4917
          %5225 = vmatpush.msra.mxu0 %v4915
          %5226 = vmatpush.msra.mxu0 %v4913
          %5227 = vmatpush.msra.mxu0 %v4911
          %5228 = vmatpush.msra.mxu0 %v4909
          %5229 = vmatpush.msra.mxu0 %v4907
          %5230 = vmatpush.msra.mxu0 %v4905
          %5231 = vmatpush.msra.mxu0 %v4903
          %5232 = vmatpush.msra.mxu0 %v4901
          %5233 = vmatmul.f32.gmra.mxu0 %v5083
          %v5234 = vpop.f32.mrf.mxu0
          %v5235 = vadd.f32 %v5215, %v5234
          %5236 = vdwg.mxu0
          %5237 = vmatpush.msra.mxu0 %v4963
          %5238 = vmatpush.msra.mxu0 %v4961
          %5239 = vmatpush.msra.mxu0 %v4959
          %5240 = vmatpush.msra.mxu0 %v4957
          %5241 = vmatpush.msra.mxu0 %v4955
          %5242 = vmatpush.msra.mxu0 %v4953
          %5243 = vmatpush.msra.mxu0 %v4951
          %5244 = vmatpush.msra.mxu0 %v4949
          %5245 = vmatpush.msra.mxu0 %v4947
          %5246 = vmatpush.msra.mxu0 %v4945
          %5247 = vmatpush.msra.mxu0 %v4943
          %5248 = vmatpush.msra.mxu0 %v4941
          %5249 = vmatpush.msra.mxu0 %v4939
          %5250 = vmatpush.msra.mxu0 %v4937
          %5251 = vmatpush.msra.mxu0 %v4935
          %5252 = vmatpush.msra.mxu0 %v4933
          %5253 = vmatmul.f32.gmra.mxu0 %v5084
          %v5254 = vpop.f32.mrf.mxu0
          %v5255 = vadd.f32 %v5235, %v5254
          %5256 = vdwg.mxu0
          %5257 = vmatpush.msra.mxu0 %v4995
          %5258 = vmatpush.msra.mxu0 %v4993
          %5259 = vmatpush.msra.mxu0 %v4991
          %5260 = vmatpush.msra.mxu0 %v4989
          %5261 = vmatpush.msra.mxu0 %v4987
          %5262 = vmatpush.msra.mxu0 %v4985
          %5263 = vmatpush.msra.mxu0 %v4983
          %5264 = vmatpush.msra.mxu0 %v4981
          %5265 = vmatpush.msra.mxu0 %v4979
          %5266 = vmatpush.msra.mxu0 %v4977
          %5267 = vmatpush.msra.mxu0 %v4975
          %5268 = vmatpush.msra.mxu0 %v4973
          %5269 = vmatpush.msra.mxu0 %v4971
          %5270 = vmatpush.msra.mxu0 %v4969
          %5271 = vmatpush.msra.mxu0 %v4967
          %5272 = vmatpush.msra.mxu0 %v4965
          %5273 = vmatmul.f32.gmra.mxu0 %v5085
          %v5274 = vpop.f32.mrf.mxu0
          %v5275 = vadd.f32 %v5255, %v5274
          %5276 = vdwg.mxu0
          %5277 = vmatpush.msra.mxu0 %v5027
          %5278 = vmatpush.msra.mxu0 %v5025
          %5279 = vmatpush.msra.mxu0 %v5023
          %5280 = vmatpush.msra.mxu0 %v5021
          %5281 = vmatpush.msra.mxu0 %v5019
          %5282 = vmatpush.msra.mxu0 %v5017
          %5283 = vmatpush.msra.mxu0 %v5015
          %5284 = vmatpush.msra.mxu0 %v5013
          %5285 = vmatpush.msra.mxu0 %v5011
          %5286 = vmatpush.msra.mxu0 %v5009
          %5287 = vmatpush.msra.mxu0 %v5007
          %5288 = vmatpush.msra.mxu0 %v5005
          %5289 = vmatpush.msra.mxu0 %v5003
          %5290 = vmatpush.msra.mxu0 %v5001
          %5291 = vmatpush.msra.mxu0 %v4999
          %5292 = vmatpush.msra.mxu0 %v4997
          %5293 = vmatmul.f32.gmra.mxu0 %v5086
          %v5294 = vpop.f32.mrf.mxu0
          %v5295 = vadd.f32 %v5275, %v5294
          %5296 = vdwg.mxu0
          %5297 = vmatpush.msra.mxu0 %v4740
          %5298 = vmatpush.msra.mxu0 %v4738
          %5299 = vmatpush.msra.mxu0 %v4736
          %5300 = vmatpush.msra.mxu0 %v4734
          %5301 = vmatpush.msra.mxu0 %v4732
          %5302 = vmatpush.msra.mxu0 %v4730
          %5303 = vmatpush.msra.mxu0 %v4728
          %5304 = vmatpush.msra.mxu0 %v4726
          %5305 = vmatpush.msra.mxu0 %v4724
          %5306 = vmatpush.msra.mxu0 %v4722
          %5307 = vmatpush.msra.mxu0 %v4720
          %5308 = vmatpush.msra.mxu0 %v4718
          %5309 = vmatpush.msra.mxu0 %v4716
          %5310 = vmatpush.msra.mxu0 %v4714
          %5311 = vmatpush.msra.mxu0 %v4712
          %5312 = vmatpush.msra.mxu0 %v4710
          %5313 = vmatmul.f32.gmra.mxu0 %v5077
          %v5314 = vpop.f32.mrf.mxu0
          %v5315 = vadd.f32 %v5073, %v5314
          %5316 = vdwg.mxu0
          %5317 = vmatpush.msra.mxu0 %v4772
          %5318 = vmatpush.msra.mxu0 %v4770
          %5319 = vmatpush.msra.mxu0 %v4768
          %5320 = vmatpush.msra.mxu0 %v4766
          %5321 = vmatpush.msra.mxu0 %v4764
          %5322 = vmatpush.msra.mxu0 %v4762
          %5323 = vmatpush.msra.mxu0 %v4760
          %5324 = vmatpush.msra.mxu0 %v4758
          %5325 = vmatpush.msra.mxu0 %v4756
          %5326 = vmatpush.msra.mxu0 %v4754
          %5327 = vmatpush.msra.mxu0 %v4752
          %5328 = vmatpush.msra.mxu0 %v4750
          %5329 = vmatpush.msra.mxu0 %v4748
          %5330 = vmatpush.msra.mxu0 %v4746
          %5331 = vmatpush.msra.mxu0 %v4744
          %5332 = vmatpush.msra.mxu0 %v4742
          %5333 = vmatmul.f32.gmra.mxu0 %v5078
          %v5334 = vpop.f32.mrf.mxu0
          %v5335 = vadd.f32 %v5315, %v5334
          %5336 = vdwg.mxu0
          %5337 = vmatpush.msra.mxu0 %v4804
          %5338 = vmatpush.msra.mxu0 %v4802
          %5339 = vmatpush.msra.mxu0 %v4800
          %5340 = vmatpush.msra.mxu0 %v4798
          %5341 = vmatpush.msra.mxu0 %v4796
          %5342 = vmatpush.msra.mxu0 %v4794
          %5343 = vmatpush.msra.mxu0 %v4792
          %5344 = vmatpush.msra.mxu0 %v4790
          %5345 = vmatpush.msra.mxu0 %v4788
          %5346 = vmatpush.msra.mxu0 %v4786
          %5347 = vmatpush.msra.mxu0 %v4784
          %5348 = vmatpush.msra.mxu0 %v4782
          %5349 = vmatpush.msra.mxu0 %v4780
          %5350 = vmatpush.msra.mxu0 %v4778
          %5351 = vmatpush.msra.mxu0 %v4776
          %5352 = vmatpush.msra.mxu0 %v4774
          %5353 = vmatmul.f32.gmra.mxu0 %v5079
          %v5354 = vpop.f32.mrf.mxu0
          %v5355 = vadd.f32 %v5335, %v5354
          %5356 = vdwg.mxu0
          %5357 = vmatpush.msra.mxu0 %v4836
          %5358 = vmatpush.msra.mxu0 %v4834
          %5359 = vmatpush.msra.mxu0 %v4832
          %5360 = vmatpush.msra.mxu0 %v4830
          %5361 = vmatpush.msra.mxu0 %v4828
          %5362 = vmatpush.msra.mxu0 %v4826
          %5363 = vmatpush.msra.mxu0 %v4824
          %5364 = vmatpush.msra.mxu0 %v4822
          %5365 = vmatpush.msra.mxu0 %v4820
          %5366 = vmatpush.msra.mxu0 %v4818
          %5367 = vmatpush.msra.mxu0 %v4816
          %5368 = vmatpush.msra.mxu0 %v4814
          %5369 = vmatpush.msra.mxu0 %v4812
          %5370 = vmatpush.msra.mxu0 %v4810
          %5371 = vmatpush.msra.mxu0 %v4808
          %5372 = vmatpush.msra.mxu0 %v4806
          %5373 = vmatmul.f32.gmra.mxu0 %v5080
          %v5374 = vpop.f32.mrf.mxu0
          %v5375 = vadd.f32 %v5355, %v5374
          %5376 = vdwg.mxu0
          %5377 = vmatpush.msra.mxu0 %v4868
          %5378 = vmatpush.msra.mxu0 %v4866
          %5379 = vmatpush.msra.mxu0 %v4864
          %5380 = vmatpush.msra.mxu0 %v4862
          %5381 = vmatpush.msra.mxu0 %v4860
          %5382 = vmatpush.msra.mxu0 %v4858
          %5383 = vmatpush.msra.mxu0 %v4856
          %5384 = vmatpush.msra.mxu0 %v4854
          %5385 = vmatpush.msra.mxu0 %v4852
          %5386 = vmatpush.msra.mxu0 %v4850
          %5387 = vmatpush.msra.mxu0 %v4848
          %5388 = vmatpush.msra.mxu0 %v4846
          %5389 = vmatpush.msra.mxu0 %v4844
          %5390 = vmatpush.msra.mxu0 %v4842
          %5391 = vmatpush.msra.mxu0 %v4840
          %5392 = vmatpush.msra.mxu0 %v4838
          %5393 = vmatmul.f32.gmra.mxu0 %v5081
          %v5394 = vpop.f32.mrf.mxu0
          %v5395 = vadd.f32 %v5375, %v5394
          %5396 = vdwg.mxu0
          %5397 = vmatpush.msra.mxu0 %v4900
          %5398 = vmatpush.msra.mxu0 %v4898
          %5399 = vmatpush.msra.mxu0 %v4896
          %5400 = vmatpush.msra.mxu0 %v4894
          %5401 = vmatpush.msra.mxu0 %v4892
          %5402 = vmatpush.msra.mxu0 %v4890
          %5403 = vmatpush.msra.mxu0 %v4888
          %5404 = vmatpush.msra.mxu0 %v4886
          %5405 = vmatpush.msra.mxu0 %v4884
          %5406 = vmatpush.msra.mxu0 %v4882
          %5407 = vmatpush.msra.mxu0 %v4880
          %5408 = vmatpush.msra.mxu0 %v4878
          %5409 = vmatpush.msra.mxu0 %v4876
          %5410 = vmatpush.msra.mxu0 %v4874
          %5411 = vmatpush.msra.mxu0 %v4872
          %5412 = vmatpush.msra.mxu0 %v4870
          %5413 = vmatmul.f32.gmra.mxu0 %v5082
          %v5414 = vpop.f32.mrf.mxu0
          %v5415 = vadd.f32 %v5395, %v5414
          %5416 = vdwg.mxu0
          %5417 = vmatpush.msra.mxu0 %v4932
          %5418 = vmatpush.msra.mxu0 %v4930
          %5419 = vmatpush.msra.mxu0 %v4928
          %5420 = vmatpush.msra.mxu0 %v4926
          %5421 = vmatpush.msra.mxu0 %v4924
          %5422 = vmatpush.msra.mxu0 %v4922
          %5423 = vmatpush.msra.mxu0 %v4920
          %5424 = vmatpush.msra.mxu0 %v4918
          %5425 = vmatpush.msra.mxu0 %v4916
          %5426 = vmatpush.msra.mxu0 %v4914
          %5427 = vmatpush.msra.mxu0 %v4912
          %5428 = vmatpush.msra.mxu0 %v4910
          %5429 = vmatpush.msra.mxu0 %v4908
          %5430 = vmatpush.msra.mxu0 %v4906
          %5431 = vmatpush.msra.mxu0 %v4904
          %5432 = vmatpush.msra.mxu0 %v4902
          %5433 = vmatmul.f32.gmra.mxu0 %v5083
          %v5434 = vpop.f32.mrf.mxu0
          %v5435 = vadd.f32 %v5415, %v5434
          %5436 = vdwg.mxu0
          %5437 = vmatpush.msra.mxu0 %v4964
          %5438 = vmatpush.msra.mxu0 %v4962
          %5439 = vmatpush.msra.mxu0 %v4960
          %5440 = vmatpush.msra.mxu0 %v4958
          %5441 = vmatpush.msra.mxu0 %v4956
          %5442 = vmatpush.msra.mxu0 %v4954
          %5443 = vmatpush.msra.mxu0 %v4952
          %5444 = vmatpush.msra.mxu0 %v4950
          %5445 = vmatpush.msra.mxu0 %v4948
          %5446 = vmatpush.msra.mxu0 %v4946
          %5447 = vmatpush.msra.mxu0 %v4944
          %5448 = vmatpush.msra.mxu0 %v4942
          %5449 = vmatpush.msra.mxu0 %v4940
          %5450 = vmatpush.msra.mxu0 %v4938
          %5451 = vmatpush.msra.mxu0 %v4936
          %5452 = vmatpush.msra.mxu0 %v4934
          %5453 = vmatmul.f32.gmra.mxu0 %v5084
          %v5454 = vpop.f32.mrf.mxu0
          %v5455 = vadd.f32 %v5435, %v5454
          %5456 = vdwg.mxu0
          %5457 = vmatpush.msra.mxu0 %v4996
          %5458 = vmatpush.msra.mxu0 %v4994
          %5459 = vmatpush.msra.mxu0 %v4992
          %5460 = vmatpush.msra.mxu0 %v4990
          %5461 = vmatpush.msra.mxu0 %v4988
          %5462 = vmatpush.msra.mxu0 %v4986
          %5463 = vmatpush.msra.mxu0 %v4984
          %5464 = vmatpush.msra.mxu0 %v4982
          %5465 = vmatpush.msra.mxu0 %v4980
          %5466 = vmatpush.msra.mxu0 %v4978
          %5467 = vmatpush.msra.mxu0 %v4976
          %5468 = vmatpush.msra.mxu0 %v4974
          %5469 = vmatpush.msra.mxu0 %v4972
          %5470 = vmatpush.msra.mxu0 %v4970
          %5471 = vmatpush.msra.mxu0 %v4968
          %5472 = vmatpush.msra.mxu0 %v4966
          %5473 = vmatmul.f32.gmra.mxu0 %v5085
          %v5474 = vpop.f32.mrf.mxu0
          %v5475 = vadd.f32 %v5455, %v5474
          %5476 = vdwg.mxu0
          %5477 = vmatpush.msra.mxu0 %v5028
          %5478 = vmatpush.msra.mxu0 %v5026
          %5479 = vmatpush.msra.mxu0 %v5024
          %5480 = vmatpush.msra.mxu0 %v5022
          %5481 = vmatpush.msra.mxu0 %v5020
          %5482 = vmatpush.msra.mxu0 %v5018
          %5483 = vmatpush.msra.mxu0 %v5016
          %5484 = vmatpush.msra.mxu0 %v5014
          %5485 = vmatpush.msra.mxu0 %v5012
          %5486 = vmatpush.msra.mxu0 %v5010
          %5487 = vmatpush.msra.mxu0 %v5008
          %5488 = vmatpush.msra.mxu0 %v5006
          %5489 = vmatpush.msra.mxu0 %v5004
          %5490 = vmatpush.msra.mxu0 %v5002
          %5491 = vmatpush.msra.mxu0 %v5000
          %5492 = vmatpush.msra.mxu0 %v4998
          %5493 = vmatmul.f32.gmra.mxu0 %v5086
          %v5494 = vpop.f32.mrf.mxu0
          %v5495 = vadd.f32 %v5475, %v5494
          %5496 = vdwg.mxu0
          %v5497 = vld [vmem:[%s12] sm:$0x3]
          %v5499 = vperm.slane %v5497, 0
          %v5500 = vperm.slane %v5497, 1
          %v5503 = vadd.f32 %v5295, %v5499
          %v5504 = vadd.f32 %v5495, %v5500
          %v5505 = vmax.f32 %v5503, 0.0
          %v5506 = vmax.f32 %v5504, 0.0
          %v5507 = vld [vmem:[%s13] sm:$0xff]
          %v5508 = vld [vmem:[%s13 + $0x8] sm:$0xff]
          %v5509 = vld [vmem:[%s13 + $0x10] sm:$0xff]
          %v5510 = vld [vmem:[%s13 + $0x18] sm:$0xff]
          %v5511 = vld [vmem:[%s13 + $0x20] sm:$0xff]
          %v5512 = vld [vmem:[%s13 + $0x28] sm:$0xff]
          %v5513 = vld [vmem:[%s13 + $0x30] sm:$0xff]
          %v5514 = vld [vmem:[%s13 + $0x38] sm:$0xff]
          %v5515 = vld [vmem:[%s13 + $0x40] sm:$0xff]
          %v5516 = vld [vmem:[%s13 + $0x48] sm:$0xff]
          %v5517 = vld [vmem:[%s13 + $0x50] sm:$0xff]
          %v5518 = vld [vmem:[%s13 + $0x58] sm:$0xff]
          %v5519 = vld [vmem:[%s13 + $0x60] sm:$0xff]
          %v5520 = vld [vmem:[%s13 + $0x68] sm:$0xff]
          %v5521 = vld [vmem:[%s13 + $0x70] sm:$0xff]
          %v5522 = vld [vmem:[%s13 + $0x78] sm:$0xff]
          %v5523 = vld [vmem:[%s13 + $0x80] sm:$0xff]
          %v5524 = vld [vmem:[%s13 + $0x88] sm:$0xff]
          %v5525 = vld [vmem:[%s13 + $0x90] sm:$0xff]
          %v5526 = vld [vmem:[%s13 + $0x98] sm:$0xff]
          %v5527 = vld [vmem:[%s13 + $0xa0] sm:$0xff]
          %v5528 = vld [vmem:[%s13 + $0xa8] sm:$0xff]
          %v5529 = vld [vmem:[%s13 + $0xb0] sm:$0xff]
          %v5530 = vld [vmem:[%s13 + $0xb8] sm:$0xff]
          %v5531 = vld [vmem:[%s13 + $0xc0] sm:$0xff]
          %v5532 = vld [vmem:[%s13 + $0xc8] sm:$0xff]
          %v5533 = vld [vmem:[%s13 + $0xd0] sm:$0xff]
          %v5534 = vld [vmem:[%s13 + $0xd8] sm:$0xff]
          %v5535 = vld [vmem:[%s13 + $0xe0] sm:$0xff]
          %v5536 = vld [vmem:[%s13 + $0xe8] sm:$0xff]
          %v5537 = vld [vmem:[%s13 + $0xf0] sm:$0xff]
          %v5538 = vld [vmem:[%s13 + $0xf8] sm:$0xff]
          %v5539 = vld [vmem:[%s14] sm:$0x1]
          %5540 = vmatpush.msra.mxu0 %v5522
          %5541 = vmatpush.msra.mxu0 %v5521
          %5542 = vmatpush.msra.mxu0 %v5520
          %5543 = vmatpush.msra.mxu0 %v5519
          %5544 = vmatpush.msra.mxu0 %v5518
          %5545 = vmatpush.msra.mxu0 %v5517
          %5546 = vmatpush.msra.mxu0 %v5516
          %5547 = vmatpush.msra.mxu0 %v5515
          %5548 = vmatpush.msra.mxu0 %v5514
          %5549 = vmatpush.msra.mxu0 %v5513
          %5550 = vmatpush.msra.mxu0 %v5512
          %5551 = vmatpush.msra.mxu0 %v5511
          %5552 = vmatpush.msra.mxu0 %v5510
          %5553 = vmatpush.msra.mxu0 %v5509
          %5554 = vmatpush.msra.mxu0 %v5508
          %5555 = vmatpush.msra.mxu0 %v5507
          %5556 = vmatmul.f32.gmra.mxu0 %v5505
          %v5557 = vpop.f32.mrf.mxu0
          %v5558 = vadd.f32 %v5539, %v5557
          %5559 = vdwg.mxu0
          %5560 = vmatpush.msra.mxu0 %v5538
          %5561 = vmatpush.msra.mxu0 %v5537
          %5562 = vmatpush.msra.mxu0 %v5536
          %5563 = vmatpush.msra.mxu0 %v5535
          %5564 = vmatpush.msra.mxu0 %v5534
          %5565 = vmatpush.msra.mxu0 %v5533
          %5566 = vmatpush.msra.mxu0 %v5532
          %5567 = vmatpush.msra.mxu0 %v5531
          %5568 = vmatpush.msra.mxu0 %v5530
          %5569 = vmatpush.msra.mxu0 %v5529
          %5570 = vmatpush.msra.mxu0 %v5528
          %5571 = vmatpush.msra.mxu0 %v5527
          %5572 = vmatpush.msra.mxu0 %v5526
          %5573 = vmatpush.msra.mxu0 %v5525
          %5574 = vmatpush.msra.mxu0 %v5524
          %5575 = vmatpush.msra.mxu0 %v5523
          %5576 = vmatmul.f32.gmra.mxu0 %v5506
          %v5577 = vpop.f32.mrf.mxu0
          %v5578 = vadd.f32 %v5558, %v5577
          %5579 = vdwg.mxu0
          %vm5580 = vcmask 8192
          %5581 = vst.msk [vmem:[%s520] sm:$0x1] %vm5580, %v5578
        $region88: #{skin_cancer_forward.1} parent=79 // pred_fallthru
          _
        %s5582 = sand.u32 %s376, 1
        %s5583 = scalar_lea.sflag [#allocation4], %s5582
        %s5584 = sand.u32 %s376, 1
        %s5585 = scalar_lea.vmem [#allocation3], %s5584
        // Predicated region
        $region89: #{skin_cancer_forward.1} parent=79 // pred_check
          %p5586 = pneg %p386
        $region90: #{skin_cancer_forward.1} parent=79 // pred_check_branch
          %5588 = sbr.rel (%p5586) target = $region92
        $region91: #{skin_cancer_forward.1} parent=79 // pred_region
          %5590 = vsyncadd %s5583, 0
          %s5591 = scalar_lea.hbm %s15, %s33
          %s5593 = sshll.u32 %s5585, 4
          %s5594 = int_to_ptr.vmem [resolvable:$true] %s5593
          %s5595 = sshll.u32 %s5591, 4
          %s5596 = int_to_ptr.hbm [resolvable:$true] %s5595
          %5598 = dma.vmem_to_hbm [thread:$0]  %s5594, 16, %s5596, %s5583
        $region92: #{skin_cancer_forward.1} parent=79 // pred_fallthru
          _
      $region80: #{skin_cancer_forward.1} parent=5 // pred_fallthru
        _
      %p5599 = scmp.le.s32.totalorder 2, %s24
      // Predicated region
      $region93: #{skin_cancer_forward.1} parent=5 // pred_check
        %p5600 = pneg %p5599
      $region94: #{skin_cancer_forward.1} parent=5 // pred_check_branch
        %5602 = sbr.rel (%p5600) target = $region96
      $region95: #{skin_cancer_forward.1} parent=5 // pred_region
        %s5603 = ssub.s32 %s24, 2
        // Predicated region
        $region97: #{skin_cancer_forward.1} parent=95 // pred_check
          %p5604 = pneg %p392
        $region98: #{skin_cancer_forward.1} parent=95 // pred_check_branch
          %5606 = sbr.rel (%p5604) target = $region100
        $region99: #{skin_cancer_forward.1} parent=95 // pred_region
          %s5607 = sand.u32 %s377, 1
          %s5608 = scalar_lea.sflag [#allocation4], %s5607
          %s5609 = sand.u32 %s377, 1
          %s5610 = scalar_lea.vmem [#allocation3], %s5609
          %5612 = dma.done %s5608, 16
        $region100: #{skin_cancer_forward.1} parent=95 // pred_fallthru
          _
      $region96: #{skin_cancer_forward.1} parent=5 // pred_fallthru
        _
    $region6: #{skin_cancer_forward.1} parent=1 // loop_footer
      %s28 = sadd.s32 1, %s24
    $region7: #{skin_cancer_forward.1} parent=1 // loop_footer_branch
      %23 = sbr.rel target = $region3
    $region8: #{skin_cancer_forward.1} parent=1 // loop_exit
      _
    %5613 = vsyncpa [#allocation4], 1
    %s5614 = scalar_lea.sflag [#allocation4], 1
    %5615 = vsyncpa %s5614, 1

</llo_original>
